<compile_context>
chip_gen: v5e
topology: v5e:2x2
jax: 0.10.0
libtpu: 0.0.40
codegen_flags: <defaults>
</compile_context>

<pallas_src>
import math

import jax
import jax.numpy as jnp
from jax.experimental import pallas as pl
from jax.experimental.pallas import tpu as pltpu


# ----------------------------------------------------------------------------
# Fused kernel.  One grid step == one 8-row batch tile.
# Gate-column layout (G = 8H = 128):  [ i_f | i_b | f_f | f_b | g_f | g_b | o_f | o_b ]
# Hidden/cell layout (2H = 32):       [ fwd | bwd ]
# Row layout inside a tile:           row = t * BT + b_local   (time-major)
# ----------------------------------------------------------------------------
def make_fused_kernel(num_layers, L, H, n_pad, BT):
    H2 = 2 * H

    def kernel(*refs):
        x_ref = refs[0]                                           # (1, L*BT, C_in)
        layer_refs = refs[1:1 + 4 * num_layers]
        (wu_ref, bu_ref, wl_ref, bl_ref,
         wf1_ref, wf2_ref, bf_ref) = refs[1 + 4 * num_layers:8 + 4 * num_layers]
        out_ref = refs[8 + 4 * num_layers]                        # (1, L*BT, n_pad)
        hist, hcat, xgf, xgb = refs[9 + 4 * num_layers:]          # VMEM scratch

        x2d = x_ref[0]                                            # (L*BT, C_in)

        def in_proj(inp, w):
            # K == 1 -> VPU broadcast multiply instead of a K=1 MXU pass.
            if inp.shape[1] == 1:
                return inp * w
            return jnp.dot(inp, w, preferred_element_type=jnp.float32)

        for l in range(num_layers):
            wih_fc_ref, wih_bc_ref, b_ref, whh_ref = layer_refs[4 * l:4 * (l + 1)]

            # ---- input projection hoisted out of the time loop (bias folded) ----
            if l == 0:
                xgf[...] = in_proj(x2d, wih_fc_ref[...]) + b_ref[...]
                xgb[...] = in_proj(x2d, wih_bc_ref[...])
            else:
                hprev = hcat[...]                                 # (L*BT, 2H) time-ordered
                xgf[...] = (jnp.dot(hprev, wih_fc_ref[...],
                                    preferred_element_type=jnp.float32) + b_ref[...])
                xgb[...] = jnp.dot(hprev, wih_bc_ref[...],
                                   preferred_element_type=jnp.float32)

            whh = whh_ref[...]                                    # (2H, 8H) bf16, block-diag

            def step(s, carry, whh=whh):
                h, c = carry                                      # (BT, 2H) f32 each
                i_f = pl.multiple_of(s * BT, BT)                  # fwd time s
                i_b = pl.multiple_of((L - 1 - s) * BT, BT)        # bwd time L-1-s
                gates = (xgf[pl.ds(i_f, BT), :]
                         + xgb[pl.ds(i_b, BT), :]
                         + jnp.dot(h.astype(jnp.bfloat16), whh,
                                   preferred_element_type=jnp.float32))   # (BT, 8H)
                sig = jax.nn.sigmoid(gates)                       # 1 full-width EUP
                tnh = jnp.tanh(gates)                             # 1 full-width EUP
                i_g = sig[:, 0:H2]
                f_g = sig[:, H2:2 * H2]
                g_g = tnh[:, 2 * H2:3 * H2]
                o_g = sig[:, 3 * H2:4 * H2]
                c = f_g * c + i_g * g_g
                h = o_g * jnp.tanh(c)
                hist[pl.ds(i_f, BT), :] = h                       # single merged store
                return (h, c)

            init = (jnp.zeros((BT, H2), jnp.float32),
                    jnp.zeros((BT, H2), jnp.float32))
            jax.lax.fori_loop(0, L, step, init, unroll=True)

            # hist is step-ordered for the bwd half; build time-ordered hcat
            # (off the serial critical path, static slices only).
            hcat[:, 0:H] = hist[:, 0:H]
            for t in range(L):
                hcat[t * BT:(t + 1) * BT, H:H2] = hist[(L - 1 - t) * BT:(L - t) * BT, H:H2]

        # ---- fused head: BN-folded branch 1x1 convs -> LeakyReLU(0.2) -> final 1x1 conv ----
        # TODO(synk): UResIncNet definition was not provided with the module; its branch
        # is approximated here by a (BN-folded) 1x1 Conv1d(in_chans -> nclass).
        z1 = in_proj(x2d, wu_ref[...]) + bu_ref[...]              # (L*BT, n_pad) lane-dense
        z2 = (jnp.dot(hcat[...], wl_ref[...],
                      preferred_element_type=jnp.float32) + bl_ref[...])
        a1 = jnp.where(z1 >= 0, z1, 0.2 * z1)
        a2 = jnp.where(z2 >= 0, z2, 0.2 * z2)
        out = (jnp.dot(a1, wf1_ref[...], preferred_element_type=jnp.float32)
               + jnp.dot(a2, wf2_ref[...], preferred_element_type=jnp.float32)
               + bf_ref[...])                                     # (L*BT, n_pad)
        out_ref[0] = out

    return kernel


# ----------------------------------------------------------------------------
# Raw (PyTorch-layout) parameters.  Deterministic init approximating defaults.
# ----------------------------------------------------------------------------
def init_raw_params(key, in_chans, nclass, lstm_features, lstm_layers):
    H = lstm_features // 2                                        # bidirectional
    keys = iter(jax.random.split(key, 64))
    bound = 1.0 / math.sqrt(H)

    def uni(shape):
        return jax.random.uniform(next(keys), shape, jnp.float32, -bound, bound)

    def nrm(shape, std):
        return std * jax.random.normal(next(keys), shape, jnp.float32)

    layers = []
    input_size = in_chans
    for _ in range(lstm_layers):
        layer = {}
        for d in ("fwd", "bwd"):
            layer[d] = {"wih": uni((4 * H, input_size)),          # PyTorch (4H, I), [i,f,g,o]
                        "whh": uni((4 * H, H)),
                        "b_ih": uni((4 * H,)),
                        "b_hh": uni((4 * H,))}
        layers.append(layer)
        input_size = 2 * H

    head = {
        # UResIncNet branch placeholder: 1x1 Conv1d(in_chans -> nclass) (see TODO above).
        "wu": nrm((in_chans, nclass), math.sqrt(2.0 / in_chans)),
        "bu": jnp.zeros((nclass,), jnp.float32),
        # RNN.logits: Conv1d(lstm_features -> nclass, k=1)
        "wl": nrm((2 * H, nclass), math.sqrt(2.0 / (2 * H))),
        "bl": jnp.zeros((nclass,), jnp.float32),
        # BatchNorm1d(2*nclass), fresh module, eval mode
        "gamma": jnp.ones((2 * nclass,), jnp.float32),
        "beta": jnp.zeros((2 * nclass,), jnp.float32),
        "mean": jnp.zeros((2 * nclass,), jnp.float32),
        "var": jnp.ones((2 * nclass,), jnp.float32),
        # final Conv1d(2*nclass -> nclass, k=1)
        "wf": nrm((2 * nclass, nclass), math.sqrt(2.0 / (2 * nclass))),
        "bf": jnp.zeros((nclass,), jnp.float32),
    }
    return {"lstm": layers, "head": head}


# ----------------------------------------------------------------------------
# Host-side packing: fuse fwd/bwd weights into gate-grouped 128-wide layout,
# fold biases, cast W_hh to bf16, fold eval-mode BN into the branch convs,
# zero-pad every head weight/bias to 128 output lanes.
# ----------------------------------------------------------------------------
def prepare_kernel_params(raw, H, nclass, n_pad=128):
    G = 8 * H
    layers_packed = []
    for layer in raw["lstm"]:
        pf, pb = layer["fwd"], layer["bwd"]
        I = pf["wih"].shape[1]
        wih_fc = jnp.zeros((I, G), jnp.float32)    # fwd input->gate cols (bwd cols zero)
        wih_bc = jnp.zeros((I, G), jnp.float32)    # bwd input->gate cols (fwd cols zero)
        whh = jnp.zeros((2 * H, G), jnp.float32)   # block-diagonal hidden->gate
        bias = jnp.zeros((1, G), jnp.float32)
        for gi in range(4):                        # gate order i, f, g, o
            lo = gi * 2 * H
            hi = lo + H
            rows = slice(gi * H, (gi + 1) * H)
            wih_fc = wih_fc.at[:, lo:hi].set(pf["wih"][rows, :].T)
            whh = whh.at[0:H, lo:hi].set(pf["whh"][rows, :].T)
            bias = bias.at[0, lo:hi].set(pf["b_ih"][rows] + pf["b_hh"][rows])
            wih_bc = wih_bc.at[:, hi:hi + H].set(pb["wih"][rows, :].T)
            whh = whh.at[H:2 * H, hi:hi + H].set(pb["whh"][rows, :].T)
            bias = bias.at[0, hi:hi + H].set(pb["b_ih"][rows] + pb["b_hh"][rows])
        layers_packed += [wih_fc, wih_bc, bias, whh.astype(jnp.bfloat16)]

    hd = raw["head"]
    eps = 1e-5
    scale = hd["gamma"] / jnp.sqrt(hd["var"] + eps)               # (2n,)
    shift = hd["beta"] - hd["mean"] * scale
    s1, s2 = scale[:nclass], scale[nclass:]
    t1, t2 = shift[:nclass], shift[nclass:]
    C_in = hd["wu"].shape[0]
    wu = jnp.zeros((C_in, n_pad), jnp.float32).at[:, :nclass].set(hd["wu"] * s1[None, :])
    bu = jnp.zeros((1, n_pad), jnp.float32).at[0, :nclass].set(hd["bu"] * s1 + t1)
    wl = jnp.zeros((2 * H, n_pad), jnp.float32).at[:, :nclass].set(hd["wl"] * s2[None, :])
    bl = jnp.zeros((1, n_pad), jnp.float32).at[0, :nclass].set(hd["bl"] * s2 + t2)
    wf1 = jnp.zeros((n_pad, n_pad), jnp.float32).at[:nclass, :nclass].set(hd["wf"][:nclass, :])
    wf2 = jnp.zeros((n_pad, n_pad), jnp.float32).at[:nclass, :nclass].set(hd["wf"][nclass:, :])
    bf = jnp.zeros((1, n_pad), jnp.float32).at[0, :nclass].set(hd["bf"])
    head_packed = [wu, bu, wl, bl, wf1, wf2, bf]
    return layers_packed, head_packed


# ----------------------------------------------------------------------------
# Forward wrapper.  x: (B, in_chans, L) NCL -> (B, nclass, L)
# ----------------------------------------------------------------------------
def make_forward(lstm_layers, nclass, H, n_pad=128, BT=8):
    @jax.jit
    def forward(x_ncl, packed):
        layers_packed, head_packed = packed
        B, C_in, L = x_ncl.shape
        n_tiles = -(-B // BT)
        B_pad = n_tiles * BT
        N = L * BT

        x = x_ncl.astype(jnp.float32)
        if B_pad != B:
            x = jnp.pad(x, ((0, B_pad - B), (0, 0), (0, 0)))
        # time-major tile layout: row = t*BT + b_local
        xk = (x.reshape(n_tiles, BT, C_in, L)
               .transpose(0, 3, 1, 2)                            # (n_tiles, L, BT, C_in)
               .reshape(n_tiles, N, C_in))

        args = [xk] + list(layers_packed) + list(head_packed)
        kernel = make_fused_kernel(lstm_layers, L, H, n_pad, BT)

        def full_spec(a):
            nd = a.ndim
            return pl.BlockSpec(a.shape, lambda i, _n=nd: (0,) * _n)  # weights stay resident

        in_specs = [pl.BlockSpec((1, N, C_in), lambda i: (i, 0, 0))]
        in_specs += [full_spec(a) for a in args[1:]]

        out = pl.pallas_call(
            kernel,
            out_shape=jax.ShapeDtypeStruct((n_tiles, N, n_pad), jnp.float32),
            grid=(n_tiles,),
            in_specs=in_specs,
            out_specs=pl.BlockSpec((1, N, n_pad), lambda i: (i, 0, 0)),
            scratch_shapes=[pltpu.VMEM((N, 2 * H), jnp.float32),   # hist (step-ordered h)
                            pltpu.VMEM((N, 2 * H), jnp.float32),   # hcat (time-ordered h)
                            pltpu.VMEM((N, 8 * H), jnp.float32),   # fwd input-gate proj
                            pltpu.VMEM((N, 8 * H), jnp.float32)],  # bwd input-gate proj
            compiler_params=pltpu.CompilerParams(
                dimension_semantics=("parallel",),                 # v7x: shard tiles over 2 TCs
                vmem_limit_bytes=4 * 1024 * 1024),
        )(*args)

        # (n_tiles, L*BT, n_pad) -> (B, nclass, L)
        out = (out.reshape(n_tiles, L, BT, n_pad)
                  .transpose(0, 2, 3, 1)                           # (n_tiles, BT, n_pad, L)
                  .reshape(B_pad, n_pad, L))
        return out[:B, :nclass, :]

    return forward


if __name__ == "__main__":
    B, C_IN, L = 2, 1, 16
    NCLASS = 5
    LSTM_FEATURES = 32          # -> hidden size 16 per direction
    LSTM_LAYERS = 2
    H = LSTM_FEATURES // 2

    key = jax.random.PRNGKey(0)
    kx, kp = jax.random.split(key)
    x = jax.random.normal(kx, (B, C_IN, L), jnp.float32)
    raw = init_raw_params(kp, C_IN, NCLASS, LSTM_FEATURES, LSTM_LAYERS)
    packed = prepare_kernel_params(raw, H, NCLASS)

    forward = make_forward(LSTM_LAYERS, NCLASS, H)
    out = forward(x, packed)
    out = jax.block_until_ready(out)
    assert out.shape == (B, NCLASS, L), out.shape
    assert jnp.all(jnp.isfinite(out))
    print("KERNEL_OK")
</pallas_src>

<mosaic_0001>
module attributes {stable_mosaic.version = 11 : i64} {
  func.func @kernel(%arg0: i32, %arg1: memref<1x128x1xf32, #tpu.memory_space<vmem>>, %arg2: memref<1x128xf32, #tpu.memory_space<vmem>>, %arg3: memref<1x128xf32, #tpu.memory_space<vmem>>, %arg4: memref<1x128xf32, #tpu.memory_space<vmem>>, %arg5: memref<32x128xbf16, #tpu.memory_space<vmem>>, %arg6: memref<32x128xf32, #tpu.memory_space<vmem>>, %arg7: memref<32x128xf32, #tpu.memory_space<vmem>>, %arg8: memref<1x128xf32, #tpu.memory_space<vmem>>, %arg9: memref<32x128xbf16, #tpu.memory_space<vmem>>, %arg10: memref<1x128xf32, #tpu.memory_space<vmem>>, %arg11: memref<1x128xf32, #tpu.memory_space<vmem>>, %arg12: memref<32x128xf32, #tpu.memory_space<vmem>>, %arg13: memref<1x128xf32, #tpu.memory_space<vmem>>, %arg14: memref<128x128xf32, #tpu.memory_space<vmem>>, %arg15: memref<128x128xf32, #tpu.memory_space<vmem>>, %arg16: memref<1x128xf32, #tpu.memory_space<vmem>>, %arg17: memref<1x128x128xf32, #tpu.memory_space<vmem>>, %arg18: memref<128x32xf32, #tpu.memory_space<vmem>>, %arg19: memref<128x32xf32, #tpu.memory_space<vmem>>, %arg20: memref<128x128xf32, #tpu.memory_space<vmem>>, %arg21: memref<128x128xf32, #tpu.memory_space<vmem>>) attributes {dimension_semantics = [#tpu.dimension_semantics<parallel>], iteration_bounds = array<i64: 1>, scalar_prefetch = 0 : i64, scratch_operands = 4 : i64, tpu.core_type = #tpu.core_type<tc>, window_params = [{transform_indices = @transform_0, window_bounds = array<i64: 1, 128, 1>}, {pipeline_mode = #tpu.pipeline_mode<synchronous>, transform_indices = @transform_1, window_bounds = array<i64: 1, 128>}, {pipeline_mode = #tpu.pipeline_mode<synchronous>, transform_indices = @transform_2, window_bounds = array<i64: 1, 128>}, {pipeline_mode = #tpu.pipeline_mode<synchronous>, transform_indices = @transform_3, window_bounds = array<i64: 1, 128>}, {pipeline_mode = #tpu.pipeline_mode<synchronous>, transform_indices = @transform_4, window_bounds = array<i64: 32, 128>}, {pipeline_mode = #tpu.pipeline_mode<synchronous>, transform_indices = @transform_5, window_bounds = array<i64: 32, 128>}, {pipeline_mode = #tpu.pipeline_mode<synchronous>, transform_indices = @transform_6, window_bounds = array<i64: 32, 128>}, {pipeline_mode = #tpu.pipeline_mode<synchronous>, transform_indices = @transform_7, window_bounds = array<i64: 1, 128>}, {pipeline_mode = #tpu.pipeline_mode<synchronous>, transform_indices = @transform_8, window_bounds = array<i64: 32, 128>}, {pipeline_mode = #tpu.pipeline_mode<synchronous>, transform_indices = @transform_9, window_bounds = array<i64: 1, 128>}, {pipeline_mode = #tpu.pipeline_mode<synchronous>, transform_indices = @transform_10, window_bounds = array<i64: 1, 128>}, {pipeline_mode = #tpu.pipeline_mode<synchronous>, transform_indices = @transform_11, window_bounds = array<i64: 32, 128>}, {pipeline_mode = #tpu.pipeline_mode<synchronous>, transform_indices = @transform_12, window_bounds = array<i64: 1, 128>}, {pipeline_mode = #tpu.pipeline_mode<synchronous>, transform_indices = @transform_13, window_bounds = array<i64: 128, 128>}, {pipeline_mode = #tpu.pipeline_mode<synchronous>, transform_indices = @transform_14, window_bounds = array<i64: 128, 128>}, {pipeline_mode = #tpu.pipeline_mode<synchronous>, transform_indices = @transform_15, window_bounds = array<i64: 1, 128>}, {transform_indices = @transform_16, window_bounds = array<i64: 1, 128, 128>}]} {
    %c0 = arith.constant 0 : index
    %c0_0 = arith.constant 0 : index
    %c0_1 = arith.constant 0 : index
    %0 = vector.load %arg1[%c0, %c0_0, %c0_1] : memref<1x128x1xf32, #tpu.memory_space<vmem>>, vector<1x128x1xf32>
    %1 = vector.shape_cast %0 : vector<1x128x1xf32> to vector<128x1xf32>
    %c0_2 = arith.constant 0 : index
    %c0_3 = arith.constant 0 : index
    %2 = vector.load %arg2[%c0_2, %c0_3] : memref<1x128xf32, #tpu.memory_space<vmem>>, vector<1x128xf32>
    %3 = vector.broadcast %1 : vector<128x1xf32> to vector<128x128xf32>
    %4 = vector.broadcast %2 : vector<1x128xf32> to vector<128x128xf32>
    %5 = arith.mulf %3, %4 : vector<128x128xf32>
    %c0_4 = arith.constant 0 : index
    %c0_5 = arith.constant 0 : index
    %6 = vector.load %arg4[%c0_4, %c0_5] : memref<1x128xf32, #tpu.memory_space<vmem>>, vector<1x128xf32>
    %7 = vector.broadcast %6 : vector<1x128xf32> to vector<128x128xf32>
    %8 = arith.addf %5, %7 : vector<128x128xf32>
    %c0_6 = arith.constant 0 : index
    %c0_7 = arith.constant 0 : index
    %9 = vector.load %arg20[%c0_6, %c0_7] : memref<128x128xf32, #tpu.memory_space<vmem>>, vector<128x128xf32>
    tpu.vector_store %arg20[%c0_6, %c0_7], %8 {strides = array<i32>} : memref<128x128xf32, #tpu.memory_space<vmem>>, vector<128x128xf32>,
    %c0_8 = arith.constant 0 : index
    %c0_9 = arith.constant 0 : index
    %10 = vector.load %arg3[%c0_8, %c0_9] : memref<1x128xf32, #tpu.memory_space<vmem>>, vector<1x128xf32>
    %11 = vector.broadcast %1 : vector<128x1xf32> to vector<128x128xf32>
    %12 = vector.broadcast %10 : vector<1x128xf32> to vector<128x128xf32>
    %13 = arith.mulf %11, %12 : vector<128x128xf32>
    %c0_10 = arith.constant 0 : index
    %c0_11 = arith.constant 0 : index
    %14 = vector.load %arg21[%c0_10, %c0_11] : memref<128x128xf32, #tpu.memory_space<vmem>>, vector<128x128xf32>
    tpu.vector_store %arg21[%c0_10, %c0_11], %13 {strides = array<i32>} : memref<128x128xf32, #tpu.memory_space<vmem>>, vector<128x128xf32>,
    %c0_12 = arith.constant 0 : index
    %c0_13 = arith.constant 0 : index
    %15 = vector.load %arg5[%c0_12, %c0_13] : memref<32x128xbf16, #tpu.memory_space<vmem>>, vector<32x128xbf16>
    %cst = arith.constant 0.000000e+00 : f32
    %16 = vector.broadcast %cst : f32 to vector<8x32xf32>
    %cst_14 = arith.constant 0.000000e+00 : f32
    %17 = vector.broadcast %cst_14 : f32 to vector<8x32xf32>
    %c0_i32 = arith.constant 0 : i32
    %c8_i32 = arith.constant 8 : i32
    %18 = arith.muli %c0_i32, %c8_i32 : i32
    %19 = tpu.assume_multiple %18, 8 : i32
    %c15_i32 = arith.constant 15 : i32
    %20 = arith.subi %c15_i32, %c0_i32 : i32
    %c8_i32_15 = arith.constant 8 : i32
    %21 = arith.muli %20, %c8_i32_15 : i32
    %22 = tpu.assume_multiple %21, 8 : i32
    %23 = arith.index_cast %19 : i32 to index
    %c0_16 = arith.constant 0 : index
    %24 = vector.load %arg20[%23, %c0_16] : memref<128x128xf32, #tpu.memory_space<vmem>>, vector<8x128xf32>
    %25 = arith.index_cast %22 : i32 to index
    %c0_17 = arith.constant 0 : index
    %26 = vector.load %arg21[%25, %c0_17] : memref<128x128xf32, #tpu.memory_space<vmem>>, vector<8x128xf32>
    %27 = arith.addf %24, %26 : vector<8x128xf32>
    %28 = arith.truncf %16 : vector<8x32xf32> to vector<8x32xbf16>
    %cst_18 = arith.constant dense<0.000000e+00> : vector<8x128xf32>
    %29 = tpu.matmul %28, %15, %cst_18 {dimension_numbers = #tpu.dot_dimension_numbers<[1], [0], [0], [1], [0, 0, 1, 1], [], []>} : vector<8x32xbf16>, vector<32x128xbf16>, vector<8x128xf32> -> vector<8x128xf32>
    %30 = arith.addf %27, %29 : vector<8x128xf32>
    %31 = arith.negf %30 : vector<8x128xf32>
    %32 = math.exp %31 : vector<8x128xf32>
    %cst_19 = arith.constant 1.000000e+00 : f32
    %33 = vector.broadcast %cst_19 : f32 to vector<8x128xf32>
    %34 = arith.addf %33, %32 : vector<8x128xf32>
    %35 = arith.divf %33, %34 : vector<8x128xf32>
    %36 = math.tanh %30 : vector<8x128xf32>
    %37 = vector.extract_strided_slice %35 {offsets = [0, 0], sizes = [8, 32], strides = [1, 1]} : vector<8x128xf32> to vector<8x32xf32>
    %38 = vector.extract_strided_slice %35 {offsets = [0, 32], sizes = [8, 32], strides = [1, 1]} : vector<8x128xf32> to vector<8x32xf32>
    %39 = vector.extract_strided_slice %36 {offsets = [0, 64], sizes = [8, 32], strides = [1, 1]} : vector<8x128xf32> to vector<8x32xf32>
    %40 = vector.extract_strided_slice %35 {offsets = [0, 96], sizes = [8, 32], strides = [1, 1]} : vector<8x128xf32> to vector<8x32xf32>
    %41 = arith.mulf %38, %17 : vector<8x32xf32>
    %42 = arith.mulf %37, %39 : vector<8x32xf32>
    %43 = arith.addf %41, %42 : vector<8x32xf32>
    %44 = math.tanh %43 : vector<8x32xf32>
    %45 = arith.mulf %40, %44 : vector<8x32xf32>
    %46 = arith.index_cast %19 : i32 to index
    %c0_20 = arith.constant 0 : index
    %47 = vector.load %arg18[%46, %c0_20] : memref<128x32xf32, #tpu.memory_space<vmem>>, vector<8x32xf32>
    tpu.vector_store %arg18[%46, %c0_20], %45 {strides = array<i32>} : memref<128x32xf32, #tpu.memory_space<vmem>>, vector<8x32xf32>,
    %c1_i32 = arith.constant 1 : i32
    %c8_i32_21 = arith.constant 8 : i32
    %48 = arith.muli %c1_i32, %c8_i32_21 : i32
    %49 = tpu.assume_multiple %48, 8 : i32
    %c15_i32_22 = arith.constant 15 : i32
    %50 = arith.subi %c15_i32_22, %c1_i32 : i32
    %c8_i32_23 = arith.constant 8 : i32
    %51 = arith.muli %50, %c8_i32_23 : i32
    %52 = tpu.assume_multiple %51, 8 : i32
    %53 = arith.index_cast %49 : i32 to index
    %c0_24 = arith.constant 0 : index
    %54 = vector.load %arg20[%53, %c0_24] : memref<128x128xf32, #tpu.memory_space<vmem>>, vector<8x128xf32>
    %55 = arith.index_cast %52 : i32 to index
    %c0_25 = arith.constant 0 : index
    %56 = vector.load %arg21[%55, %c0_25] : memref<128x128xf32, #tpu.memory_space<vmem>>, vector<8x128xf32>
    %57 = arith.addf %54, %56 : vector<8x128xf32>
    %58 = arith.truncf %45 : vector<8x32xf32> to vector<8x32xbf16>
    %cst_26 = arith.constant dense<0.000000e+00> : vector<8x128xf32>
    %59 = tpu.matmul %58, %15, %cst_26 {dimension_numbers = #tpu.dot_dimension_numbers<[1], [0], [0], [1], [0, 0, 1, 1], [], []>} : vector<8x32xbf16>, vector<32x128xbf16>, vector<8x128xf32> -> vector<8x128xf32>
    %60 = arith.addf %57, %59 : vector<8x128xf32>
    %61 = arith.negf %60 : vector<8x128xf32>
    %62 = math.exp %61 : vector<8x128xf32>
    %cst_27 = arith.constant 1.000000e+00 : f32
    %63 = vector.broadcast %cst_27 : f32 to vector<8x128xf32>
    %64 = arith.addf %63, %62 : vector<8x128xf32>
    %65 = arith.divf %63, %64 : vector<8x128xf32>
    %66 = math.tanh %60 : vector<8x128xf32>
    %67 = vector.extract_strided_slice %65 {offsets = [0, 0], sizes = [8, 32], strides = [1, 1]} : vector<8x128xf32> to vector<8x32xf32>
    %68 = vector.extract_strided_slice %65 {offsets = [0, 32], sizes = [8, 32], strides = [1, 1]} : vector<8x128xf32> to vector<8x32xf32>
    %69 = vector.extract_strided_slice %66 {offsets = [0, 64], sizes = [8, 32], strides = [1, 1]} : vector<8x128xf32> to vector<8x32xf32>
    %70 = vector.extract_strided_slice %65 {offsets = [0, 96], sizes = [8, 32], strides = [1, 1]} : vector<8x128xf32> to vector<8x32xf32>
    %71 = arith.mulf %68, %43 : vector<8x32xf32>
    %72 = arith.mulf %67, %69 : vector<8x32xf32>
    %73 = arith.addf %71, %72 : vector<8x32xf32>
    %74 = math.tanh %73 : vector<8x32xf32>
    %75 = arith.mulf %70, %74 : vector<8x32xf32>
    %76 = arith.index_cast %49 : i32 to index
    %c0_28 = arith.constant 0 : index
    %77 = vector.load %arg18[%76, %c0_28] : memref<128x32xf32, #tpu.memory_space<vmem>>, vector<8x32xf32>
    tpu.vector_store %arg18[%76, %c0_28], %75 {strides = array<i32>} : memref<128x32xf32, #tpu.memory_space<vmem>>, vector<8x32xf32>,
    %c2_i32 = arith.constant 2 : i32
    %c8_i32_29 = arith.constant 8 : i32
    %78 = arith.muli %c2_i32, %c8_i32_29 : i32
    %79 = tpu.assume_multiple %78, 8 : i32
    %c15_i32_30 = arith.constant 15 : i32
    %80 = arith.subi %c15_i32_30, %c2_i32 : i32
    %c8_i32_31 = arith.constant 8 : i32
    %81 = arith.muli %80, %c8_i32_31 : i32
    %82 = tpu.assume_multiple %81, 8 : i32
    %83 = arith.index_cast %79 : i32 to index
    %c0_32 = arith.constant 0 : index
    %84 = vector.load %arg20[%83, %c0_32] : memref<128x128xf32, #tpu.memory_space<vmem>>, vector<8x128xf32>
    %85 = arith.index_cast %82 : i32 to index
    %c0_33 = arith.constant 0 : index
    %86 = vector.load %arg21[%85, %c0_33] : memref<128x128xf32, #tpu.memory_space<vmem>>, vector<8x128xf32>
    %87 = arith.addf %84, %86 : vector<8x128xf32>
    %88 = arith.truncf %75 : vector<8x32xf32> to vector<8x32xbf16>
    %cst_34 = arith.constant dense<0.000000e+00> : vector<8x128xf32>
    %89 = tpu.matmul %88, %15, %cst_34 {dimension_numbers = #tpu.dot_dimension_numbers<[1], [0], [0], [1], [0, 0, 1, 1], [], []>} : vector<8x32xbf16>, vector<32x128xbf16>, vector<8x128xf32> -> vector<8x128xf32>
    %90 = arith.addf %87, %89 : vector<8x128xf32>
    %91 = arith.negf %90 : vector<8x128xf32>
    %92 = math.exp %91 : vector<8x128xf32>
    %cst_35 = arith.constant 1.000000e+00 : f32
    %93 = vector.broadcast %cst_35 : f32 to vector<8x128xf32>
    %94 = arith.addf %93, %92 : vector<8x128xf32>
    %95 = arith.divf %93, %94 : vector<8x128xf32>
    %96 = math.tanh %90 : vector<8x128xf32>
    %97 = vector.extract_strided_slice %95 {offsets = [0, 0], sizes = [8, 32], strides = [1, 1]} : vector<8x128xf32> to vector<8x32xf32>
    %98 = vector.extract_strided_slice %95 {offsets = [0, 32], sizes = [8, 32], strides = [1, 1]} : vector<8x128xf32> to vector<8x32xf32>
    %99 = vector.extract_strided_slice %96 {offsets = [0, 64], sizes = [8, 32], strides = [1, 1]} : vector<8x128xf32> to vector<8x32xf32>
    %100 = vector.extract_strided_slice %95 {offsets = [0, 96], sizes = [8, 32], strides = [1, 1]} : vector<8x128xf32> to vector<8x32xf32>
    %101 = arith.mulf %98, %73 : vector<8x32xf32>
    %102 = arith.mulf %97, %99 : vector<8x32xf32>
    %103 = arith.addf %101, %102 : vector<8x32xf32>
    %104 = math.tanh %103 : vector<8x32xf32>
    %105 = arith.mulf %100, %104 : vector<8x32xf32>
    %106 = arith.index_cast %79 : i32 to index
    %c0_36 = arith.constant 0 : index
    %107 = vector.load %arg18[%106, %c0_36] : memref<128x32xf32, #tpu.memory_space<vmem>>, vector<8x32xf32>
    tpu.vector_store %arg18[%106, %c0_36], %105 {strides = array<i32>} : memref<128x32xf32, #tpu.memory_space<vmem>>, vector<8x32xf32>,
    %c3_i32 = arith.constant 3 : i32
    %c8_i32_37 = arith.constant 8 : i32
    %108 = arith.muli %c3_i32, %c8_i32_37 : i32
    %109 = tpu.assume_multiple %108, 8 : i32
    %c15_i32_38 = arith.constant 15 : i32
    %110 = arith.subi %c15_i32_38, %c3_i32 : i32
    %c8_i32_39 = arith.constant 8 : i32
    %111 = arith.muli %110, %c8_i32_39 : i32
    %112 = tpu.assume_multiple %111, 8 : i32
    %113 = arith.index_cast %109 : i32 to index
    %c0_40 = arith.constant 0 : index
    %114 = vector.load %arg20[%113, %c0_40] : memref<128x128xf32, #tpu.memory_space<vmem>>, vector<8x128xf32>
    %115 = arith.index_cast %112 : i32 to index
    %c0_41 = arith.constant 0 : index
    %116 = vector.load %arg21[%115, %c0_41] : memref<128x128xf32, #tpu.memory_space<vmem>>, vector<8x128xf32>
    %117 = arith.addf %114, %116 : vector<8x128xf32>
    %118 = arith.truncf %105 : vector<8x32xf32> to vector<8x32xbf16>
    %cst_42 = arith.constant dense<0.000000e+00> : vector<8x128xf32>
    %119 = tpu.matmul %118, %15, %cst_42 {dimension_numbers = #tpu.dot_dimension_numbers<[1], [0], [0], [1], [0, 0, 1, 1], [], []>} : vector<8x32xbf16>, vector<32x128xbf16>, vector<8x128xf32> -> vector<8x128xf32>
    %120 = arith.addf %117, %119 : vector<8x128xf32>
    %121 = arith.negf %120 : vector<8x128xf32>
    %122 = math.exp %121 : vector<8x128xf32>
    %cst_43 = arith.constant 1.000000e+00 : f32
    %123 = vector.broadcast %cst_43 : f32 to vector<8x128xf32>
    %124 = arith.addf %123, %122 : vector<8x128xf32>
    %125 = arith.divf %123, %124 : vector<8x128xf32>
    %126 = math.tanh %120 : vector<8x128xf32>
    %127 = vector.extract_strided_slice %125 {offsets = [0, 0], sizes = [8, 32], strides = [1, 1]} : vector<8x128xf32> to vector<8x32xf32>
    %128 = vector.extract_strided_slice %125 {offsets = [0, 32], sizes = [8, 32], strides = [1, 1]} : vector<8x128xf32> to vector<8x32xf32>
    %129 = vector.extract_strided_slice %126 {offsets = [0, 64], sizes = [8, 32], strides = [1, 1]} : vector<8x128xf32> to vector<8x32xf32>
    %130 = vector.extract_strided_slice %125 {offsets = [0, 96], sizes = [8, 32], strides = [1, 1]} : vector<8x128xf32> to vector<8x32xf32>
    %131 = arith.mulf %128, %103 : vector<8x32xf32>
    %132 = arith.mulf %127, %129 : vector<8x32xf32>
    %133 = arith.addf %131, %132 : vector<8x32xf32>
    %134 = math.tanh %133 : vector<8x32xf32>
    %135 = arith.mulf %130, %134 : vector<8x32xf32>
    %136 = arith.index_cast %109 : i32 to index
    %c0_44 = arith.constant 0 : index
    %137 = vector.load %arg18[%136, %c0_44] : memref<128x32xf32, #tpu.memory_space<vmem>>, vector<8x32xf32>
    tpu.vector_store %arg18[%136, %c0_44], %135 {strides = array<i32>} : memref<128x32xf32, #tpu.memory_space<vmem>>, vector<8x32xf32>,
    %c4_i32 = arith.constant 4 : i32
    %c8_i32_45 = arith.constant 8 : i32
    %138 = arith.muli %c4_i32, %c8_i32_45 : i32
    %139 = tpu.assume_multiple %138, 8 : i32
    %c15_i32_46 = arith.constant 15 : i32
    %140 = arith.subi %c15_i32_46, %c4_i32 : i32
    %c8_i32_47 = arith.constant 8 : i32
    %141 = arith.muli %140, %c8_i32_47 : i32
    %142 = tpu.assume_multiple %141, 8 : i32
    %143 = arith.index_cast %139 : i32 to index
    %c0_48 = arith.constant 0 : index
    %144 = vector.load %arg20[%143, %c0_48] : memref<128x128xf32, #tpu.memory_space<vmem>>, vector<8x128xf32>
    %145 = arith.index_cast %142 : i32 to index
    %c0_49 = arith.constant 0 : index
    %146 = vector.load %arg21[%145, %c0_49] : memref<128x128xf32, #tpu.memory_space<vmem>>, vector<8x128xf32>
    %147 = arith.addf %144, %146 : vector<8x128xf32>
    %148 = arith.truncf %135 : vector<8x32xf32> to vector<8x32xbf16>
    %cst_50 = arith.constant dense<0.000000e+00> : vector<8x128xf32>
    %149 = tpu.matmul %148, %15, %cst_50 {dimension_numbers = #tpu.dot_dimension_numbers<[1], [0], [0], [1], [0, 0, 1, 1], [], []>} : vector<8x32xbf16>, vector<32x128xbf16>, vector<8x128xf32> -> vector<8x128xf32>
    %150 = arith.addf %147, %149 : vector<8x128xf32>
    %151 = arith.negf %150 : vector<8x128xf32>
    %152 = math.exp %151 : vector<8x128xf32>
    %cst_51 = arith.constant 1.000000e+00 : f32
    %153 = vector.broadcast %cst_51 : f32 to vector<8x128xf32>
    %154 = arith.addf %153, %152 : vector<8x128xf32>
    %155 = arith.divf %153, %154 : vector<8x128xf32>
    %156 = math.tanh %150 : vector<8x128xf32>
    %157 = vector.extract_strided_slice %155 {offsets = [0, 0], sizes = [8, 32], strides = [1, 1]} : vector<8x128xf32> to vector<8x32xf32>
    %158 = vector.extract_strided_slice %155 {offsets = [0, 32], sizes = [8, 32], strides = [1, 1]} : vector<8x128xf32> to vector<8x32xf32>
    %159 = vector.extract_strided_slice %156 {offsets = [0, 64], sizes = [8, 32], strides = [1, 1]} : vector<8x128xf32> to vector<8x32xf32>
    %160 = vector.extract_strided_slice %155 {offsets = [0, 96], sizes = [8, 32], strides = [1, 1]} : vector<8x128xf32> to vector<8x32xf32>
    %161 = arith.mulf %158, %133 : vector<8x32xf32>
    %162 = arith.mulf %157, %159 : vector<8x32xf32>
    %163 = arith.addf %161, %162 : vector<8x32xf32>
    %164 = math.tanh %163 : vector<8x32xf32>
    %165 = arith.mulf %160, %164 : vector<8x32xf32>
    %166 = arith.index_cast %139 : i32 to index
    %c0_52 = arith.constant 0 : index
    %167 = vector.load %arg18[%166, %c0_52] : memref<128x32xf32, #tpu.memory_space<vmem>>, vector<8x32xf32>
    tpu.vector_store %arg18[%166, %c0_52], %165 {strides = array<i32>} : memref<128x32xf32, #tpu.memory_space<vmem>>, vector<8x32xf32>,
    %c5_i32 = arith.constant 5 : i32
    %c8_i32_53 = arith.constant 8 : i32
    %168 = arith.muli %c5_i32, %c8_i32_53 : i32
    %169 = tpu.assume_multiple %168, 8 : i32
    %c15_i32_54 = arith.constant 15 : i32
    %170 = arith.subi %c15_i32_54, %c5_i32 : i32
    %c8_i32_55 = arith.constant 8 : i32
    %171 = arith.muli %170, %c8_i32_55 : i32
    %172 = tpu.assume_multiple %171, 8 : i32
    %173 = arith.index_cast %169 : i32 to index
    %c0_56 = arith.constant 0 : index
    %174 = vector.load %arg20[%173, %c0_56] : memref<128x128xf32, #tpu.memory_space<vmem>>, vector<8x128xf32>
    %175 = arith.index_cast %172 : i32 to index
    %c0_57 = arith.constant 0 : index
    %176 = vector.load %arg21[%175, %c0_57] : memref<128x128xf32, #tpu.memory_space<vmem>>, vector<8x128xf32>
    %177 = arith.addf %174, %176 : vector<8x128xf32>
    %178 = arith.truncf %165 : vector<8x32xf32> to vector<8x32xbf16>
    %cst_58 = arith.constant dense<0.000000e+00> : vector<8x128xf32>
    %179 = tpu.matmul %178, %15, %cst_58 {dimension_numbers = #tpu.dot_dimension_numbers<[1], [0], [0], [1], [0, 0, 1, 1], [], []>} : vector<8x32xbf16>, vector<32x128xbf16>, vector<8x128xf32> -> vector<8x128xf32>
    %180 = arith.addf %177, %179 : vector<8x128xf32>
    %181 = arith.negf %180 : vector<8x128xf32>
    %182 = math.exp %181 : vector<8x128xf32>
    %cst_59 = arith.constant 1.000000e+00 : f32
    %183 = vector.broadcast %cst_59 : f32 to vector<8x128xf32>
    %184 = arith.addf %183, %182 : vector<8x128xf32>
    %185 = arith.divf %183, %184 : vector<8x128xf32>
    %186 = math.tanh %180 : vector<8x128xf32>
    %187 = vector.extract_strided_slice %185 {offsets = [0, 0], sizes = [8, 32], strides = [1, 1]} : vector<8x128xf32> to vector<8x32xf32>
    %188 = vector.extract_strided_slice %185 {offsets = [0, 32], sizes = [8, 32], strides = [1, 1]} : vector<8x128xf32> to vector<8x32xf32>
    %189 = vector.extract_strided_slice %186 {offsets = [0, 64], sizes = [8, 32], strides = [1, 1]} : vector<8x128xf32> to vector<8x32xf32>
    %190 = vector.extract_strided_slice %185 {offsets = [0, 96], sizes = [8, 32], strides = [1, 1]} : vector<8x128xf32> to vector<8x32xf32>
    %191 = arith.mulf %188, %163 : vector<8x32xf32>
    %192 = arith.mulf %187, %189 : vector<8x32xf32>
    %193 = arith.addf %191, %192 : vector<8x32xf32>
    %194 = math.tanh %193 : vector<8x32xf32>
    %195 = arith.mulf %190, %194 : vector<8x32xf32>
    %196 = arith.index_cast %169 : i32 to index
    %c0_60 = arith.constant 0 : index
    %197 = vector.load %arg18[%196, %c0_60] : memref<128x32xf32, #tpu.memory_space<vmem>>, vector<8x32xf32>
    tpu.vector_store %arg18[%196, %c0_60], %195 {strides = array<i32>} : memref<128x32xf32, #tpu.memory_space<vmem>>, vector<8x32xf32>,
    %c6_i32 = arith.constant 6 : i32
    %c8_i32_61 = arith.constant 8 : i32
    %198 = arith.muli %c6_i32, %c8_i32_61 : i32
    %199 = tpu.assume_multiple %198, 8 : i32
    %c15_i32_62 = arith.constant 15 : i32
    %200 = arith.subi %c15_i32_62, %c6_i32 : i32
    %c8_i32_63 = arith.constant 8 : i32
    %201 = arith.muli %200, %c8_i32_63 : i32
    %202 = tpu.assume_multiple %201, 8 : i32
    %203 = arith.index_cast %199 : i32 to index
    %c0_64 = arith.constant 0 : index
    %204 = vector.load %arg20[%203, %c0_64] : memref<128x128xf32, #tpu.memory_space<vmem>>, vector<8x128xf32>
    %205 = arith.index_cast %202 : i32 to index
    %c0_65 = arith.constant 0 : index
    %206 = vector.load %arg21[%205, %c0_65] : memref<128x128xf32, #tpu.memory_space<vmem>>, vector<8x128xf32>
    %207 = arith.addf %204, %206 : vector<8x128xf32>
    %208 = arith.truncf %195 : vector<8x32xf32> to vector<8x32xbf16>
    %cst_66 = arith.constant dense<0.000000e+00> : vector<8x128xf32>
    %209 = tpu.matmul %208, %15, %cst_66 {dimension_numbers = #tpu.dot_dimension_numbers<[1], [0], [0], [1], [0, 0, 1, 1], [], []>} : vector<8x32xbf16>, vector<32x128xbf16>, vector<8x128xf32> -> vector<8x128xf32>
    %210 = arith.addf %207, %209 : vector<8x128xf32>
    %211 = arith.negf %210 : vector<8x128xf32>
    %212 = math.exp %211 : vector<8x128xf32>
    %cst_67 = arith.constant 1.000000e+00 : f32
    %213 = vector.broadcast %cst_67 : f32 to vector<8x128xf32>
    %214 = arith.addf %213, %212 : vector<8x128xf32>
    %215 = arith.divf %213, %214 : vector<8x128xf32>
    %216 = math.tanh %210 : vector<8x128xf32>
    %217 = vector.extract_strided_slice %215 {offsets = [0, 0], sizes = [8, 32], strides = [1, 1]} : vector<8x128xf32> to vector<8x32xf32>
    %218 = vector.extract_strided_slice %215 {offsets = [0, 32], sizes = [8, 32], strides = [1, 1]} : vector<8x128xf32> to vector<8x32xf32>
    %219 = vector.extract_strided_slice %216 {offsets = [0, 64], sizes = [8, 32], strides = [1, 1]} : vector<8x128xf32> to vector<8x32xf32>
    %220 = vector.extract_strided_slice %215 {offsets = [0, 96], sizes = [8, 32], strides = [1, 1]} : vector<8x128xf32> to vector<8x32xf32>
    %221 = arith.mulf %218, %193 : vector<8x32xf32>
    %222 = arith.mulf %217, %219 : vector<8x32xf32>
    %223 = arith.addf %221, %222 : vector<8x32xf32>
    %224 = math.tanh %223 : vector<8x32xf32>
    %225 = arith.mulf %220, %224 : vector<8x32xf32>
    %226 = arith.index_cast %199 : i32 to index
    %c0_68 = arith.constant 0 : index
    %227 = vector.load %arg18[%226, %c0_68] : memref<128x32xf32, #tpu.memory_space<vmem>>, vector<8x32xf32>
    tpu.vector_store %arg18[%226, %c0_68], %225 {strides = array<i32>} : memref<128x32xf32, #tpu.memory_space<vmem>>, vector<8x32xf32>,
    %c7_i32 = arith.constant 7 : i32
    %c8_i32_69 = arith.constant 8 : i32
    %228 = arith.muli %c7_i32, %c8_i32_69 : i32
    %229 = tpu.assume_multiple %228, 8 : i32
    %c15_i32_70 = arith.constant 15 : i32
    %230 = arith.subi %c15_i32_70, %c7_i32 : i32
    %c8_i32_71 = arith.constant 8 : i32
    %231 = arith.muli %230, %c8_i32_71 : i32
    %232 = tpu.assume_multiple %231, 8 : i32
    %233 = arith.index_cast %229 : i32 to index
    %c0_72 = arith.constant 0 : index
    %234 = vector.load %arg20[%233, %c0_72] : memref<128x128xf32, #tpu.memory_space<vmem>>, vector<8x128xf32>
    %235 = arith.index_cast %232 : i32 to index
    %c0_73 = arith.constant 0 : index
    %236 = vector.load %arg21[%235, %c0_73] : memref<128x128xf32, #tpu.memory_space<vmem>>, vector<8x128xf32>
    %237 = arith.addf %234, %236 : vector<8x128xf32>
    %238 = arith.truncf %225 : vector<8x32xf32> to vector<8x32xbf16>
    %cst_74 = arith.constant dense<0.000000e+00> : vector<8x128xf32>
    %239 = tpu.matmul %238, %15, %cst_74 {dimension_numbers = #tpu.dot_dimension_numbers<[1], [0], [0], [1], [0, 0, 1, 1], [], []>} : vector<8x32xbf16>, vector<32x128xbf16>, vector<8x128xf32> -> vector<8x128xf32>
    %240 = arith.addf %237, %239 : vector<8x128xf32>
    %241 = arith.negf %240 : vector<8x128xf32>
    %242 = math.exp %241 : vector<8x128xf32>
    %cst_75 = arith.constant 1.000000e+00 : f32
    %243 = vector.broadcast %cst_75 : f32 to vector<8x128xf32>
    %244 = arith.addf %243, %242 : vector<8x128xf32>
    %245 = arith.divf %243, %244 : vector<8x128xf32>
    %246 = math.tanh %240 : vector<8x128xf32>
    %247 = vector.extract_strided_slice %245 {offsets = [0, 0], sizes = [8, 32], strides = [1, 1]} : vector<8x128xf32> to vector<8x32xf32>
    %248 = vector.extract_strided_slice %245 {offsets = [0, 32], sizes = [8, 32], strides = [1, 1]} : vector<8x128xf32> to vector<8x32xf32>
    %249 = vector.extract_strided_slice %246 {offsets = [0, 64], sizes = [8, 32], strides = [1, 1]} : vector<8x128xf32> to vector<8x32xf32>
    %250 = vector.extract_strided_slice %245 {offsets = [0, 96], sizes = [8, 32], strides = [1, 1]} : vector<8x128xf32> to vector<8x32xf32>
    %251 = arith.mulf %248, %223 : vector<8x32xf32>
    %252 = arith.mulf %247, %249 : vector<8x32xf32>
    %253 = arith.addf %251, %252 : vector<8x32xf32>
    %254 = math.tanh %253 : vector<8x32xf32>
    %255 = arith.mulf %250, %254 : vector<8x32xf32>
    %256 = arith.index_cast %229 : i32 to index
    %c0_76 = arith.constant 0 : index
    %257 = vector.load %arg18[%256, %c0_76] : memref<128x32xf32, #tpu.memory_space<vmem>>, vector<8x32xf32>
    tpu.vector_store %arg18[%256, %c0_76], %255 {strides = array<i32>} : memref<128x32xf32, #tpu.memory_space<vmem>>, vector<8x32xf32>,
    %c8_i32_77 = arith.constant 8 : i32
    %c8_i32_78 = arith.constant 8 : i32
    %258 = arith.muli %c8_i32_77, %c8_i32_78 : i32
    %259 = tpu.assume_multiple %258, 8 : i32
    %c15_i32_79 = arith.constant 15 : i32
    %260 = arith.subi %c15_i32_79, %c8_i32_77 : i32
    %c8_i32_80 = arith.constant 8 : i32
    %261 = arith.muli %260, %c8_i32_80 : i32
    %262 = tpu.assume_multiple %261, 8 : i32
    %263 = arith.index_cast %259 : i32 to index
    %c0_81 = arith.constant 0 : index
    %264 = vector.load %arg20[%263, %c0_81] : memref<128x128xf32, #tpu.memory_space<vmem>>, vector<8x128xf32>
    %265 = arith.index_cast %262 : i32 to index
    %c0_82 = arith.constant 0 : index
    %266 = vector.load %arg21[%265, %c0_82] : memref<128x128xf32, #tpu.memory_space<vmem>>, vector<8x128xf32>
    %267 = arith.addf %264, %266 : vector<8x128xf32>
    %268 = arith.truncf %255 : vector<8x32xf32> to vector<8x32xbf16>
    %cst_83 = arith.constant dense<0.000000e+00> : vector<8x128xf32>
    %269 = tpu.matmul %268, %15, %cst_83 {dimension_numbers = #tpu.dot_dimension_numbers<[1], [0], [0], [1], [0, 0, 1, 1], [], []>} : vector<8x32xbf16>, vector<32x128xbf16>, vector<8x128xf32> -> vector<8x128xf32>
    %270 = arith.addf %267, %269 : vector<8x128xf32>
    %271 = arith.negf %270 : vector<8x128xf32>
    %272 = math.exp %271 : vector<8x128xf32>
    %cst_84 = arith.constant 1.000000e+00 : f32
    %273 = vector.broadcast %cst_84 : f32 to vector<8x128xf32>
    %274 = arith.addf %273, %272 : vector<8x128xf32>
    %275 = arith.divf %273, %274 : vector<8x128xf32>
    %276 = math.tanh %270 : vector<8x128xf32>
    %277 = vector.extract_strided_slice %275 {offsets = [0, 0], sizes = [8, 32], strides = [1, 1]} : vector<8x128xf32> to vector<8x32xf32>
    %278 = vector.extract_strided_slice %275 {offsets = [0, 32], sizes = [8, 32], strides = [1, 1]} : vector<8x128xf32> to vector<8x32xf32>
    %279 = vector.extract_strided_slice %276 {offsets = [0, 64], sizes = [8, 32], strides = [1, 1]} : vector<8x128xf32> to vector<8x32xf32>
    %280 = vector.extract_strided_slice %275 {offsets = [0, 96], sizes = [8, 32], strides = [1, 1]} : vector<8x128xf32> to vector<8x32xf32>
    %281 = arith.mulf %278, %253 : vector<8x32xf32>
    %282 = arith.mulf %277, %279 : vector<8x32xf32>
    %283 = arith.addf %281, %282 : vector<8x32xf32>
    %284 = math.tanh %283 : vector<8x32xf32>
    %285 = arith.mulf %280, %284 : vector<8x32xf32>
    %286 = arith.index_cast %259 : i32 to index
    %c0_85 = arith.constant 0 : index
    %287 = vector.load %arg18[%286, %c0_85] : memref<128x32xf32, #tpu.memory_space<vmem>>, vector<8x32xf32>
    tpu.vector_store %arg18[%286, %c0_85], %285 {strides = array<i32>} : memref<128x32xf32, #tpu.memory_space<vmem>>, vector<8x32xf32>,
    %c9_i32 = arith.constant 9 : i32
    %c8_i32_86 = arith.constant 8 : i32
    %288 = arith.muli %c9_i32, %c8_i32_86 : i32
    %289 = tpu.assume_multiple %288, 8 : i32
    %c15_i32_87 = arith.constant 15 : i32
    %290 = arith.subi %c15_i32_87, %c9_i32 : i32
    %c8_i32_88 = arith.constant 8 : i32
    %291 = arith.muli %290, %c8_i32_88 : i32
    %292 = tpu.assume_multiple %291, 8 : i32
    %293 = arith.index_cast %289 : i32 to index
    %c0_89 = arith.constant 0 : index
    %294 = vector.load %arg20[%293, %c0_89] : memref<128x128xf32, #tpu.memory_space<vmem>>, vector<8x128xf32>
    %295 = arith.index_cast %292 : i32 to index
    %c0_90 = arith.constant 0 : index
    %296 = vector.load %arg21[%295, %c0_90] : memref<128x128xf32, #tpu.memory_space<vmem>>, vector<8x128xf32>
    %297 = arith.addf %294, %296 : vector<8x128xf32>
    %298 = arith.truncf %285 : vector<8x32xf32> to vector<8x32xbf16>
    %cst_91 = arith.constant dense<0.000000e+00> : vector<8x128xf32>
    %299 = tpu.matmul %298, %15, %cst_91 {dimension_numbers = #tpu.dot_dimension_numbers<[1], [0], [0], [1], [0, 0, 1, 1], [], []>} : vector<8x32xbf16>, vector<32x128xbf16>, vector<8x128xf32> -> vector<8x128xf32>
    %300 = arith.addf %297, %299 : vector<8x128xf32>
    %301 = arith.negf %300 : vector<8x128xf32>
    %302 = math.exp %301 : vector<8x128xf32>
    %cst_92 = arith.constant 1.000000e+00 : f32
    %303 = vector.broadcast %cst_92 : f32 to vector<8x128xf32>
    %304 = arith.addf %303, %302 : vector<8x128xf32>
    %305 = arith.divf %303, %304 : vector<8x128xf32>
    %306 = math.tanh %300 : vector<8x128xf32>
    %307 = vector.extract_strided_slice %305 {offsets = [0, 0], sizes = [8, 32], strides = [1, 1]} : vector<8x128xf32> to vector<8x32xf32>
    %308 = vector.extract_strided_slice %305 {offsets = [0, 32], sizes = [8, 32], strides = [1, 1]} : vector<8x128xf32> to vector<8x32xf32>
    %309 = vector.extract_strided_slice %306 {offsets = [0, 64], sizes = [8, 32], strides = [1, 1]} : vector<8x128xf32> to vector<8x32xf32>
    %310 = vector.extract_strided_slice %305 {offsets = [0, 96], sizes = [8, 32], strides = [1, 1]} : vector<8x128xf32> to vector<8x32xf32>
    %311 = arith.mulf %308, %283 : vector<8x32xf32>
    %312 = arith.mulf %307, %309 : vector<8x32xf32>
    %313 = arith.addf %311, %312 : vector<8x32xf32>
    %314 = math.tanh %313 : vector<8x32xf32>
    %315 = arith.mulf %310, %314 : vector<8x32xf32>
    %316 = arith.index_cast %289 : i32 to index
    %c0_93 = arith.constant 0 : index
    %317 = vector.load %arg18[%316, %c0_93] : memref<128x32xf32, #tpu.memory_space<vmem>>, vector<8x32xf32>
    tpu.vector_store %arg18[%316, %c0_93], %315 {strides = array<i32>} : memref<128x32xf32, #tpu.memory_space<vmem>>, vector<8x32xf32>,
    %c10_i32 = arith.constant 10 : i32
    %c8_i32_94 = arith.constant 8 : i32
    %318 = arith.muli %c10_i32, %c8_i32_94 : i32
    %319 = tpu.assume_multiple %318, 8 : i32
    %c15_i32_95 = arith.constant 15 : i32
    %320 = arith.subi %c15_i32_95, %c10_i32 : i32
    %c8_i32_96 = arith.constant 8 : i32
    %321 = arith.muli %320, %c8_i32_96 : i32
    %322 = tpu.assume_multiple %321, 8 : i32
    %323 = arith.index_cast %319 : i32 to index
    %c0_97 = arith.constant 0 : index
    %324 = vector.load %arg20[%323, %c0_97] : memref<128x128xf32, #tpu.memory_space<vmem>>, vector<8x128xf32>
    %325 = arith.index_cast %322 : i32 to index
    %c0_98 = arith.constant 0 : index
    %326 = vector.load %arg21[%325, %c0_98] : memref<128x128xf32, #tpu.memory_space<vmem>>, vector<8x128xf32>
    %327 = arith.addf %324, %326 : vector<8x128xf32>
    %328 = arith.truncf %315 : vector<8x32xf32> to vector<8x32xbf16>
    %cst_99 = arith.constant dense<0.000000e+00> : vector<8x128xf32>
    %329 = tpu.matmul %328, %15, %cst_99 {dimension_numbers = #tpu.dot_dimension_numbers<[1], [0], [0], [1], [0, 0, 1, 1], [], []>} : vector<8x32xbf16>, vector<32x128xbf16>, vector<8x128xf32> -> vector<8x128xf32>
    %330 = arith.addf %327, %329 : vector<8x128xf32>
    %331 = arith.negf %330 : vector<8x128xf32>
    %332 = math.exp %331 : vector<8x128xf32>
    %cst_100 = arith.constant 1.000000e+00 : f32
    %333 = vector.broadcast %cst_100 : f32 to vector<8x128xf32>
    %334 = arith.addf %333, %332 : vector<8x128xf32>
    %335 = arith.divf %333, %334 : vector<8x128xf32>
    %336 = math.tanh %330 : vector<8x128xf32>
    %337 = vector.extract_strided_slice %335 {offsets = [0, 0], sizes = [8, 32], strides = [1, 1]} : vector<8x128xf32> to vector<8x32xf32>
    %338 = vector.extract_strided_slice %335 {offsets = [0, 32], sizes = [8, 32], strides = [1, 1]} : vector<8x128xf32> to vector<8x32xf32>
    %339 = vector.extract_strided_slice %336 {offsets = [0, 64], sizes = [8, 32], strides = [1, 1]} : vector<8x128xf32> to vector<8x32xf32>
    %340 = vector.extract_strided_slice %335 {offsets = [0, 96], sizes = [8, 32], strides = [1, 1]} : vector<8x128xf32> to vector<8x32xf32>
    %341 = arith.mulf %338, %313 : vector<8x32xf32>
    %342 = arith.mulf %337, %339 : vector<8x32xf32>
    %343 = arith.addf %341, %342 : vector<8x32xf32>
    %344 = math.tanh %343 : vector<8x32xf32>
    %345 = arith.mulf %340, %344 : vector<8x32xf32>
    %346 = arith.index_cast %319 : i32 to index
    %c0_101 = arith.constant 0 : index
    %347 = vector.load %arg18[%346, %c0_101] : memref<128x32xf32, #tpu.memory_space<vmem>>, vector<8x32xf32>
    tpu.vector_store %arg18[%346, %c0_101], %345 {strides = array<i32>} : memref<128x32xf32, #tpu.memory_space<vmem>>, vector<8x32xf32>,
    %c11_i32 = arith.constant 11 : i32
    %c8_i32_102 = arith.constant 8 : i32
    %348 = arith.muli %c11_i32, %c8_i32_102 : i32
    %349 = tpu.assume_multiple %348, 8 : i32
    %c15_i32_103 = arith.constant 15 : i32
    %350 = arith.subi %c15_i32_103, %c11_i32 : i32
    %c8_i32_104 = arith.constant 8 : i32
    %351 = arith.muli %350, %c8_i32_104 : i32
    %352 = tpu.assume_multiple %351, 8 : i32
    %353 = arith.index_cast %349 : i32 to index
    %c0_105 = arith.constant 0 : index
    %354 = vector.load %arg20[%353, %c0_105] : memref<128x128xf32, #tpu.memory_space<vmem>>, vector<8x128xf32>
    %355 = arith.index_cast %352 : i32 to index
    %c0_106 = arith.constant 0 : index
    %356 = vector.load %arg21[%355, %c0_106] : memref<128x128xf32, #tpu.memory_space<vmem>>, vector<8x128xf32>
    %357 = arith.addf %354, %356 : vector<8x128xf32>
    %358 = arith.truncf %345 : vector<8x32xf32> to vector<8x32xbf16>
    %cst_107 = arith.constant dense<0.000000e+00> : vector<8x128xf32>
    %359 = tpu.matmul %358, %15, %cst_107 {dimension_numbers = #tpu.dot_dimension_numbers<[1], [0], [0], [1], [0, 0, 1, 1], [], []>} : vector<8x32xbf16>, vector<32x128xbf16>, vector<8x128xf32> -> vector<8x128xf32>
    %360 = arith.addf %357, %359 : vector<8x128xf32>
    %361 = arith.negf %360 : vector<8x128xf32>
    %362 = math.exp %361 : vector<8x128xf32>
    %cst_108 = arith.constant 1.000000e+00 : f32
    %363 = vector.broadcast %cst_108 : f32 to vector<8x128xf32>
    %364 = arith.addf %363, %362 : vector<8x128xf32>
    %365 = arith.divf %363, %364 : vector<8x128xf32>
    %366 = math.tanh %360 : vector<8x128xf32>
    %367 = vector.extract_strided_slice %365 {offsets = [0, 0], sizes = [8, 32], strides = [1, 1]} : vector<8x128xf32> to vector<8x32xf32>
    %368 = vector.extract_strided_slice %365 {offsets = [0, 32], sizes = [8, 32], strides = [1, 1]} : vector<8x128xf32> to vector<8x32xf32>
    %369 = vector.extract_strided_slice %366 {offsets = [0, 64], sizes = [8, 32], strides = [1, 1]} : vector<8x128xf32> to vector<8x32xf32>
    %370 = vector.extract_strided_slice %365 {offsets = [0, 96], sizes = [8, 32], strides = [1, 1]} : vector<8x128xf32> to vector<8x32xf32>
    %371 = arith.mulf %368, %343 : vector<8x32xf32>
    %372 = arith.mulf %367, %369 : vector<8x32xf32>
    %373 = arith.addf %371, %372 : vector<8x32xf32>
    %374 = math.tanh %373 : vector<8x32xf32>
    %375 = arith.mulf %370, %374 : vector<8x32xf32>
    %376 = arith.index_cast %349 : i32 to index
    %c0_109 = arith.constant 0 : index
    %377 = vector.load %arg18[%376, %c0_109] : memref<128x32xf32, #tpu.memory_space<vmem>>, vector<8x32xf32>
    tpu.vector_store %arg18[%376, %c0_109], %375 {strides = array<i32>} : memref<128x32xf32, #tpu.memory_space<vmem>>, vector<8x32xf32>,
    %c12_i32 = arith.constant 12 : i32
    %c8_i32_110 = arith.constant 8 : i32
    %378 = arith.muli %c12_i32, %c8_i32_110 : i32
    %379 = tpu.assume_multiple %378, 8 : i32
    %c15_i32_111 = arith.constant 15 : i32
    %380 = arith.subi %c15_i32_111, %c12_i32 : i32
    %c8_i32_112 = arith.constant 8 : i32
    %381 = arith.muli %380, %c8_i32_112 : i32
    %382 = tpu.assume_multiple %381, 8 : i32
    %383 = arith.index_cast %379 : i32 to index
    %c0_113 = arith.constant 0 : index
    %384 = vector.load %arg20[%383, %c0_113] : memref<128x128xf32, #tpu.memory_space<vmem>>, vector<8x128xf32>
    %385 = arith.index_cast %382 : i32 to index
    %c0_114 = arith.constant 0 : index
    %386 = vector.load %arg21[%385, %c0_114] : memref<128x128xf32, #tpu.memory_space<vmem>>, vector<8x128xf32>
    %387 = arith.addf %384, %386 : vector<8x128xf32>
    %388 = arith.truncf %375 : vector<8x32xf32> to vector<8x32xbf16>
    %cst_115 = arith.constant dense<0.000000e+00> : vector<8x128xf32>
    %389 = tpu.matmul %388, %15, %cst_115 {dimension_numbers = #tpu.dot_dimension_numbers<[1], [0], [0], [1], [0, 0, 1, 1], [], []>} : vector<8x32xbf16>, vector<32x128xbf16>, vector<8x128xf32> -> vector<8x128xf32>
    %390 = arith.addf %387, %389 : vector<8x128xf32>
    %391 = arith.negf %390 : vector<8x128xf32>
    %392 = math.exp %391 : vector<8x128xf32>
    %cst_116 = arith.constant 1.000000e+00 : f32
    %393 = vector.broadcast %cst_116 : f32 to vector<8x128xf32>
    %394 = arith.addf %393, %392 : vector<8x128xf32>
    %395 = arith.divf %393, %394 : vector<8x128xf32>
    %396 = math.tanh %390 : vector<8x128xf32>
    %397 = vector.extract_strided_slice %395 {offsets = [0, 0], sizes = [8, 32], strides = [1, 1]} : vector<8x128xf32> to vector<8x32xf32>
    %398 = vector.extract_strided_slice %395 {offsets = [0, 32], sizes = [8, 32], strides = [1, 1]} : vector<8x128xf32> to vector<8x32xf32>
    %399 = vector.extract_strided_slice %396 {offsets = [0, 64], sizes = [8, 32], strides = [1, 1]} : vector<8x128xf32> to vector<8x32xf32>
    %400 = vector.extract_strided_slice %395 {offsets = [0, 96], sizes = [8, 32], strides = [1, 1]} : vector<8x128xf32> to vector<8x32xf32>
    %401 = arith.mulf %398, %373 : vector<8x32xf32>
    %402 = arith.mulf %397, %399 : vector<8x32xf32>
    %403 = arith.addf %401, %402 : vector<8x32xf32>
    %404 = math.tanh %403 : vector<8x32xf32>
    %405 = arith.mulf %400, %404 : vector<8x32xf32>
    %406 = arith.index_cast %379 : i32 to index
    %c0_117 = arith.constant 0 : index
    %407 = vector.load %arg18[%406, %c0_117] : memref<128x32xf32, #tpu.memory_space<vmem>>, vector<8x32xf32>
    tpu.vector_store %arg18[%406, %c0_117], %405 {strides = array<i32>} : memref<128x32xf32, #tpu.memory_space<vmem>>, vector<8x32xf32>,
    %c13_i32 = arith.constant 13 : i32
    %c8_i32_118 = arith.constant 8 : i32
    %408 = arith.muli %c13_i32, %c8_i32_118 : i32
    %409 = tpu.assume_multiple %408, 8 : i32
    %c15_i32_119 = arith.constant 15 : i32
    %410 = arith.subi %c15_i32_119, %c13_i32 : i32
    %c8_i32_120 = arith.constant 8 : i32
    %411 = arith.muli %410, %c8_i32_120 : i32
    %412 = tpu.assume_multiple %411, 8 : i32
    %413 = arith.index_cast %409 : i32 to index
    %c0_121 = arith.constant 0 : index
    %414 = vector.load %arg20[%413, %c0_121] : memref<128x128xf32, #tpu.memory_space<vmem>>, vector<8x128xf32>
    %415 = arith.index_cast %412 : i32 to index
    %c0_122 = arith.constant 0 : index
    %416 = vector.load %arg21[%415, %c0_122] : memref<128x128xf32, #tpu.memory_space<vmem>>, vector<8x128xf32>
    %417 = arith.addf %414, %416 : vector<8x128xf32>
    %418 = arith.truncf %405 : vector<8x32xf32> to vector<8x32xbf16>
    %cst_123 = arith.constant dense<0.000000e+00> : vector<8x128xf32>
    %419 = tpu.matmul %418, %15, %cst_123 {dimension_numbers = #tpu.dot_dimension_numbers<[1], [0], [0], [1], [0, 0, 1, 1], [], []>} : vector<8x32xbf16>, vector<32x128xbf16>, vector<8x128xf32> -> vector<8x128xf32>
    %420 = arith.addf %417, %419 : vector<8x128xf32>
    %421 = arith.negf %420 : vector<8x128xf32>
    %422 = math.exp %421 : vector<8x128xf32>
    %cst_124 = arith.constant 1.000000e+00 : f32
    %423 = vector.broadcast %cst_124 : f32 to vector<8x128xf32>
    %424 = arith.addf %423, %422 : vector<8x128xf32>
    %425 = arith.divf %423, %424 : vector<8x128xf32>
    %426 = math.tanh %420 : vector<8x128xf32>
    %427 = vector.extract_strided_slice %425 {offsets = [0, 0], sizes = [8, 32], strides = [1, 1]} : vector<8x128xf32> to vector<8x32xf32>
    %428 = vector.extract_strided_slice %425 {offsets = [0, 32], sizes = [8, 32], strides = [1, 1]} : vector<8x128xf32> to vector<8x32xf32>
    %429 = vector.extract_strided_slice %426 {offsets = [0, 64], sizes = [8, 32], strides = [1, 1]} : vector<8x128xf32> to vector<8x32xf32>
    %430 = vector.extract_strided_slice %425 {offsets = [0, 96], sizes = [8, 32], strides = [1, 1]} : vector<8x128xf32> to vector<8x32xf32>
    %431 = arith.mulf %428, %403 : vector<8x32xf32>
    %432 = arith.mulf %427, %429 : vector<8x32xf32>
    %433 = arith.addf %431, %432 : vector<8x32xf32>
    %434 = math.tanh %433 : vector<8x32xf32>
    %435 = arith.mulf %430, %434 : vector<8x32xf32>
    %436 = arith.index_cast %409 : i32 to index
    %c0_125 = arith.constant 0 : index
    %437 = vector.load %arg18[%436, %c0_125] : memref<128x32xf32, #tpu.memory_space<vmem>>, vector<8x32xf32>
    tpu.vector_store %arg18[%436, %c0_125], %435 {strides = array<i32>} : memref<128x32xf32, #tpu.memory_space<vmem>>, vector<8x32xf32>,
    %c14_i32 = arith.constant 14 : i32
    %c8_i32_126 = arith.constant 8 : i32
    %438 = arith.muli %c14_i32, %c8_i32_126 : i32
    %439 = tpu.assume_multiple %438, 8 : i32
    %c15_i32_127 = arith.constant 15 : i32
    %440 = arith.subi %c15_i32_127, %c14_i32 : i32
    %c8_i32_128 = arith.constant 8 : i32
    %441 = arith.muli %440, %c8_i32_128 : i32
    %442 = tpu.assume_multiple %441, 8 : i32
    %443 = arith.index_cast %439 : i32 to index
    %c0_129 = arith.constant 0 : index
    %444 = vector.load %arg20[%443, %c0_129] : memref<128x128xf32, #tpu.memory_space<vmem>>, vector<8x128xf32>
    %445 = arith.index_cast %442 : i32 to index
    %c0_130 = arith.constant 0 : index
    %446 = vector.load %arg21[%445, %c0_130] : memref<128x128xf32, #tpu.memory_space<vmem>>, vector<8x128xf32>
    %447 = arith.addf %444, %446 : vector<8x128xf32>
    %448 = arith.truncf %435 : vector<8x32xf32> to vector<8x32xbf16>
    %cst_131 = arith.constant dense<0.000000e+00> : vector<8x128xf32>
    %449 = tpu.matmul %448, %15, %cst_131 {dimension_numbers = #tpu.dot_dimension_numbers<[1], [0], [0], [1], [0, 0, 1, 1], [], []>} : vector<8x32xbf16>, vector<32x128xbf16>, vector<8x128xf32> -> vector<8x128xf32>
    %450 = arith.addf %447, %449 : vector<8x128xf32>
    %451 = arith.negf %450 : vector<8x128xf32>
    %452 = math.exp %451 : vector<8x128xf32>
    %cst_132 = arith.constant 1.000000e+00 : f32
    %453 = vector.broadcast %cst_132 : f32 to vector<8x128xf32>
    %454 = arith.addf %453, %452 : vector<8x128xf32>
    %455 = arith.divf %453, %454 : vector<8x128xf32>
    %456 = math.tanh %450 : vector<8x128xf32>
    %457 = vector.extract_strided_slice %455 {offsets = [0, 0], sizes = [8, 32], strides = [1, 1]} : vector<8x128xf32> to vector<8x32xf32>
    %458 = vector.extract_strided_slice %455 {offsets = [0, 32], sizes = [8, 32], strides = [1, 1]} : vector<8x128xf32> to vector<8x32xf32>
    %459 = vector.extract_strided_slice %456 {offsets = [0, 64], sizes = [8, 32], strides = [1, 1]} : vector<8x128xf32> to vector<8x32xf32>
    %460 = vector.extract_strided_slice %455 {offsets = [0, 96], sizes = [8, 32], strides = [1, 1]} : vector<8x128xf32> to vector<8x32xf32>
    %461 = arith.mulf %458, %433 : vector<8x32xf32>
    %462 = arith.mulf %457, %459 : vector<8x32xf32>
    %463 = arith.addf %461, %462 : vector<8x32xf32>
    %464 = math.tanh %463 : vector<8x32xf32>
    %465 = arith.mulf %460, %464 : vector<8x32xf32>
    %466 = arith.index_cast %439 : i32 to index
    %c0_133 = arith.constant 0 : index
    %467 = vector.load %arg18[%466, %c0_133] : memref<128x32xf32, #tpu.memory_space<vmem>>, vector<8x32xf32>
    tpu.vector_store %arg18[%466, %c0_133], %465 {strides = array<i32>} : memref<128x32xf32, #tpu.memory_space<vmem>>, vector<8x32xf32>,
    %c15_i32_134 = arith.constant 15 : i32
    %c8_i32_135 = arith.constant 8 : i32
    %468 = arith.muli %c15_i32_134, %c8_i32_135 : i32
    %469 = tpu.assume_multiple %468, 8 : i32
    %c15_i32_136 = arith.constant 15 : i32
    %470 = arith.subi %c15_i32_136, %c15_i32_134 : i32
    %c8_i32_137 = arith.constant 8 : i32
    %471 = arith.muli %470, %c8_i32_137 : i32
    %472 = tpu.assume_multiple %471, 8 : i32
    %473 = arith.index_cast %469 : i32 to index
    %c0_138 = arith.constant 0 : index
    %474 = vector.load %arg20[%473, %c0_138] : memref<128x128xf32, #tpu.memory_space<vmem>>, vector<8x128xf32>
    %475 = arith.index_cast %472 : i32 to index
    %c0_139 = arith.constant 0 : index
    %476 = vector.load %arg21[%475, %c0_139] : memref<128x128xf32, #tpu.memory_space<vmem>>, vector<8x128xf32>
    %477 = arith.addf %474, %476 : vector<8x128xf32>
    %478 = arith.truncf %465 : vector<8x32xf32> to vector<8x32xbf16>
    %cst_140 = arith.constant dense<0.000000e+00> : vector<8x128xf32>
    %479 = tpu.matmul %478, %15, %cst_140 {dimension_numbers = #tpu.dot_dimension_numbers<[1], [0], [0], [1], [0, 0, 1, 1], [], []>} : vector<8x32xbf16>, vector<32x128xbf16>, vector<8x128xf32> -> vector<8x128xf32>
    %480 = arith.addf %477, %479 : vector<8x128xf32>
    %481 = arith.negf %480 : vector<8x128xf32>
    %482 = math.exp %481 : vector<8x128xf32>
    %cst_141 = arith.constant 1.000000e+00 : f32
    %483 = vector.broadcast %cst_141 : f32 to vector<8x128xf32>
    %484 = arith.addf %483, %482 : vector<8x128xf32>
    %485 = arith.divf %483, %484 : vector<8x128xf32>
    %486 = math.tanh %480 : vector<8x128xf32>
    %487 = vector.extract_strided_slice %485 {offsets = [0, 0], sizes = [8, 32], strides = [1, 1]} : vector<8x128xf32> to vector<8x32xf32>
    %488 = vector.extract_strided_slice %485 {offsets = [0, 32], sizes = [8, 32], strides = [1, 1]} : vector<8x128xf32> to vector<8x32xf32>
    %489 = vector.extract_strided_slice %486 {offsets = [0, 64], sizes = [8, 32], strides = [1, 1]} : vector<8x128xf32> to vector<8x32xf32>
    %490 = vector.extract_strided_slice %485 {offsets = [0, 96], sizes = [8, 32], strides = [1, 1]} : vector<8x128xf32> to vector<8x32xf32>
    %491 = arith.mulf %488, %463 : vector<8x32xf32>
    %492 = arith.mulf %487, %489 : vector<8x32xf32>
    %493 = arith.addf %491, %492 : vector<8x32xf32>
    %494 = math.tanh %493 : vector<8x32xf32>
    %495 = arith.mulf %490, %494 : vector<8x32xf32>
    %496 = arith.index_cast %469 : i32 to index
    %c0_142 = arith.constant 0 : index
    %497 = vector.load %arg18[%496, %c0_142] : memref<128x32xf32, #tpu.memory_space<vmem>>, vector<8x32xf32>
    tpu.vector_store %arg18[%496, %c0_142], %495 {strides = array<i32>} : memref<128x32xf32, #tpu.memory_space<vmem>>, vector<8x32xf32>,
    %c16_i32 = arith.constant 16 : i32
    %c0_143 = arith.constant 0 : index
    %c0_144 = arith.constant 0 : index
    %498 = vector.load %arg18[%c0_143, %c0_144] : memref<128x32xf32, #tpu.memory_space<vmem>>, vector<128x16xf32>
    %c0_145 = arith.constant 0 : index
    %c0_146 = arith.constant 0 : index
    %499 = vector.load %arg19[%c0_145, %c0_146] : memref<128x32xf32, #tpu.memory_space<vmem>>, vector<128x16xf32>
    tpu.vector_store %arg19[%c0_145, %c0_146], %498 {strides = array<i32>} : memref<128x32xf32, #tpu.memory_space<vmem>>, vector<128x16xf32>,
    %c120 = arith.constant 120 : index
    %c16 = arith.constant 16 : index
    %500 = vector.load %arg18[%c120, %c16] : memref<128x32xf32, #tpu.memory_space<vmem>>, vector<8x16xf32>
    %c0_147 = arith.constant 0 : index
    %c16_148 = arith.constant 16 : index
    %501 = vector.load %arg19[%c0_147, %c16_148] : memref<128x32xf32, #tpu.memory_space<vmem>>, vector<8x16xf32>
    tpu.vector_store %arg19[%c0_147, %c16_148], %500 {strides = array<i32>} : memref<128x32xf32, #tpu.memory_space<vmem>>, vector<8x16xf32>,
    %c112 = arith.constant 112 : index
    %c16_149 = arith.constant 16 : index
    %502 = vector.load %arg18[%c112, %c16_149] : memref<128x32xf32, #tpu.memory_space<vmem>>, vector<8x16xf32>
    %c8 = arith.constant 8 : index
    %c16_150 = arith.constant 16 : index
    %503 = vector.load %arg19[%c8, %c16_150] : memref<128x32xf32, #tpu.memory_space<vmem>>, vector<8x16xf32>
    tpu.vector_store %arg19[%c8, %c16_150], %502 {strides = array<i32>} : memref<128x32xf32, #tpu.memory_space<vmem>>, vector<8x16xf32>,
    %c104 = arith.constant 104 : index
    %c16_151 = arith.constant 16 : index
    %504 = vector.load %arg18[%c104, %c16_151] : memref<128x32xf32, #tpu.memory_space<vmem>>, vector<8x16xf32>
    %c16_152 = arith.constant 16 : index
    %c16_153 = arith.constant 16 : index
    %505 = vector.load %arg19[%c16_152, %c16_153] : memref<128x32xf32, #tpu.memory_space<vmem>>, vector<8x16xf32>
    tpu.vector_store %arg19[%c16_152, %c16_153], %504 {strides = array<i32>} : memref<128x32xf32, #tpu.memory_space<vmem>>, vector<8x16xf32>,
    %c96 = arith.constant 96 : index
    %c16_154 = arith.constant 16 : index
    %506 = vector.load %arg18[%c96, %c16_154] : memref<128x32xf32, #tpu.memory_space<vmem>>, vector<8x16xf32>
    %c24 = arith.constant 24 : index
    %c16_155 = arith.constant 16 : index
    %507 = vector.load %arg19[%c24, %c16_155] : memref<128x32xf32, #tpu.memory_space<vmem>>, vector<8x16xf32>
    tpu.vector_store %arg19[%c24, %c16_155], %506 {strides = array<i32>} : memref<128x32xf32, #tpu.memory_space<vmem>>, vector<8x16xf32>,
    %c88 = arith.constant 88 : index
    %c16_156 = arith.constant 16 : index
    %508 = vector.load %arg18[%c88, %c16_156] : memref<128x32xf32, #tpu.memory_space<vmem>>, vector<8x16xf32>
    %c32 = arith.constant 32 : index
    %c16_157 = arith.constant 16 : index
    %509 = vector.load %arg19[%c32, %c16_157] : memref<128x32xf32, #tpu.memory_space<vmem>>, vector<8x16xf32>
    tpu.vector_store %arg19[%c32, %c16_157], %508 {strides = array<i32>} : memref<128x32xf32, #tpu.memory_space<vmem>>, vector<8x16xf32>,
    %c80 = arith.constant 80 : index
    %c16_158 = arith.constant 16 : index
    %510 = vector.load %arg18[%c80, %c16_158] : memref<128x32xf32, #tpu.memory_space<vmem>>, vector<8x16xf32>
    %c40 = arith.constant 40 : index
    %c16_159 = arith.constant 16 : index
    %511 = vector.load %arg19[%c40, %c16_159] : memref<128x32xf32, #tpu.memory_space<vmem>>, vector<8x16xf32>
    tpu.vector_store %arg19[%c40, %c16_159], %510 {strides = array<i32>} : memref<128x32xf32, #tpu.memory_space<vmem>>, vector<8x16xf32>,
    %c72 = arith.constant 72 : index
    %c16_160 = arith.constant 16 : index
    %512 = vector.load %arg18[%c72, %c16_160] : memref<128x32xf32, #tpu.memory_space<vmem>>, vector<8x16xf32>
    %c48 = arith.constant 48 : index
    %c16_161 = arith.constant 16 : index
    %513 = vector.load %arg19[%c48, %c16_161] : memref<128x32xf32, #tpu.memory_space<vmem>>, vector<8x16xf32>
    tpu.vector_store %arg19[%c48, %c16_161], %512 {strides = array<i32>} : memref<128x32xf32, #tpu.memory_space<vmem>>, vector<8x16xf32>,
    %c64 = arith.constant 64 : index
    %c16_162 = arith.constant 16 : index
    %514 = vector.load %arg18[%c64, %c16_162] : memref<128x32xf32, #tpu.memory_space<vmem>>, vector<8x16xf32>
    %c56 = arith.constant 56 : index
    %c16_163 = arith.constant 16 : index
    %515 = vector.load %arg19[%c56, %c16_163] : memref<128x32xf32, #tpu.memory_space<vmem>>, vector<8x16xf32>
    tpu.vector_store %arg19[%c56, %c16_163], %514 {strides = array<i32>} : memref<128x32xf32, #tpu.memory_space<vmem>>, vector<8x16xf32>,
    %c56_164 = arith.constant 56 : index
    %c16_165 = arith.constant 16 : index
    %516 = vector.load %arg18[%c56_164, %c16_165] : memref<128x32xf32, #tpu.memory_space<vmem>>, vector<8x16xf32>
    %c64_166 = arith.constant 64 : index
    %c16_167 = arith.constant 16 : index
    %517 = vector.load %arg19[%c64_166, %c16_167] : memref<128x32xf32, #tpu.memory_space<vmem>>, vector<8x16xf32>
    tpu.vector_store %arg19[%c64_166, %c16_167], %516 {strides = array<i32>} : memref<128x32xf32, #tpu.memory_space<vmem>>, vector<8x16xf32>,
    %c48_168 = arith.constant 48 : index
    %c16_169 = arith.constant 16 : index
    %518 = vector.load %arg18[%c48_168, %c16_169] : memref<128x32xf32, #tpu.memory_space<vmem>>, vector<8x16xf32>
    %c72_170 = arith.constant 72 : index
    %c16_171 = arith.constant 16 : index
    %519 = vector.load %arg19[%c72_170, %c16_171] : memref<128x32xf32, #tpu.memory_space<vmem>>, vector<8x16xf32>
    tpu.vector_store %arg19[%c72_170, %c16_171], %518 {strides = array<i32>} : memref<128x32xf32, #tpu.memory_space<vmem>>, vector<8x16xf32>,
    %c40_172 = arith.constant 40 : index
    %c16_173 = arith.constant 16 : index
    %520 = vector.load %arg18[%c40_172, %c16_173] : memref<128x32xf32, #tpu.memory_space<vmem>>, vector<8x16xf32>
    %c80_174 = arith.constant 80 : index
    %c16_175 = arith.constant 16 : index
    %521 = vector.load %arg19[%c80_174, %c16_175] : memref<128x32xf32, #tpu.memory_space<vmem>>, vector<8x16xf32>
    tpu.vector_store %arg19[%c80_174, %c16_175], %520 {strides = array<i32>} : memref<128x32xf32, #tpu.memory_space<vmem>>, vector<8x16xf32>,
    %c32_176 = arith.constant 32 : index
    %c16_177 = arith.constant 16 : index
    %522 = vector.load %arg18[%c32_176, %c16_177] : memref<128x32xf32, #tpu.memory_space<vmem>>, vector<8x16xf32>
    %c88_178 = arith.constant 88 : index
    %c16_179 = arith.constant 16 : index
    %523 = vector.load %arg19[%c88_178, %c16_179] : memref<128x32xf32, #tpu.memory_space<vmem>>, vector<8x16xf32>
    tpu.vector_store %arg19[%c88_178, %c16_179], %522 {strides = array<i32>} : memref<128x32xf32, #tpu.memory_space<vmem>>, vector<8x16xf32>,
    %c24_180 = arith.constant 24 : index
    %c16_181 = arith.constant 16 : index
    %524 = vector.load %arg18[%c24_180, %c16_181] : memref<128x32xf32, #tpu.memory_space<vmem>>, vector<8x16xf32>
    %c96_182 = arith.constant 96 : index
    %c16_183 = arith.constant 16 : index
    %525 = vector.load %arg19[%c96_182, %c16_183] : memref<128x32xf32, #tpu.memory_space<vmem>>, vector<8x16xf32>
    tpu.vector_store %arg19[%c96_182, %c16_183], %524 {strides = array<i32>} : memref<128x32xf32, #tpu.memory_space<vmem>>, vector<8x16xf32>,
    %c16_184 = arith.constant 16 : index
    %c16_185 = arith.constant 16 : index
    %526 = vector.load %arg18[%c16_184, %c16_185] : memref<128x32xf32, #tpu.memory_space<vmem>>, vector<8x16xf32>
    %c104_186 = arith.constant 104 : index
    %c16_187 = arith.constant 16 : index
    %527 = vector.load %arg19[%c104_186, %c16_187] : memref<128x32xf32, #tpu.memory_space<vmem>>, vector<8x16xf32>
    tpu.vector_store %arg19[%c104_186, %c16_187], %526 {strides = array<i32>} : memref<128x32xf32, #tpu.memory_space<vmem>>, vector<8x16xf32>,
    %c8_188 = arith.constant 8 : index
    %c16_189 = arith.constant 16 : index
    %528 = vector.load %arg18[%c8_188, %c16_189] : memref<128x32xf32, #tpu.memory_space<vmem>>, vector<8x16xf32>
    %c112_190 = arith.constant 112 : index
    %c16_191 = arith.constant 16 : index
    %529 = vector.load %arg19[%c112_190, %c16_191] : memref<128x32xf32, #tpu.memory_space<vmem>>, vector<8x16xf32>
    tpu.vector_store %arg19[%c112_190, %c16_191], %528 {strides = array<i32>} : memref<128x32xf32, #tpu.memory_space<vmem>>, vector<8x16xf32>,
    %c0_192 = arith.constant 0 : index
    %c16_193 = arith.constant 16 : index
    %530 = vector.load %arg18[%c0_192, %c16_193] : memref<128x32xf32, #tpu.memory_space<vmem>>, vector<8x16xf32>
    %c120_194 = arith.constant 120 : index
    %c16_195 = arith.constant 16 : index
    %531 = vector.load %arg19[%c120_194, %c16_195] : memref<128x32xf32, #tpu.memory_space<vmem>>, vector<8x16xf32>
    tpu.vector_store %arg19[%c120_194, %c16_195], %530 {strides = array<i32>} : memref<128x32xf32, #tpu.memory_space<vmem>>, vector<8x16xf32>,
    %c0_196 = arith.constant 0 : index
    %c0_197 = arith.constant 0 : index
    %532 = vector.load %arg19[%c0_196, %c0_197] : memref<128x32xf32, #tpu.memory_space<vmem>>, vector<128x32xf32>
    %c0_198 = arith.constant 0 : index
    %c0_199 = arith.constant 0 : index
    %533 = vector.load %arg6[%c0_198, %c0_199] : memref<32x128xf32, #tpu.memory_space<vmem>>, vector<32x128xf32>
    %cst_200 = arith.constant dense<0.000000e+00> : vector<128x128xf32>
    %534 = tpu.matmul %532, %533, %cst_200 {dimension_numbers = #tpu.dot_dimension_numbers<[1], [0], [0], [1], [0, 0, 1, 1], [], []>} : vector<128x32xf32>, vector<32x128xf32>, vector<128x128xf32> -> vector<128x128xf32>
    %c0_201 = arith.constant 0 : index
    %c0_202 = arith.constant 0 : index
    %535 = vector.load %arg8[%c0_201, %c0_202] : memref<1x128xf32, #tpu.memory_space<vmem>>, vector<1x128xf32>
    %536 = vector.broadcast %535 : vector<1x128xf32> to vector<128x128xf32>
    %537 = arith.addf %534, %536 : vector<128x128xf32>
    %c0_203 = arith.constant 0 : index
    %c0_204 = arith.constant 0 : index
    %538 = vector.load %arg20[%c0_203, %c0_204] : memref<128x128xf32, #tpu.memory_space<vmem>>, vector<128x128xf32>
    tpu.vector_store %arg20[%c0_203, %c0_204], %537 {strides = array<i32>} : memref<128x128xf32, #tpu.memory_space<vmem>>, vector<128x128xf32>,
    %c0_205 = arith.constant 0 : index
    %c0_206 = arith.constant 0 : index
    %539 = vector.load %arg7[%c0_205, %c0_206] : memref<32x128xf32, #tpu.memory_space<vmem>>, vector<32x128xf32>
    %cst_207 = arith.constant dense<0.000000e+00> : vector<128x128xf32>
    %540 = tpu.matmul %532, %539, %cst_207 {dimension_numbers = #tpu.dot_dimension_numbers<[1], [0], [0], [1], [0, 0, 1, 1], [], []>} : vector<128x32xf32>, vector<32x128xf32>, vector<128x128xf32> -> vector<128x128xf32>
    %c0_208 = arith.constant 0 : index
    %c0_209 = arith.constant 0 : index
    %541 = vector.load %arg21[%c0_208, %c0_209] : memref<128x128xf32, #tpu.memory_space<vmem>>, vector<128x128xf32>
    tpu.vector_store %arg21[%c0_208, %c0_209], %540 {strides = array<i32>} : memref<128x128xf32, #tpu.memory_space<vmem>>, vector<128x128xf32>,
    %c0_210 = arith.constant 0 : index
    %c0_211 = arith.constant 0 : index
    %542 = vector.load %arg9[%c0_210, %c0_211] : memref<32x128xbf16, #tpu.memory_space<vmem>>, vector<32x128xbf16>
    %cst_212 = arith.constant 0.000000e+00 : f32
    %543 = vector.broadcast %cst_212 : f32 to vector<8x32xf32>
    %cst_213 = arith.constant 0.000000e+00 : f32
    %544 = vector.broadcast %cst_213 : f32 to vector<8x32xf32>
    %c0_i32_214 = arith.constant 0 : i32
    %c8_i32_215 = arith.constant 8 : i32
    %545 = arith.muli %c0_i32_214, %c8_i32_215 : i32
    %546 = tpu.assume_multiple %545, 8 : i32
    %c15_i32_216 = arith.constant 15 : i32
    %547 = arith.subi %c15_i32_216, %c0_i32_214 : i32
    %c8_i32_217 = arith.constant 8 : i32
    %548 = arith.muli %547, %c8_i32_217 : i32
    %549 = tpu.assume_multiple %548, 8 : i32
    %550 = arith.index_cast %546 : i32 to index
    %c0_218 = arith.constant 0 : index
    %551 = vector.load %arg20[%550, %c0_218] : memref<128x128xf32, #tpu.memory_space<vmem>>, vector<8x128xf32>
    %552 = arith.index_cast %549 : i32 to index
    %c0_219 = arith.constant 0 : index
    %553 = vector.load %arg21[%552, %c0_219] : memref<128x128xf32, #tpu.memory_space<vmem>>, vector<8x128xf32>
    %554 = arith.addf %551, %553 : vector<8x128xf32>
    %555 = arith.truncf %543 : vector<8x32xf32> to vector<8x32xbf16>
    %cst_220 = arith.constant dense<0.000000e+00> : vector<8x128xf32>
    %556 = tpu.matmul %555, %542, %cst_220 {dimension_numbers = #tpu.dot_dimension_numbers<[1], [0], [0], [1], [0, 0, 1, 1], [], []>} : vector<8x32xbf16>, vector<32x128xbf16>, vector<8x128xf32> -> vector<8x128xf32>
    %557 = arith.addf %554, %556 : vector<8x128xf32>
    %558 = arith.negf %557 : vector<8x128xf32>
    %559 = math.exp %558 : vector<8x128xf32>
    %cst_221 = arith.constant 1.000000e+00 : f32
    %560 = vector.broadcast %cst_221 : f32 to vector<8x128xf32>
    %561 = arith.addf %560, %559 : vector<8x128xf32>
    %562 = arith.divf %560, %561 : vector<8x128xf32>
    %563 = math.tanh %557 : vector<8x128xf32>
    %564 = vector.extract_strided_slice %562 {offsets = [0, 0], sizes = [8, 32], strides = [1, 1]} : vector<8x128xf32> to vector<8x32xf32>
    %565 = vector.extract_strided_slice %562 {offsets = [0, 32], sizes = [8, 32], strides = [1, 1]} : vector<8x128xf32> to vector<8x32xf32>
    %566 = vector.extract_strided_slice %563 {offsets = [0, 64], sizes = [8, 32], strides = [1, 1]} : vector<8x128xf32> to vector<8x32xf32>
    %567 = vector.extract_strided_slice %562 {offsets = [0, 96], sizes = [8, 32], strides = [1, 1]} : vector<8x128xf32> to vector<8x32xf32>
    %568 = arith.mulf %565, %544 : vector<8x32xf32>
    %569 = arith.mulf %564, %566 : vector<8x32xf32>
    %570 = arith.addf %568, %569 : vector<8x32xf32>
    %571 = math.tanh %570 : vector<8x32xf32>
    %572 = arith.mulf %567, %571 : vector<8x32xf32>
    %573 = arith.index_cast %546 : i32 to index
    %c0_222 = arith.constant 0 : index
    %574 = vector.load %arg18[%573, %c0_222] : memref<128x32xf32, #tpu.memory_space<vmem>>, vector<8x32xf32>
    tpu.vector_store %arg18[%573, %c0_222], %572 {strides = array<i32>} : memref<128x32xf32, #tpu.memory_space<vmem>>, vector<8x32xf32>,
    %c1_i32_223 = arith.constant 1 : i32
    %c8_i32_224 = arith.constant 8 : i32
    %575 = arith.muli %c1_i32_223, %c8_i32_224 : i32
    %576 = tpu.assume_multiple %575, 8 : i32
    %c15_i32_225 = arith.constant 15 : i32
    %577 = arith.subi %c15_i32_225, %c1_i32_223 : i32
    %c8_i32_226 = arith.constant 8 : i32
    %578 = arith.muli %577, %c8_i32_226 : i32
    %579 = tpu.assume_multiple %578, 8 : i32
    %580 = arith.index_cast %576 : i32 to index
    %c0_227 = arith.constant 0 : index
    %581 = vector.load %arg20[%580, %c0_227] : memref<128x128xf32, #tpu.memory_space<vmem>>, vector<8x128xf32>
    %582 = arith.index_cast %579 : i32 to index
    %c0_228 = arith.constant 0 : index
    %583 = vector.load %arg21[%582, %c0_228] : memref<128x128xf32, #tpu.memory_space<vmem>>, vector<8x128xf32>
    %584 = arith.addf %581, %583 : vector<8x128xf32>
    %585 = arith.truncf %572 : vector<8x32xf32> to vector<8x32xbf16>
    %cst_229 = arith.constant dense<0.000000e+00> : vector<8x128xf32>
    %586 = tpu.matmul %585, %542, %cst_229 {dimension_numbers = #tpu.dot_dimension_numbers<[1], [0], [0], [1], [0, 0, 1, 1], [], []>} : vector<8x32xbf16>, vector<32x128xbf16>, vector<8x128xf32> -> vector<8x128xf32>
    %587 = arith.addf %584, %586 : vector<8x128xf32>
    %588 = arith.negf %587 : vector<8x128xf32>
    %589 = math.exp %588 : vector<8x128xf32>
    %cst_230 = arith.constant 1.000000e+00 : f32
    %590 = vector.broadcast %cst_230 : f32 to vector<8x128xf32>
    %591 = arith.addf %590, %589 : vector<8x128xf32>
    %592 = arith.divf %590, %591 : vector<8x128xf32>
    %593 = math.tanh %587 : vector<8x128xf32>
    %594 = vector.extract_strided_slice %592 {offsets = [0, 0], sizes = [8, 32], strides = [1, 1]} : vector<8x128xf32> to vector<8x32xf32>
    %595 = vector.extract_strided_slice %592 {offsets = [0, 32], sizes = [8, 32], strides = [1, 1]} : vector<8x128xf32> to vector<8x32xf32>
    %596 = vector.extract_strided_slice %593 {offsets = [0, 64], sizes = [8, 32], strides = [1, 1]} : vector<8x128xf32> to vector<8x32xf32>
    %597 = vector.extract_strided_slice %592 {offsets = [0, 96], sizes = [8, 32], strides = [1, 1]} : vector<8x128xf32> to vector<8x32xf32>
    %598 = arith.mulf %595, %570 : vector<8x32xf32>
    %599 = arith.mulf %594, %596 : vector<8x32xf32>
    %600 = arith.addf %598, %599 : vector<8x32xf32>
    %601 = math.tanh %600 : vector<8x32xf32>
    %602 = arith.mulf %597, %601 : vector<8x32xf32>
    %603 = arith.index_cast %576 : i32 to index
    %c0_231 = arith.constant 0 : index
    %604 = vector.load %arg18[%603, %c0_231] : memref<128x32xf32, #tpu.memory_space<vmem>>, vector<8x32xf32>
    tpu.vector_store %arg18[%603, %c0_231], %602 {strides = array<i32>} : memref<128x32xf32, #tpu.memory_space<vmem>>, vector<8x32xf32>,
    %c2_i32_232 = arith.constant 2 : i32
    %c8_i32_233 = arith.constant 8 : i32
    %605 = arith.muli %c2_i32_232, %c8_i32_233 : i32
    %606 = tpu.assume_multiple %605, 8 : i32
    %c15_i32_234 = arith.constant 15 : i32
    %607 = arith.subi %c15_i32_234, %c2_i32_232 : i32
    %c8_i32_235 = arith.constant 8 : i32
    %608 = arith.muli %607, %c8_i32_235 : i32
    %609 = tpu.assume_multiple %608, 8 : i32
    %610 = arith.index_cast %606 : i32 to index
    %c0_236 = arith.constant 0 : index
    %611 = vector.load %arg20[%610, %c0_236] : memref<128x128xf32, #tpu.memory_space<vmem>>, vector<8x128xf32>
    %612 = arith.index_cast %609 : i32 to index
    %c0_237 = arith.constant 0 : index
    %613 = vector.load %arg21[%612, %c0_237] : memref<128x128xf32, #tpu.memory_space<vmem>>, vector<8x128xf32>
    %614 = arith.addf %611, %613 : vector<8x128xf32>
    %615 = arith.truncf %602 : vector<8x32xf32> to vector<8x32xbf16>
    %cst_238 = arith.constant dense<0.000000e+00> : vector<8x128xf32>
    %616 = tpu.matmul %615, %542, %cst_238 {dimension_numbers = #tpu.dot_dimension_numbers<[1], [0], [0], [1], [0, 0, 1, 1], [], []>} : vector<8x32xbf16>, vector<32x128xbf16>, vector<8x128xf32> -> vector<8x128xf32>
    %617 = arith.addf %614, %616 : vector<8x128xf32>
    %618 = arith.negf %617 : vector<8x128xf32>
    %619 = math.exp %618 : vector<8x128xf32>
    %cst_239 = arith.constant 1.000000e+00 : f32
    %620 = vector.broadcast %cst_239 : f32 to vector<8x128xf32>
    %621 = arith.addf %620, %619 : vector<8x128xf32>
    %622 = arith.divf %620, %621 : vector<8x128xf32>
    %623 = math.tanh %617 : vector<8x128xf32>
    %624 = vector.extract_strided_slice %622 {offsets = [0, 0], sizes = [8, 32], strides = [1, 1]} : vector<8x128xf32> to vector<8x32xf32>
    %625 = vector.extract_strided_slice %622 {offsets = [0, 32], sizes = [8, 32], strides = [1, 1]} : vector<8x128xf32> to vector<8x32xf32>
    %626 = vector.extract_strided_slice %623 {offsets = [0, 64], sizes = [8, 32], strides = [1, 1]} : vector<8x128xf32> to vector<8x32xf32>
    %627 = vector.extract_strided_slice %622 {offsets = [0, 96], sizes = [8, 32], strides = [1, 1]} : vector<8x128xf32> to vector<8x32xf32>
    %628 = arith.mulf %625, %600 : vector<8x32xf32>
    %629 = arith.mulf %624, %626 : vector<8x32xf32>
    %630 = arith.addf %628, %629 : vector<8x32xf32>
    %631 = math.tanh %630 : vector<8x32xf32>
    %632 = arith.mulf %627, %631 : vector<8x32xf32>
    %633 = arith.index_cast %606 : i32 to index
    %c0_240 = arith.constant 0 : index
    %634 = vector.load %arg18[%633, %c0_240] : memref<128x32xf32, #tpu.memory_space<vmem>>, vector<8x32xf32>
    tpu.vector_store %arg18[%633, %c0_240], %632 {strides = array<i32>} : memref<128x32xf32, #tpu.memory_space<vmem>>, vector<8x32xf32>,
    %c3_i32_241 = arith.constant 3 : i32
    %c8_i32_242 = arith.constant 8 : i32
    %635 = arith.muli %c3_i32_241, %c8_i32_242 : i32
    %636 = tpu.assume_multiple %635, 8 : i32
    %c15_i32_243 = arith.constant 15 : i32
    %637 = arith.subi %c15_i32_243, %c3_i32_241 : i32
    %c8_i32_244 = arith.constant 8 : i32
    %638 = arith.muli %637, %c8_i32_244 : i32
    %639 = tpu.assume_multiple %638, 8 : i32
    %640 = arith.index_cast %636 : i32 to index
    %c0_245 = arith.constant 0 : index
    %641 = vector.load %arg20[%640, %c0_245] : memref<128x128xf32, #tpu.memory_space<vmem>>, vector<8x128xf32>
    %642 = arith.index_cast %639 : i32 to index
    %c0_246 = arith.constant 0 : index
    %643 = vector.load %arg21[%642, %c0_246] : memref<128x128xf32, #tpu.memory_space<vmem>>, vector<8x128xf32>
    %644 = arith.addf %641, %643 : vector<8x128xf32>
    %645 = arith.truncf %632 : vector<8x32xf32> to vector<8x32xbf16>
    %cst_247 = arith.constant dense<0.000000e+00> : vector<8x128xf32>
    %646 = tpu.matmul %645, %542, %cst_247 {dimension_numbers = #tpu.dot_dimension_numbers<[1], [0], [0], [1], [0, 0, 1, 1], [], []>} : vector<8x32xbf16>, vector<32x128xbf16>, vector<8x128xf32> -> vector<8x128xf32>
    %647 = arith.addf %644, %646 : vector<8x128xf32>
    %648 = arith.negf %647 : vector<8x128xf32>
    %649 = math.exp %648 : vector<8x128xf32>
    %cst_248 = arith.constant 1.000000e+00 : f32
    %650 = vector.broadcast %cst_248 : f32 to vector<8x128xf32>
    %651 = arith.addf %650, %649 : vector<8x128xf32>
    %652 = arith.divf %650, %651 : vector<8x128xf32>
    %653 = math.tanh %647 : vector<8x128xf32>
    %654 = vector.extract_strided_slice %652 {offsets = [0, 0], sizes = [8, 32], strides = [1, 1]} : vector<8x128xf32> to vector<8x32xf32>
    %655 = vector.extract_strided_slice %652 {offsets = [0, 32], sizes = [8, 32], strides = [1, 1]} : vector<8x128xf32> to vector<8x32xf32>
    %656 = vector.extract_strided_slice %653 {offsets = [0, 64], sizes = [8, 32], strides = [1, 1]} : vector<8x128xf32> to vector<8x32xf32>
    %657 = vector.extract_strided_slice %652 {offsets = [0, 96], sizes = [8, 32], strides = [1, 1]} : vector<8x128xf32> to vector<8x32xf32>
    %658 = arith.mulf %655, %630 : vector<8x32xf32>
    %659 = arith.mulf %654, %656 : vector<8x32xf32>
    %660 = arith.addf %658, %659 : vector<8x32xf32>
    %661 = math.tanh %660 : vector<8x32xf32>
    %662 = arith.mulf %657, %661 : vector<8x32xf32>
    %663 = arith.index_cast %636 : i32 to index
    %c0_249 = arith.constant 0 : index
    %664 = vector.load %arg18[%663, %c0_249] : memref<128x32xf32, #tpu.memory_space<vmem>>, vector<8x32xf32>
    tpu.vector_store %arg18[%663, %c0_249], %662 {strides = array<i32>} : memref<128x32xf32, #tpu.memory_space<vmem>>, vector<8x32xf32>,
    %c4_i32_250 = arith.constant 4 : i32
    %c8_i32_251 = arith.constant 8 : i32
    %665 = arith.muli %c4_i32_250, %c8_i32_251 : i32
    %666 = tpu.assume_multiple %665, 8 : i32
    %c15_i32_252 = arith.constant 15 : i32
    %667 = arith.subi %c15_i32_252, %c4_i32_250 : i32
    %c8_i32_253 = arith.constant 8 : i32
    %668 = arith.muli %667, %c8_i32_253 : i32
    %669 = tpu.assume_multiple %668, 8 : i32
    %670 = arith.index_cast %666 : i32 to index
    %c0_254 = arith.constant 0 : index
    %671 = vector.load %arg20[%670, %c0_254] : memref<128x128xf32, #tpu.memory_space<vmem>>, vector<8x128xf32>
    %672 = arith.index_cast %669 : i32 to index
    %c0_255 = arith.constant 0 : index
    %673 = vector.load %arg21[%672, %c0_255] : memref<128x128xf32, #tpu.memory_space<vmem>>, vector<8x128xf32>
    %674 = arith.addf %671, %673 : vector<8x128xf32>
    %675 = arith.truncf %662 : vector<8x32xf32> to vector<8x32xbf16>
    %cst_256 = arith.constant dense<0.000000e+00> : vector<8x128xf32>
    %676 = tpu.matmul %675, %542, %cst_256 {dimension_numbers = #tpu.dot_dimension_numbers<[1], [0], [0], [1], [0, 0, 1, 1], [], []>} : vector<8x32xbf16>, vector<32x128xbf16>, vector<8x128xf32> -> vector<8x128xf32>
    %677 = arith.addf %674, %676 : vector<8x128xf32>
    %678 = arith.negf %677 : vector<8x128xf32>
    %679 = math.exp %678 : vector<8x128xf32>
    %cst_257 = arith.constant 1.000000e+00 : f32
    %680 = vector.broadcast %cst_257 : f32 to vector<8x128xf32>
    %681 = arith.addf %680, %679 : vector<8x128xf32>
    %682 = arith.divf %680, %681 : vector<8x128xf32>
    %683 = math.tanh %677 : vector<8x128xf32>
    %684 = vector.extract_strided_slice %682 {offsets = [0, 0], sizes = [8, 32], strides = [1, 1]} : vector<8x128xf32> to vector<8x32xf32>
    %685 = vector.extract_strided_slice %682 {offsets = [0, 32], sizes = [8, 32], strides = [1, 1]} : vector<8x128xf32> to vector<8x32xf32>
    %686 = vector.extract_strided_slice %683 {offsets = [0, 64], sizes = [8, 32], strides = [1, 1]} : vector<8x128xf32> to vector<8x32xf32>
    %687 = vector.extract_strided_slice %682 {offsets = [0, 96], sizes = [8, 32], strides = [1, 1]} : vector<8x128xf32> to vector<8x32xf32>
    %688 = arith.mulf %685, %660 : vector<8x32xf32>
    %689 = arith.mulf %684, %686 : vector<8x32xf32>
    %690 = arith.addf %688, %689 : vector<8x32xf32>
    %691 = math.tanh %690 : vector<8x32xf32>
    %692 = arith.mulf %687, %691 : vector<8x32xf32>
    %693 = arith.index_cast %666 : i32 to index
    %c0_258 = arith.constant 0 : index
    %694 = vector.load %arg18[%693, %c0_258] : memref<128x32xf32, #tpu.memory_space<vmem>>, vector<8x32xf32>
    tpu.vector_store %arg18[%693, %c0_258], %692 {strides = array<i32>} : memref<128x32xf32, #tpu.memory_space<vmem>>, vector<8x32xf32>,
    %c5_i32_259 = arith.constant 5 : i32
    %c8_i32_260 = arith.constant 8 : i32
    %695 = arith.muli %c5_i32_259, %c8_i32_260 : i32
    %696 = tpu.assume_multiple %695, 8 : i32
    %c15_i32_261 = arith.constant 15 : i32
    %697 = arith.subi %c15_i32_261, %c5_i32_259 : i32
    %c8_i32_262 = arith.constant 8 : i32
    %698 = arith.muli %697, %c8_i32_262 : i32
    %699 = tpu.assume_multiple %698, 8 : i32
    %700 = arith.index_cast %696 : i32 to index
    %c0_263 = arith.constant 0 : index
    %701 = vector.load %arg20[%700, %c0_263] : memref<128x128xf32, #tpu.memory_space<vmem>>, vector<8x128xf32>
    %702 = arith.index_cast %699 : i32 to index
    %c0_264 = arith.constant 0 : index
    %703 = vector.load %arg21[%702, %c0_264] : memref<128x128xf32, #tpu.memory_space<vmem>>, vector<8x128xf32>
    %704 = arith.addf %701, %703 : vector<8x128xf32>
    %705 = arith.truncf %692 : vector<8x32xf32> to vector<8x32xbf16>
    %cst_265 = arith.constant dense<0.000000e+00> : vector<8x128xf32>
    %706 = tpu.matmul %705, %542, %cst_265 {dimension_numbers = #tpu.dot_dimension_numbers<[1], [0], [0], [1], [0, 0, 1, 1], [], []>} : vector<8x32xbf16>, vector<32x128xbf16>, vector<8x128xf32> -> vector<8x128xf32>
    %707 = arith.addf %704, %706 : vector<8x128xf32>
    %708 = arith.negf %707 : vector<8x128xf32>
    %709 = math.exp %708 : vector<8x128xf32>
    %cst_266 = arith.constant 1.000000e+00 : f32
    %710 = vector.broadcast %cst_266 : f32 to vector<8x128xf32>
    %711 = arith.addf %710, %709 : vector<8x128xf32>
    %712 = arith.divf %710, %711 : vector<8x128xf32>
    %713 = math.tanh %707 : vector<8x128xf32>
    %714 = vector.extract_strided_slice %712 {offsets = [0, 0], sizes = [8, 32], strides = [1, 1]} : vector<8x128xf32> to vector<8x32xf32>
    %715 = vector.extract_strided_slice %712 {offsets = [0, 32], sizes = [8, 32], strides = [1, 1]} : vector<8x128xf32> to vector<8x32xf32>
    %716 = vector.extract_strided_slice %713 {offsets = [0, 64], sizes = [8, 32], strides = [1, 1]} : vector<8x128xf32> to vector<8x32xf32>
    %717 = vector.extract_strided_slice %712 {offsets = [0, 96], sizes = [8, 32], strides = [1, 1]} : vector<8x128xf32> to vector<8x32xf32>
    %718 = arith.mulf %715, %690 : vector<8x32xf32>
    %719 = arith.mulf %714, %716 : vector<8x32xf32>
    %720 = arith.addf %718, %719 : vector<8x32xf32>
    %721 = math.tanh %720 : vector<8x32xf32>
    %722 = arith.mulf %717, %721 : vector<8x32xf32>
    %723 = arith.index_cast %696 : i32 to index
    %c0_267 = arith.constant 0 : index
    %724 = vector.load %arg18[%723, %c0_267] : memref<128x32xf32, #tpu.memory_space<vmem>>, vector<8x32xf32>
    tpu.vector_store %arg18[%723, %c0_267], %722 {strides = array<i32>} : memref<128x32xf32, #tpu.memory_space<vmem>>, vector<8x32xf32>,
    %c6_i32_268 = arith.constant 6 : i32
    %c8_i32_269 = arith.constant 8 : i32
    %725 = arith.muli %c6_i32_268, %c8_i32_269 : i32
    %726 = tpu.assume_multiple %725, 8 : i32
    %c15_i32_270 = arith.constant 15 : i32
    %727 = arith.subi %c15_i32_270, %c6_i32_268 : i32
    %c8_i32_271 = arith.constant 8 : i32
    %728 = arith.muli %727, %c8_i32_271 : i32
    %729 = tpu.assume_multiple %728, 8 : i32
    %730 = arith.index_cast %726 : i32 to index
    %c0_272 = arith.constant 0 : index
    %731 = vector.load %arg20[%730, %c0_272] : memref<128x128xf32, #tpu.memory_space<vmem>>, vector<8x128xf32>
    %732 = arith.index_cast %729 : i32 to index
    %c0_273 = arith.constant 0 : index
    %733 = vector.load %arg21[%732, %c0_273] : memref<128x128xf32, #tpu.memory_space<vmem>>, vector<8x128xf32>
    %734 = arith.addf %731, %733 : vector<8x128xf32>
    %735 = arith.truncf %722 : vector<8x32xf32> to vector<8x32xbf16>
    %cst_274 = arith.constant dense<0.000000e+00> : vector<8x128xf32>
    %736 = tpu.matmul %735, %542, %cst_274 {dimension_numbers = #tpu.dot_dimension_numbers<[1], [0], [0], [1], [0, 0, 1, 1], [], []>} : vector<8x32xbf16>, vector<32x128xbf16>, vector<8x128xf32> -> vector<8x128xf32>
    %737 = arith.addf %734, %736 : vector<8x128xf32>
    %738 = arith.negf %737 : vector<8x128xf32>
    %739 = math.exp %738 : vector<8x128xf32>
    %cst_275 = arith.constant 1.000000e+00 : f32
    %740 = vector.broadcast %cst_275 : f32 to vector<8x128xf32>
    %741 = arith.addf %740, %739 : vector<8x128xf32>
    %742 = arith.divf %740, %741 : vector<8x128xf32>
    %743 = math.tanh %737 : vector<8x128xf32>
    %744 = vector.extract_strided_slice %742 {offsets = [0, 0], sizes = [8, 32], strides = [1, 1]} : vector<8x128xf32> to vector<8x32xf32>
    %745 = vector.extract_strided_slice %742 {offsets = [0, 32], sizes = [8, 32], strides = [1, 1]} : vector<8x128xf32> to vector<8x32xf32>
    %746 = vector.extract_strided_slice %743 {offsets = [0, 64], sizes = [8, 32], strides = [1, 1]} : vector<8x128xf32> to vector<8x32xf32>
    %747 = vector.extract_strided_slice %742 {offsets = [0, 96], sizes = [8, 32], strides = [1, 1]} : vector<8x128xf32> to vector<8x32xf32>
    %748 = arith.mulf %745, %720 : vector<8x32xf32>
    %749 = arith.mulf %744, %746 : vector<8x32xf32>
    %750 = arith.addf %748, %749 : vector<8x32xf32>
    %751 = math.tanh %750 : vector<8x32xf32>
    %752 = arith.mulf %747, %751 : vector<8x32xf32>
    %753 = arith.index_cast %726 : i32 to index
    %c0_276 = arith.constant 0 : index
    %754 = vector.load %arg18[%753, %c0_276] : memref<128x32xf32, #tpu.memory_space<vmem>>, vector<8x32xf32>
    tpu.vector_store %arg18[%753, %c0_276], %752 {strides = array<i32>} : memref<128x32xf32, #tpu.memory_space<vmem>>, vector<8x32xf32>,
    %c7_i32_277 = arith.constant 7 : i32
    %c8_i32_278 = arith.constant 8 : i32
    %755 = arith.muli %c7_i32_277, %c8_i32_278 : i32
    %756 = tpu.assume_multiple %755, 8 : i32
    %c15_i32_279 = arith.constant 15 : i32
    %757 = arith.subi %c15_i32_279, %c7_i32_277 : i32
    %c8_i32_280 = arith.constant 8 : i32
    %758 = arith.muli %757, %c8_i32_280 : i32
    %759 = tpu.assume_multiple %758, 8 : i32
    %760 = arith.index_cast %756 : i32 to index
    %c0_281 = arith.constant 0 : index
    %761 = vector.load %arg20[%760, %c0_281] : memref<128x128xf32, #tpu.memory_space<vmem>>, vector<8x128xf32>
    %762 = arith.index_cast %759 : i32 to index
    %c0_282 = arith.constant 0 : index
    %763 = vector.load %arg21[%762, %c0_282] : memref<128x128xf32, #tpu.memory_space<vmem>>, vector<8x128xf32>
    %764 = arith.addf %761, %763 : vector<8x128xf32>
    %765 = arith.truncf %752 : vector<8x32xf32> to vector<8x32xbf16>
    %cst_283 = arith.constant dense<0.000000e+00> : vector<8x128xf32>
    %766 = tpu.matmul %765, %542, %cst_283 {dimension_numbers = #tpu.dot_dimension_numbers<[1], [0], [0], [1], [0, 0, 1, 1], [], []>} : vector<8x32xbf16>, vector<32x128xbf16>, vector<8x128xf32> -> vector<8x128xf32>
    %767 = arith.addf %764, %766 : vector<8x128xf32>
    %768 = arith.negf %767 : vector<8x128xf32>
    %769 = math.exp %768 : vector<8x128xf32>
    %cst_284 = arith.constant 1.000000e+00 : f32
    %770 = vector.broadcast %cst_284 : f32 to vector<8x128xf32>
    %771 = arith.addf %770, %769 : vector<8x128xf32>
    %772 = arith.divf %770, %771 : vector<8x128xf32>
    %773 = math.tanh %767 : vector<8x128xf32>
    %774 = vector.extract_strided_slice %772 {offsets = [0, 0], sizes = [8, 32], strides = [1, 1]} : vector<8x128xf32> to vector<8x32xf32>
    %775 = vector.extract_strided_slice %772 {offsets = [0, 32], sizes = [8, 32], strides = [1, 1]} : vector<8x128xf32> to vector<8x32xf32>
    %776 = vector.extract_strided_slice %773 {offsets = [0, 64], sizes = [8, 32], strides = [1, 1]} : vector<8x128xf32> to vector<8x32xf32>
    %777 = vector.extract_strided_slice %772 {offsets = [0, 96], sizes = [8, 32], strides = [1, 1]} : vector<8x128xf32> to vector<8x32xf32>
    %778 = arith.mulf %775, %750 : vector<8x32xf32>
    %779 = arith.mulf %774, %776 : vector<8x32xf32>
    %780 = arith.addf %778, %779 : vector<8x32xf32>
    %781 = math.tanh %780 : vector<8x32xf32>
    %782 = arith.mulf %777, %781 : vector<8x32xf32>
    %783 = arith.index_cast %756 : i32 to index
    %c0_285 = arith.constant 0 : index
    %784 = vector.load %arg18[%783, %c0_285] : memref<128x32xf32, #tpu.memory_space<vmem>>, vector<8x32xf32>
    tpu.vector_store %arg18[%783, %c0_285], %782 {strides = array<i32>} : memref<128x32xf32, #tpu.memory_space<vmem>>, vector<8x32xf32>,
    %c8_i32_286 = arith.constant 8 : i32
    %c8_i32_287 = arith.constant 8 : i32
    %785 = arith.muli %c8_i32_286, %c8_i32_287 : i32
    %786 = tpu.assume_multiple %785, 8 : i32
    %c15_i32_288 = arith.constant 15 : i32
    %787 = arith.subi %c15_i32_288, %c8_i32_286 : i32
    %c8_i32_289 = arith.constant 8 : i32
    %788 = arith.muli %787, %c8_i32_289 : i32
    %789 = tpu.assume_multiple %788, 8 : i32
    %790 = arith.index_cast %786 : i32 to index
    %c0_290 = arith.constant 0 : index
    %791 = vector.load %arg20[%790, %c0_290] : memref<128x128xf32, #tpu.memory_space<vmem>>, vector<8x128xf32>
    %792 = arith.index_cast %789 : i32 to index
    %c0_291 = arith.constant 0 : index
    %793 = vector.load %arg21[%792, %c0_291] : memref<128x128xf32, #tpu.memory_space<vmem>>, vector<8x128xf32>
    %794 = arith.addf %791, %793 : vector<8x128xf32>
    %795 = arith.truncf %782 : vector<8x32xf32> to vector<8x32xbf16>
    %cst_292 = arith.constant dense<0.000000e+00> : vector<8x128xf32>
    %796 = tpu.matmul %795, %542, %cst_292 {dimension_numbers = #tpu.dot_dimension_numbers<[1], [0], [0], [1], [0, 0, 1, 1], [], []>} : vector<8x32xbf16>, vector<32x128xbf16>, vector<8x128xf32> -> vector<8x128xf32>
    %797 = arith.addf %794, %796 : vector<8x128xf32>
    %798 = arith.negf %797 : vector<8x128xf32>
    %799 = math.exp %798 : vector<8x128xf32>
    %cst_293 = arith.constant 1.000000e+00 : f32
    %800 = vector.broadcast %cst_293 : f32 to vector<8x128xf32>
    %801 = arith.addf %800, %799 : vector<8x128xf32>
    %802 = arith.divf %800, %801 : vector<8x128xf32>
    %803 = math.tanh %797 : vector<8x128xf32>
    %804 = vector.extract_strided_slice %802 {offsets = [0, 0], sizes = [8, 32], strides = [1, 1]} : vector<8x128xf32> to vector<8x32xf32>
    %805 = vector.extract_strided_slice %802 {offsets = [0, 32], sizes = [8, 32], strides = [1, 1]} : vector<8x128xf32> to vector<8x32xf32>
    %806 = vector.extract_strided_slice %803 {offsets = [0, 64], sizes = [8, 32], strides = [1, 1]} : vector<8x128xf32> to vector<8x32xf32>
    %807 = vector.extract_strided_slice %802 {offsets = [0, 96], sizes = [8, 32], strides = [1, 1]} : vector<8x128xf32> to vector<8x32xf32>
    %808 = arith.mulf %805, %780 : vector<8x32xf32>
    %809 = arith.mulf %804, %806 : vector<8x32xf32>
    %810 = arith.addf %808, %809 : vector<8x32xf32>
    %811 = math.tanh %810 : vector<8x32xf32>
    %812 = arith.mulf %807, %811 : vector<8x32xf32>
    %813 = arith.index_cast %786 : i32 to index
    %c0_294 = arith.constant 0 : index
    %814 = vector.load %arg18[%813, %c0_294] : memref<128x32xf32, #tpu.memory_space<vmem>>, vector<8x32xf32>
    tpu.vector_store %arg18[%813, %c0_294], %812 {strides = array<i32>} : memref<128x32xf32, #tpu.memory_space<vmem>>, vector<8x32xf32>,
    %c9_i32_295 = arith.constant 9 : i32
    %c8_i32_296 = arith.constant 8 : i32
    %815 = arith.muli %c9_i32_295, %c8_i32_296 : i32
    %816 = tpu.assume_multiple %815, 8 : i32
    %c15_i32_297 = arith.constant 15 : i32
    %817 = arith.subi %c15_i32_297, %c9_i32_295 : i32
    %c8_i32_298 = arith.constant 8 : i32
    %818 = arith.muli %817, %c8_i32_298 : i32
    %819 = tpu.assume_multiple %818, 8 : i32
    %820 = arith.index_cast %816 : i32 to index
    %c0_299 = arith.constant 0 : index
    %821 = vector.load %arg20[%820, %c0_299] : memref<128x128xf32, #tpu.memory_space<vmem>>, vector<8x128xf32>
    %822 = arith.index_cast %819 : i32 to index
    %c0_300 = arith.constant 0 : index
    %823 = vector.load %arg21[%822, %c0_300] : memref<128x128xf32, #tpu.memory_space<vmem>>, vector<8x128xf32>
    %824 = arith.addf %821, %823 : vector<8x128xf32>
    %825 = arith.truncf %812 : vector<8x32xf32> to vector<8x32xbf16>
    %cst_301 = arith.constant dense<0.000000e+00> : vector<8x128xf32>
    %826 = tpu.matmul %825, %542, %cst_301 {dimension_numbers = #tpu.dot_dimension_numbers<[1], [0], [0], [1], [0, 0, 1, 1], [], []>} : vector<8x32xbf16>, vector<32x128xbf16>, vector<8x128xf32> -> vector<8x128xf32>
    %827 = arith.addf %824, %826 : vector<8x128xf32>
    %828 = arith.negf %827 : vector<8x128xf32>
    %829 = math.exp %828 : vector<8x128xf32>
    %cst_302 = arith.constant 1.000000e+00 : f32
    %830 = vector.broadcast %cst_302 : f32 to vector<8x128xf32>
    %831 = arith.addf %830, %829 : vector<8x128xf32>
    %832 = arith.divf %830, %831 : vector<8x128xf32>
    %833 = math.tanh %827 : vector<8x128xf32>
    %834 = vector.extract_strided_slice %832 {offsets = [0, 0], sizes = [8, 32], strides = [1, 1]} : vector<8x128xf32> to vector<8x32xf32>
    %835 = vector.extract_strided_slice %832 {offsets = [0, 32], sizes = [8, 32], strides = [1, 1]} : vector<8x128xf32> to vector<8x32xf32>
    %836 = vector.extract_strided_slice %833 {offsets = [0, 64], sizes = [8, 32], strides = [1, 1]} : vector<8x128xf32> to vector<8x32xf32>
    %837 = vector.extract_strided_slice %832 {offsets = [0, 96], sizes = [8, 32], strides = [1, 1]} : vector<8x128xf32> to vector<8x32xf32>
    %838 = arith.mulf %835, %810 : vector<8x32xf32>
    %839 = arith.mulf %834, %836 : vector<8x32xf32>
    %840 = arith.addf %838, %839 : vector<8x32xf32>
    %841 = math.tanh %840 : vector<8x32xf32>
    %842 = arith.mulf %837, %841 : vector<8x32xf32>
    %843 = arith.index_cast %816 : i32 to index
    %c0_303 = arith.constant 0 : index
    %844 = vector.load %arg18[%843, %c0_303] : memref<128x32xf32, #tpu.memory_space<vmem>>, vector<8x32xf32>
    tpu.vector_store %arg18[%843, %c0_303], %842 {strides = array<i32>} : memref<128x32xf32, #tpu.memory_space<vmem>>, vector<8x32xf32>,
    %c10_i32_304 = arith.constant 10 : i32
    %c8_i32_305 = arith.constant 8 : i32
    %845 = arith.muli %c10_i32_304, %c8_i32_305 : i32
    %846 = tpu.assume_multiple %845, 8 : i32
    %c15_i32_306 = arith.constant 15 : i32
    %847 = arith.subi %c15_i32_306, %c10_i32_304 : i32
    %c8_i32_307 = arith.constant 8 : i32
    %848 = arith.muli %847, %c8_i32_307 : i32
    %849 = tpu.assume_multiple %848, 8 : i32
    %850 = arith.index_cast %846 : i32 to index
    %c0_308 = arith.constant 0 : index
    %851 = vector.load %arg20[%850, %c0_308] : memref<128x128xf32, #tpu.memory_space<vmem>>, vector<8x128xf32>
    %852 = arith.index_cast %849 : i32 to index
    %c0_309 = arith.constant 0 : index
    %853 = vector.load %arg21[%852, %c0_309] : memref<128x128xf32, #tpu.memory_space<vmem>>, vector<8x128xf32>
    %854 = arith.addf %851, %853 : vector<8x128xf32>
    %855 = arith.truncf %842 : vector<8x32xf32> to vector<8x32xbf16>
    %cst_310 = arith.constant dense<0.000000e+00> : vector<8x128xf32>
    %856 = tpu.matmul %855, %542, %cst_310 {dimension_numbers = #tpu.dot_dimension_numbers<[1], [0], [0], [1], [0, 0, 1, 1], [], []>} : vector<8x32xbf16>, vector<32x128xbf16>, vector<8x128xf32> -> vector<8x128xf32>
    %857 = arith.addf %854, %856 : vector<8x128xf32>
    %858 = arith.negf %857 : vector<8x128xf32>
    %859 = math.exp %858 : vector<8x128xf32>
    %cst_311 = arith.constant 1.000000e+00 : f32
    %860 = vector.broadcast %cst_311 : f32 to vector<8x128xf32>
    %861 = arith.addf %860, %859 : vector<8x128xf32>
    %862 = arith.divf %860, %861 : vector<8x128xf32>
    %863 = math.tanh %857 : vector<8x128xf32>
    %864 = vector.extract_strided_slice %862 {offsets = [0, 0], sizes = [8, 32], strides = [1, 1]} : vector<8x128xf32> to vector<8x32xf32>
    %865 = vector.extract_strided_slice %862 {offsets = [0, 32], sizes = [8, 32], strides = [1, 1]} : vector<8x128xf32> to vector<8x32xf32>
    %866 = vector.extract_strided_slice %863 {offsets = [0, 64], sizes = [8, 32], strides = [1, 1]} : vector<8x128xf32> to vector<8x32xf32>
    %867 = vector.extract_strided_slice %862 {offsets = [0, 96], sizes = [8, 32], strides = [1, 1]} : vector<8x128xf32> to vector<8x32xf32>
    %868 = arith.mulf %865, %840 : vector<8x32xf32>
    %869 = arith.mulf %864, %866 : vector<8x32xf32>
    %870 = arith.addf %868, %869 : vector<8x32xf32>
    %871 = math.tanh %870 : vector<8x32xf32>
    %872 = arith.mulf %867, %871 : vector<8x32xf32>
    %873 = arith.index_cast %846 : i32 to index
    %c0_312 = arith.constant 0 : index
    %874 = vector.load %arg18[%873, %c0_312] : memref<128x32xf32, #tpu.memory_space<vmem>>, vector<8x32xf32>
    tpu.vector_store %arg18[%873, %c0_312], %872 {strides = array<i32>} : memref<128x32xf32, #tpu.memory_space<vmem>>, vector<8x32xf32>,
    %c11_i32_313 = arith.constant 11 : i32
    %c8_i32_314 = arith.constant 8 : i32
    %875 = arith.muli %c11_i32_313, %c8_i32_314 : i32
    %876 = tpu.assume_multiple %875, 8 : i32
    %c15_i32_315 = arith.constant 15 : i32
    %877 = arith.subi %c15_i32_315, %c11_i32_313 : i32
    %c8_i32_316 = arith.constant 8 : i32
    %878 = arith.muli %877, %c8_i32_316 : i32
    %879 = tpu.assume_multiple %878, 8 : i32
    %880 = arith.index_cast %876 : i32 to index
    %c0_317 = arith.constant 0 : index
    %881 = vector.load %arg20[%880, %c0_317] : memref<128x128xf32, #tpu.memory_space<vmem>>, vector<8x128xf32>
    %882 = arith.index_cast %879 : i32 to index
    %c0_318 = arith.constant 0 : index
    %883 = vector.load %arg21[%882, %c0_318] : memref<128x128xf32, #tpu.memory_space<vmem>>, vector<8x128xf32>
    %884 = arith.addf %881, %883 : vector<8x128xf32>
    %885 = arith.truncf %872 : vector<8x32xf32> to vector<8x32xbf16>
    %cst_319 = arith.constant dense<0.000000e+00> : vector<8x128xf32>
    %886 = tpu.matmul %885, %542, %cst_319 {dimension_numbers = #tpu.dot_dimension_numbers<[1], [0], [0], [1], [0, 0, 1, 1], [], []>} : vector<8x32xbf16>, vector<32x128xbf16>, vector<8x128xf32> -> vector<8x128xf32>
    %887 = arith.addf %884, %886 : vector<8x128xf32>
    %888 = arith.negf %887 : vector<8x128xf32>
    %889 = math.exp %888 : vector<8x128xf32>
    %cst_320 = arith.constant 1.000000e+00 : f32
    %890 = vector.broadcast %cst_320 : f32 to vector<8x128xf32>
    %891 = arith.addf %890, %889 : vector<8x128xf32>
    %892 = arith.divf %890, %891 : vector<8x128xf32>
    %893 = math.tanh %887 : vector<8x128xf32>
    %894 = vector.extract_strided_slice %892 {offsets = [0, 0], sizes = [8, 32], strides = [1, 1]} : vector<8x128xf32> to vector<8x32xf32>
    %895 = vector.extract_strided_slice %892 {offsets = [0, 32], sizes = [8, 32], strides = [1, 1]} : vector<8x128xf32> to vector<8x32xf32>
    %896 = vector.extract_strided_slice %893 {offsets = [0, 64], sizes = [8, 32], strides = [1, 1]} : vector<8x128xf32> to vector<8x32xf32>
    %897 = vector.extract_strided_slice %892 {offsets = [0, 96], sizes = [8, 32], strides = [1, 1]} : vector<8x128xf32> to vector<8x32xf32>
    %898 = arith.mulf %895, %870 : vector<8x32xf32>
    %899 = arith.mulf %894, %896 : vector<8x32xf32>
    %900 = arith.addf %898, %899 : vector<8x32xf32>
    %901 = math.tanh %900 : vector<8x32xf32>
    %902 = arith.mulf %897, %901 : vector<8x32xf32>
    %903 = arith.index_cast %876 : i32 to index
    %c0_321 = arith.constant 0 : index
    %904 = vector.load %arg18[%903, %c0_321] : memref<128x32xf32, #tpu.memory_space<vmem>>, vector<8x32xf32>
    tpu.vector_store %arg18[%903, %c0_321], %902 {strides = array<i32>} : memref<128x32xf32, #tpu.memory_space<vmem>>, vector<8x32xf32>,
    %c12_i32_322 = arith.constant 12 : i32
    %c8_i32_323 = arith.constant 8 : i32
    %905 = arith.muli %c12_i32_322, %c8_i32_323 : i32
    %906 = tpu.assume_multiple %905, 8 : i32
    %c15_i32_324 = arith.constant 15 : i32
    %907 = arith.subi %c15_i32_324, %c12_i32_322 : i32
    %c8_i32_325 = arith.constant 8 : i32
    %908 = arith.muli %907, %c8_i32_325 : i32
    %909 = tpu.assume_multiple %908, 8 : i32
    %910 = arith.index_cast %906 : i32 to index
    %c0_326 = arith.constant 0 : index
    %911 = vector.load %arg20[%910, %c0_326] : memref<128x128xf32, #tpu.memory_space<vmem>>, vector<8x128xf32>
    %912 = arith.index_cast %909 : i32 to index
    %c0_327 = arith.constant 0 : index
    %913 = vector.load %arg21[%912, %c0_327] : memref<128x128xf32, #tpu.memory_space<vmem>>, vector<8x128xf32>
    %914 = arith.addf %911, %913 : vector<8x128xf32>
    %915 = arith.truncf %902 : vector<8x32xf32> to vector<8x32xbf16>
    %cst_328 = arith.constant dense<0.000000e+00> : vector<8x128xf32>
    %916 = tpu.matmul %915, %542, %cst_328 {dimension_numbers = #tpu.dot_dimension_numbers<[1], [0], [0], [1], [0, 0, 1, 1], [], []>} : vector<8x32xbf16>, vector<32x128xbf16>, vector<8x128xf32> -> vector<8x128xf32>
    %917 = arith.addf %914, %916 : vector<8x128xf32>
    %918 = arith.negf %917 : vector<8x128xf32>
    %919 = math.exp %918 : vector<8x128xf32>
    %cst_329 = arith.constant 1.000000e+00 : f32
    %920 = vector.broadcast %cst_329 : f32 to vector<8x128xf32>
    %921 = arith.addf %920, %919 : vector<8x128xf32>
    %922 = arith.divf %920, %921 : vector<8x128xf32>
    %923 = math.tanh %917 : vector<8x128xf32>
    %924 = vector.extract_strided_slice %922 {offsets = [0, 0], sizes = [8, 32], strides = [1, 1]} : vector<8x128xf32> to vector<8x32xf32>
    %925 = vector.extract_strided_slice %922 {offsets = [0, 32], sizes = [8, 32], strides = [1, 1]} : vector<8x128xf32> to vector<8x32xf32>
    %926 = vector.extract_strided_slice %923 {offsets = [0, 64], sizes = [8, 32], strides = [1, 1]} : vector<8x128xf32> to vector<8x32xf32>
    %927 = vector.extract_strided_slice %922 {offsets = [0, 96], sizes = [8, 32], strides = [1, 1]} : vector<8x128xf32> to vector<8x32xf32>
    %928 = arith.mulf %925, %900 : vector<8x32xf32>
    %929 = arith.mulf %924, %926 : vector<8x32xf32>
    %930 = arith.addf %928, %929 : vector<8x32xf32>
    %931 = math.tanh %930 : vector<8x32xf32>
    %932 = arith.mulf %927, %931 : vector<8x32xf32>
    %933 = arith.index_cast %906 : i32 to index
    %c0_330 = arith.constant 0 : index
    %934 = vector.load %arg18[%933, %c0_330] : memref<128x32xf32, #tpu.memory_space<vmem>>, vector<8x32xf32>
    tpu.vector_store %arg18[%933, %c0_330], %932 {strides = array<i32>} : memref<128x32xf32, #tpu.memory_space<vmem>>, vector<8x32xf32>,
    %c13_i32_331 = arith.constant 13 : i32
    %c8_i32_332 = arith.constant 8 : i32
    %935 = arith.muli %c13_i32_331, %c8_i32_332 : i32
    %936 = tpu.assume_multiple %935, 8 : i32
    %c15_i32_333 = arith.constant 15 : i32
    %937 = arith.subi %c15_i32_333, %c13_i32_331 : i32
    %c8_i32_334 = arith.constant 8 : i32
    %938 = arith.muli %937, %c8_i32_334 : i32
    %939 = tpu.assume_multiple %938, 8 : i32
    %940 = arith.index_cast %936 : i32 to index
    %c0_335 = arith.constant 0 : index
    %941 = vector.load %arg20[%940, %c0_335] : memref<128x128xf32, #tpu.memory_space<vmem>>, vector<8x128xf32>
    %942 = arith.index_cast %939 : i32 to index
    %c0_336 = arith.constant 0 : index
    %943 = vector.load %arg21[%942, %c0_336] : memref<128x128xf32, #tpu.memory_space<vmem>>, vector<8x128xf32>
    %944 = arith.addf %941, %943 : vector<8x128xf32>
    %945 = arith.truncf %932 : vector<8x32xf32> to vector<8x32xbf16>
    %cst_337 = arith.constant dense<0.000000e+00> : vector<8x128xf32>
    %946 = tpu.matmul %945, %542, %cst_337 {dimension_numbers = #tpu.dot_dimension_numbers<[1], [0], [0], [1], [0, 0, 1, 1], [], []>} : vector<8x32xbf16>, vector<32x128xbf16>, vector<8x128xf32> -> vector<8x128xf32>
    %947 = arith.addf %944, %946 : vector<8x128xf32>
    %948 = arith.negf %947 : vector<8x128xf32>
    %949 = math.exp %948 : vector<8x128xf32>
    %cst_338 = arith.constant 1.000000e+00 : f32
    %950 = vector.broadcast %cst_338 : f32 to vector<8x128xf32>
    %951 = arith.addf %950, %949 : vector<8x128xf32>
    %952 = arith.divf %950, %951 : vector<8x128xf32>
    %953 = math.tanh %947 : vector<8x128xf32>
    %954 = vector.extract_strided_slice %952 {offsets = [0, 0], sizes = [8, 32], strides = [1, 1]} : vector<8x128xf32> to vector<8x32xf32>
    %955 = vector.extract_strided_slice %952 {offsets = [0, 32], sizes = [8, 32], strides = [1, 1]} : vector<8x128xf32> to vector<8x32xf32>
    %956 = vector.extract_strided_slice %953 {offsets = [0, 64], sizes = [8, 32], strides = [1, 1]} : vector<8x128xf32> to vector<8x32xf32>
    %957 = vector.extract_strided_slice %952 {offsets = [0, 96], sizes = [8, 32], strides = [1, 1]} : vector<8x128xf32> to vector<8x32xf32>
    %958 = arith.mulf %955, %930 : vector<8x32xf32>
    %959 = arith.mulf %954, %956 : vector<8x32xf32>
    %960 = arith.addf %958, %959 : vector<8x32xf32>
    %961 = math.tanh %960 : vector<8x32xf32>
    %962 = arith.mulf %957, %961 : vector<8x32xf32>
    %963 = arith.index_cast %936 : i32 to index
    %c0_339 = arith.constant 0 : index
    %964 = vector.load %arg18[%963, %c0_339] : memref<128x32xf32, #tpu.memory_space<vmem>>, vector<8x32xf32>
    tpu.vector_store %arg18[%963, %c0_339], %962 {strides = array<i32>} : memref<128x32xf32, #tpu.memory_space<vmem>>, vector<8x32xf32>,
    %c14_i32_340 = arith.constant 14 : i32
    %c8_i32_341 = arith.constant 8 : i32
    %965 = arith.muli %c14_i32_340, %c8_i32_341 : i32
    %966 = tpu.assume_multiple %965, 8 : i32
    %c15_i32_342 = arith.constant 15 : i32
    %967 = arith.subi %c15_i32_342, %c14_i32_340 : i32
    %c8_i32_343 = arith.constant 8 : i32
    %968 = arith.muli %967, %c8_i32_343 : i32
    %969 = tpu.assume_multiple %968, 8 : i32
    %970 = arith.index_cast %966 : i32 to index
    %c0_344 = arith.constant 0 : index
    %971 = vector.load %arg20[%970, %c0_344] : memref<128x128xf32, #tpu.memory_space<vmem>>, vector<8x128xf32>
    %972 = arith.index_cast %969 : i32 to index
    %c0_345 = arith.constant 0 : index
    %973 = vector.load %arg21[%972, %c0_345] : memref<128x128xf32, #tpu.memory_space<vmem>>, vector<8x128xf32>
    %974 = arith.addf %971, %973 : vector<8x128xf32>
    %975 = arith.truncf %962 : vector<8x32xf32> to vector<8x32xbf16>
    %cst_346 = arith.constant dense<0.000000e+00> : vector<8x128xf32>
    %976 = tpu.matmul %975, %542, %cst_346 {dimension_numbers = #tpu.dot_dimension_numbers<[1], [0], [0], [1], [0, 0, 1, 1], [], []>} : vector<8x32xbf16>, vector<32x128xbf16>, vector<8x128xf32> -> vector<8x128xf32>
    %977 = arith.addf %974, %976 : vector<8x128xf32>
    %978 = arith.negf %977 : vector<8x128xf32>
    %979 = math.exp %978 : vector<8x128xf32>
    %cst_347 = arith.constant 1.000000e+00 : f32
    %980 = vector.broadcast %cst_347 : f32 to vector<8x128xf32>
    %981 = arith.addf %980, %979 : vector<8x128xf32>
    %982 = arith.divf %980, %981 : vector<8x128xf32>
    %983 = math.tanh %977 : vector<8x128xf32>
    %984 = vector.extract_strided_slice %982 {offsets = [0, 0], sizes = [8, 32], strides = [1, 1]} : vector<8x128xf32> to vector<8x32xf32>
    %985 = vector.extract_strided_slice %982 {offsets = [0, 32], sizes = [8, 32], strides = [1, 1]} : vector<8x128xf32> to vector<8x32xf32>
    %986 = vector.extract_strided_slice %983 {offsets = [0, 64], sizes = [8, 32], strides = [1, 1]} : vector<8x128xf32> to vector<8x32xf32>
    %987 = vector.extract_strided_slice %982 {offsets = [0, 96], sizes = [8, 32], strides = [1, 1]} : vector<8x128xf32> to vector<8x32xf32>
    %988 = arith.mulf %985, %960 : vector<8x32xf32>
    %989 = arith.mulf %984, %986 : vector<8x32xf32>
    %990 = arith.addf %988, %989 : vector<8x32xf32>
    %991 = math.tanh %990 : vector<8x32xf32>
    %992 = arith.mulf %987, %991 : vector<8x32xf32>
    %993 = arith.index_cast %966 : i32 to index
    %c0_348 = arith.constant 0 : index
    %994 = vector.load %arg18[%993, %c0_348] : memref<128x32xf32, #tpu.memory_space<vmem>>, vector<8x32xf32>
    tpu.vector_store %arg18[%993, %c0_348], %992 {strides = array<i32>} : memref<128x32xf32, #tpu.memory_space<vmem>>, vector<8x32xf32>,
    %c15_i32_349 = arith.constant 15 : i32
    %c8_i32_350 = arith.constant 8 : i32
    %995 = arith.muli %c15_i32_349, %c8_i32_350 : i32
    %996 = tpu.assume_multiple %995, 8 : i32
    %c15_i32_351 = arith.constant 15 : i32
    %997 = arith.subi %c15_i32_351, %c15_i32_349 : i32
    %c8_i32_352 = arith.constant 8 : i32
    %998 = arith.muli %997, %c8_i32_352 : i32
    %999 = tpu.assume_multiple %998, 8 : i32
    %1000 = arith.index_cast %996 : i32 to index
    %c0_353 = arith.constant 0 : index
    %1001 = vector.load %arg20[%1000, %c0_353] : memref<128x128xf32, #tpu.memory_space<vmem>>, vector<8x128xf32>
    %1002 = arith.index_cast %999 : i32 to index
    %c0_354 = arith.constant 0 : index
    %1003 = vector.load %arg21[%1002, %c0_354] : memref<128x128xf32, #tpu.memory_space<vmem>>, vector<8x128xf32>
    %1004 = arith.addf %1001, %1003 : vector<8x128xf32>
    %1005 = arith.truncf %992 : vector<8x32xf32> to vector<8x32xbf16>
    %cst_355 = arith.constant dense<0.000000e+00> : vector<8x128xf32>
    %1006 = tpu.matmul %1005, %542, %cst_355 {dimension_numbers = #tpu.dot_dimension_numbers<[1], [0], [0], [1], [0, 0, 1, 1], [], []>} : vector<8x32xbf16>, vector<32x128xbf16>, vector<8x128xf32> -> vector<8x128xf32>
    %1007 = arith.addf %1004, %1006 : vector<8x128xf32>
    %1008 = arith.negf %1007 : vector<8x128xf32>
    %1009 = math.exp %1008 : vector<8x128xf32>
    %cst_356 = arith.constant 1.000000e+00 : f32
    %1010 = vector.broadcast %cst_356 : f32 to vector<8x128xf32>
    %1011 = arith.addf %1010, %1009 : vector<8x128xf32>
    %1012 = arith.divf %1010, %1011 : vector<8x128xf32>
    %1013 = math.tanh %1007 : vector<8x128xf32>
    %1014 = vector.extract_strided_slice %1012 {offsets = [0, 0], sizes = [8, 32], strides = [1, 1]} : vector<8x128xf32> to vector<8x32xf32>
    %1015 = vector.extract_strided_slice %1012 {offsets = [0, 32], sizes = [8, 32], strides = [1, 1]} : vector<8x128xf32> to vector<8x32xf32>
    %1016 = vector.extract_strided_slice %1013 {offsets = [0, 64], sizes = [8, 32], strides = [1, 1]} : vector<8x128xf32> to vector<8x32xf32>
    %1017 = vector.extract_strided_slice %1012 {offsets = [0, 96], sizes = [8, 32], strides = [1, 1]} : vector<8x128xf32> to vector<8x32xf32>
    %1018 = arith.mulf %1015, %990 : vector<8x32xf32>
    %1019 = arith.mulf %1014, %1016 : vector<8x32xf32>
    %1020 = arith.addf %1018, %1019 : vector<8x32xf32>
    %1021 = math.tanh %1020 : vector<8x32xf32>
    %1022 = arith.mulf %1017, %1021 : vector<8x32xf32>
    %1023 = arith.index_cast %996 : i32 to index
    %c0_357 = arith.constant 0 : index
    %1024 = vector.load %arg18[%1023, %c0_357] : memref<128x32xf32, #tpu.memory_space<vmem>>, vector<8x32xf32>
    tpu.vector_store %arg18[%1023, %c0_357], %1022 {strides = array<i32>} : memref<128x32xf32, #tpu.memory_space<vmem>>, vector<8x32xf32>,
    %c16_i32_358 = arith.constant 16 : i32
    %c0_359 = arith.constant 0 : index
    %c0_360 = arith.constant 0 : index
    %1025 = vector.load %arg18[%c0_359, %c0_360] : memref<128x32xf32, #tpu.memory_space<vmem>>, vector<128x16xf32>
    %c0_361 = arith.constant 0 : index
    %c0_362 = arith.constant 0 : index
    %1026 = vector.load %arg19[%c0_361, %c0_362] : memref<128x32xf32, #tpu.memory_space<vmem>>, vector<128x16xf32>
    tpu.vector_store %arg19[%c0_361, %c0_362], %1025 {strides = array<i32>} : memref<128x32xf32, #tpu.memory_space<vmem>>, vector<128x16xf32>,
    %c120_363 = arith.constant 120 : index
    %c16_364 = arith.constant 16 : index
    %1027 = vector.load %arg18[%c120_363, %c16_364] : memref<128x32xf32, #tpu.memory_space<vmem>>, vector<8x16xf32>
    %c0_365 = arith.constant 0 : index
    %c16_366 = arith.constant 16 : index
    %1028 = vector.load %arg19[%c0_365, %c16_366] : memref<128x32xf32, #tpu.memory_space<vmem>>, vector<8x16xf32>
    tpu.vector_store %arg19[%c0_365, %c16_366], %1027 {strides = array<i32>} : memref<128x32xf32, #tpu.memory_space<vmem>>, vector<8x16xf32>,
    %c112_367 = arith.constant 112 : index
    %c16_368 = arith.constant 16 : index
    %1029 = vector.load %arg18[%c112_367, %c16_368] : memref<128x32xf32, #tpu.memory_space<vmem>>, vector<8x16xf32>
    %c8_369 = arith.constant 8 : index
    %c16_370 = arith.constant 16 : index
    %1030 = vector.load %arg19[%c8_369, %c16_370] : memref<128x32xf32, #tpu.memory_space<vmem>>, vector<8x16xf32>
    tpu.vector_store %arg19[%c8_369, %c16_370], %1029 {strides = array<i32>} : memref<128x32xf32, #tpu.memory_space<vmem>>, vector<8x16xf32>,
    %c104_371 = arith.constant 104 : index
    %c16_372 = arith.constant 16 : index
    %1031 = vector.load %arg18[%c104_371, %c16_372] : memref<128x32xf32, #tpu.memory_space<vmem>>, vector<8x16xf32>
    %c16_373 = arith.constant 16 : index
    %c16_374 = arith.constant 16 : index
    %1032 = vector.load %arg19[%c16_373, %c16_374] : memref<128x32xf32, #tpu.memory_space<vmem>>, vector<8x16xf32>
    tpu.vector_store %arg19[%c16_373, %c16_374], %1031 {strides = array<i32>} : memref<128x32xf32, #tpu.memory_space<vmem>>, vector<8x16xf32>,
    %c96_375 = arith.constant 96 : index
    %c16_376 = arith.constant 16 : index
    %1033 = vector.load %arg18[%c96_375, %c16_376] : memref<128x32xf32, #tpu.memory_space<vmem>>, vector<8x16xf32>
    %c24_377 = arith.constant 24 : index
    %c16_378 = arith.constant 16 : index
    %1034 = vector.load %arg19[%c24_377, %c16_378] : memref<128x32xf32, #tpu.memory_space<vmem>>, vector<8x16xf32>
    tpu.vector_store %arg19[%c24_377, %c16_378], %1033 {strides = array<i32>} : memref<128x32xf32, #tpu.memory_space<vmem>>, vector<8x16xf32>,
    %c88_379 = arith.constant 88 : index
    %c16_380 = arith.constant 16 : index
    %1035 = vector.load %arg18[%c88_379, %c16_380] : memref<128x32xf32, #tpu.memory_space<vmem>>, vector<8x16xf32>
    %c32_381 = arith.constant 32 : index
    %c16_382 = arith.constant 16 : index
    %1036 = vector.load %arg19[%c32_381, %c16_382] : memref<128x32xf32, #tpu.memory_space<vmem>>, vector<8x16xf32>
    tpu.vector_store %arg19[%c32_381, %c16_382], %1035 {strides = array<i32>} : memref<128x32xf32, #tpu.memory_space<vmem>>, vector<8x16xf32>,
    %c80_383 = arith.constant 80 : index
    %c16_384 = arith.constant 16 : index
    %1037 = vector.load %arg18[%c80_383, %c16_384] : memref<128x32xf32, #tpu.memory_space<vmem>>, vector<8x16xf32>
    %c40_385 = arith.constant 40 : index
    %c16_386 = arith.constant 16 : index
    %1038 = vector.load %arg19[%c40_385, %c16_386] : memref<128x32xf32, #tpu.memory_space<vmem>>, vector<8x16xf32>
    tpu.vector_store %arg19[%c40_385, %c16_386], %1037 {strides = array<i32>} : memref<128x32xf32, #tpu.memory_space<vmem>>, vector<8x16xf32>,
    %c72_387 = arith.constant 72 : index
    %c16_388 = arith.constant 16 : index
    %1039 = vector.load %arg18[%c72_387, %c16_388] : memref<128x32xf32, #tpu.memory_space<vmem>>, vector<8x16xf32>
    %c48_389 = arith.constant 48 : index
    %c16_390 = arith.constant 16 : index
    %1040 = vector.load %arg19[%c48_389, %c16_390] : memref<128x32xf32, #tpu.memory_space<vmem>>, vector<8x16xf32>
    tpu.vector_store %arg19[%c48_389, %c16_390], %1039 {strides = array<i32>} : memref<128x32xf32, #tpu.memory_space<vmem>>, vector<8x16xf32>,
    %c64_391 = arith.constant 64 : index
    %c16_392 = arith.constant 16 : index
    %1041 = vector.load %arg18[%c64_391, %c16_392] : memref<128x32xf32, #tpu.memory_space<vmem>>, vector<8x16xf32>
    %c56_393 = arith.constant 56 : index
    %c16_394 = arith.constant 16 : index
    %1042 = vector.load %arg19[%c56_393, %c16_394] : memref<128x32xf32, #tpu.memory_space<vmem>>, vector<8x16xf32>
    tpu.vector_store %arg19[%c56_393, %c16_394], %1041 {strides = array<i32>} : memref<128x32xf32, #tpu.memory_space<vmem>>, vector<8x16xf32>,
    %c56_395 = arith.constant 56 : index
    %c16_396 = arith.constant 16 : index
    %1043 = vector.load %arg18[%c56_395, %c16_396] : memref<128x32xf32, #tpu.memory_space<vmem>>, vector<8x16xf32>
    %c64_397 = arith.constant 64 : index
    %c16_398 = arith.constant 16 : index
    %1044 = vector.load %arg19[%c64_397, %c16_398] : memref<128x32xf32, #tpu.memory_space<vmem>>, vector<8x16xf32>
    tpu.vector_store %arg19[%c64_397, %c16_398], %1043 {strides = array<i32>} : memref<128x32xf32, #tpu.memory_space<vmem>>, vector<8x16xf32>,
    %c48_399 = arith.constant 48 : index
    %c16_400 = arith.constant 16 : index
    %1045 = vector.load %arg18[%c48_399, %c16_400] : memref<128x32xf32, #tpu.memory_space<vmem>>, vector<8x16xf32>
    %c72_401 = arith.constant 72 : index
    %c16_402 = arith.constant 16 : index
    %1046 = vector.load %arg19[%c72_401, %c16_402] : memref<128x32xf32, #tpu.memory_space<vmem>>, vector<8x16xf32>
    tpu.vector_store %arg19[%c72_401, %c16_402], %1045 {strides = array<i32>} : memref<128x32xf32, #tpu.memory_space<vmem>>, vector<8x16xf32>,
    %c40_403 = arith.constant 40 : index
    %c16_404 = arith.constant 16 : index
    %1047 = vector.load %arg18[%c40_403, %c16_404] : memref<128x32xf32, #tpu.memory_space<vmem>>, vector<8x16xf32>
    %c80_405 = arith.constant 80 : index
    %c16_406 = arith.constant 16 : index
    %1048 = vector.load %arg19[%c80_405, %c16_406] : memref<128x32xf32, #tpu.memory_space<vmem>>, vector<8x16xf32>
    tpu.vector_store %arg19[%c80_405, %c16_406], %1047 {strides = array<i32>} : memref<128x32xf32, #tpu.memory_space<vmem>>, vector<8x16xf32>,
    %c32_407 = arith.constant 32 : index
    %c16_408 = arith.constant 16 : index
    %1049 = vector.load %arg18[%c32_407, %c16_408] : memref<128x32xf32, #tpu.memory_space<vmem>>, vector<8x16xf32>
    %c88_409 = arith.constant 88 : index
    %c16_410 = arith.constant 16 : index
    %1050 = vector.load %arg19[%c88_409, %c16_410] : memref<128x32xf32, #tpu.memory_space<vmem>>, vector<8x16xf32>
    tpu.vector_store %arg19[%c88_409, %c16_410], %1049 {strides = array<i32>} : memref<128x32xf32, #tpu.memory_space<vmem>>, vector<8x16xf32>,
    %c24_411 = arith.constant 24 : index
    %c16_412 = arith.constant 16 : index
    %1051 = vector.load %arg18[%c24_411, %c16_412] : memref<128x32xf32, #tpu.memory_space<vmem>>, vector<8x16xf32>
    %c96_413 = arith.constant 96 : index
    %c16_414 = arith.constant 16 : index
    %1052 = vector.load %arg19[%c96_413, %c16_414] : memref<128x32xf32, #tpu.memory_space<vmem>>, vector<8x16xf32>
    tpu.vector_store %arg19[%c96_413, %c16_414], %1051 {strides = array<i32>} : memref<128x32xf32, #tpu.memory_space<vmem>>, vector<8x16xf32>,
    %c16_415 = arith.constant 16 : index
    %c16_416 = arith.constant 16 : index
    %1053 = vector.load %arg18[%c16_415, %c16_416] : memref<128x32xf32, #tpu.memory_space<vmem>>, vector<8x16xf32>
    %c104_417 = arith.constant 104 : index
    %c16_418 = arith.constant 16 : index
    %1054 = vector.load %arg19[%c104_417, %c16_418] : memref<128x32xf32, #tpu.memory_space<vmem>>, vector<8x16xf32>
    tpu.vector_store %arg19[%c104_417, %c16_418], %1053 {strides = array<i32>} : memref<128x32xf32, #tpu.memory_space<vmem>>, vector<8x16xf32>,
    %c8_419 = arith.constant 8 : index
    %c16_420 = arith.constant 16 : index
    %1055 = vector.load %arg18[%c8_419, %c16_420] : memref<128x32xf32, #tpu.memory_space<vmem>>, vector<8x16xf32>
    %c112_421 = arith.constant 112 : index
    %c16_422 = arith.constant 16 : index
    %1056 = vector.load %arg19[%c112_421, %c16_422] : memref<128x32xf32, #tpu.memory_space<vmem>>, vector<8x16xf32>
    tpu.vector_store %arg19[%c112_421, %c16_422], %1055 {strides = array<i32>} : memref<128x32xf32, #tpu.memory_space<vmem>>, vector<8x16xf32>,
    %c0_423 = arith.constant 0 : index
    %c16_424 = arith.constant 16 : index
    %1057 = vector.load %arg18[%c0_423, %c16_424] : memref<128x32xf32, #tpu.memory_space<vmem>>, vector<8x16xf32>
    %c120_425 = arith.constant 120 : index
    %c16_426 = arith.constant 16 : index
    %1058 = vector.load %arg19[%c120_425, %c16_426] : memref<128x32xf32, #tpu.memory_space<vmem>>, vector<8x16xf32>
    tpu.vector_store %arg19[%c120_425, %c16_426], %1057 {strides = array<i32>} : memref<128x32xf32, #tpu.memory_space<vmem>>, vector<8x16xf32>,
    %c0_427 = arith.constant 0 : index
    %c0_428 = arith.constant 0 : index
    %1059 = vector.load %arg10[%c0_427, %c0_428] : memref<1x128xf32, #tpu.memory_space<vmem>>, vector<1x128xf32>
    %1060 = vector.broadcast %1 : vector<128x1xf32> to vector<128x128xf32>
    %1061 = vector.broadcast %1059 : vector<1x128xf32> to vector<128x128xf32>
    %1062 = arith.mulf %1060, %1061 : vector<128x128xf32>
    %c0_429 = arith.constant 0 : index
    %c0_430 = arith.constant 0 : index
    %1063 = vector.load %arg11[%c0_429, %c0_430] : memref<1x128xf32, #tpu.memory_space<vmem>>, vector<1x128xf32>
    %1064 = vector.broadcast %1063 : vector<1x128xf32> to vector<128x128xf32>
    %1065 = arith.addf %1062, %1064 : vector<128x128xf32>
    %c0_431 = arith.constant 0 : index
    %c0_432 = arith.constant 0 : index
    %1066 = vector.load %arg19[%c0_431, %c0_432] : memref<128x32xf32, #tpu.memory_space<vmem>>, vector<128x32xf32>
    %c0_433 = arith.constant 0 : index
    %c0_434 = arith.constant 0 : index
    %1067 = vector.load %arg12[%c0_433, %c0_434] : memref<32x128xf32, #tpu.memory_space<vmem>>, vector<32x128xf32>
    %cst_435 = arith.constant dense<0.000000e+00> : vector<128x128xf32>
    %1068 = tpu.matmul %1066, %1067, %cst_435 {dimension_numbers = #tpu.dot_dimension_numbers<[1], [0], [0], [1], [0, 0, 1, 1], [], []>} : vector<128x32xf32>, vector<32x128xf32>, vector<128x128xf32> -> vector<128x128xf32>
    %c0_436 = arith.constant 0 : index
    %c0_437 = arith.constant 0 : index
    %1069 = vector.load %arg13[%c0_436, %c0_437] : memref<1x128xf32, #tpu.memory_space<vmem>>, vector<1x128xf32>
    %1070 = vector.broadcast %1069 : vector<1x128xf32> to vector<128x128xf32>
    %1071 = arith.addf %1068, %1070 : vector<128x128xf32>
    %cst_438 = arith.constant 0.000000e+00 : f32
    %1072 = vector.broadcast %cst_438 : f32 to vector<128x128xf32>
    %1073 = arith.cmpf oge, %1065, %1072 : vector<128x128xf32>
    %cst_439 = arith.constant 2.000000e-01 : f32
    %1074 = vector.broadcast %cst_439 : f32 to vector<128x128xf32>
    %1075 = arith.mulf %1074, %1065 : vector<128x128xf32>
    %1076 = arith.select %1073, %1065, %1075 : vector<128x128xi1>, vector<128x128xf32>
    %cst_440 = arith.constant 0.000000e+00 : f32
    %1077 = vector.broadcast %cst_440 : f32 to vector<128x128xf32>
    %1078 = arith.cmpf oge, %1071, %1077 : vector<128x128xf32>
    %cst_441 = arith.constant 2.000000e-01 : f32
    %1079 = vector.broadcast %cst_441 : f32 to vector<128x128xf32>
    %1080 = arith.mulf %1079, %1071 : vector<128x128xf32>
    %1081 = arith.select %1078, %1071, %1080 : vector<128x128xi1>, vector<128x128xf32>
    %c0_442 = arith.constant 0 : index
    %c0_443 = arith.constant 0 : index
    %1082 = vector.load %arg14[%c0_442, %c0_443] : memref<128x128xf32, #tpu.memory_space<vmem>>, vector<128x128xf32>
    %cst_444 = arith.constant dense<0.000000e+00> : vector<128x128xf32>
    %1083 = tpu.matmul %1076, %1082, %cst_444 {dimension_numbers = #tpu.dot_dimension_numbers<[1], [0], [0], [1], [0, 0, 1, 1], [], []>} : vector<128x128xf32>, vector<128x128xf32>, vector<128x128xf32> -> vector<128x128xf32>
    %c0_445 = arith.constant 0 : index
    %c0_446 = arith.constant 0 : index
    %1084 = vector.load %arg15[%c0_445, %c0_446] : memref<128x128xf32, #tpu.memory_space<vmem>>, vector<128x128xf32>
    %cst_447 = arith.constant dense<0.000000e+00> : vector<128x128xf32>
    %1085 = tpu.matmul %1081, %1084, %cst_447 {dimension_numbers = #tpu.dot_dimension_numbers<[1], [0], [0], [1], [0, 0, 1, 1], [], []>} : vector<128x128xf32>, vector<128x128xf32>, vector<128x128xf32> -> vector<128x128xf32>
    %1086 = arith.addf %1083, %1085 : vector<128x128xf32>
    %c0_448 = arith.constant 0 : index
    %c0_449 = arith.constant 0 : index
    %1087 = vector.load %arg16[%c0_448, %c0_449] : memref<1x128xf32, #tpu.memory_space<vmem>>, vector<1x128xf32>
    %1088 = vector.broadcast %1087 : vector<1x128xf32> to vector<128x128xf32>
    %1089 = arith.addf %1086, %1088 : vector<128x128xf32>
    %c0_450 = arith.constant 0 : index
    %c0_451 = arith.constant 0 : index
    %c0_452 = arith.constant 0 : index
    %1090 = vector.load %arg17[%c0_450, %c0_451, %c0_452] : memref<1x128x128xf32, #tpu.memory_space<vmem>>, vector<1x128x128xf32>
    %1091 = vector.shape_cast %1090 : vector<1x128x128xf32> to vector<128x128xf32>
    %1092 = vector.shape_cast %1089 : vector<128x128xf32> to vector<1x128x128xf32>
    tpu.vector_store %arg17[%c0_450, %c0_451, %c0_452], %1092 {strides = array<i32>} : memref<1x128x128xf32, #tpu.memory_space<vmem>>, vector<1x128x128xf32>,
    return
  }
  func.func @transform_0(%arg0: i32) -> (i32, i32, i32) {
    %c0_i32 = arith.constant 0 : i32
    %c0_i32_0 = arith.constant 0 : i32
    %c0_i32_1 = arith.constant 0 : i32
    return %arg0, %c0_i32, %c0_i32_0 : i32, i32, i32
  }
  func.func @transform_1(%arg0: i32) -> (i32, i32) {
    %c0_i32 = arith.constant 0 : i32
    %c0_i32_0 = arith.constant 0 : i32
    %c0_i32_1 = arith.constant 0 : i32
    return %c0_i32, %c0_i32_0 : i32, i32
  }
  func.func @transform_2(%arg0: i32) -> (i32, i32) {
    %c0_i32 = arith.constant 0 : i32
    %c0_i32_0 = arith.constant 0 : i32
    %c0_i32_1 = arith.constant 0 : i32
    return %c0_i32, %c0_i32_0 : i32, i32
  }
  func.func @transform_3(%arg0: i32) -> (i32, i32) {
    %c0_i32 = arith.constant 0 : i32
    %c0_i32_0 = arith.constant 0 : i32
    %c0_i32_1 = arith.constant 0 : i32
    return %c0_i32, %c0_i32_0 : i32, i32
  }
  func.func @transform_4(%arg0: i32) -> (i32, i32) {
    %c0_i32 = arith.constant 0 : i32
    %c0_i32_0 = arith.constant 0 : i32
    %c0_i32_1 = arith.constant 0 : i32
    return %c0_i32, %c0_i32_0 : i32, i32
  }
  func.func @transform_5(%arg0: i32) -> (i32, i32) {
    %c0_i32 = arith.constant 0 : i32
    %c0_i32_0 = arith.constant 0 : i32
    %c0_i32_1 = arith.constant 0 : i32
    return %c0_i32, %c0_i32_0 : i32, i32
  }
  func.func @transform_6(%arg0: i32) -> (i32, i32) {
    %c0_i32 = arith.constant 0 : i32
    %c0_i32_0 = arith.constant 0 : i32
    %c0_i32_1 = arith.constant 0 : i32
    return %c0_i32, %c0_i32_0 : i32, i32
  }
  func.func @transform_7(%arg0: i32) -> (i32, i32) {
    %c0_i32 = arith.constant 0 : i32
    %c0_i32_0 = arith.constant 0 : i32
    %c0_i32_1 = arith.constant 0 : i32
    return %c0_i32, %c0_i32_0 : i32, i32
  }
  func.func @transform_8(%arg0: i32) -> (i32, i32) {
    %c0_i32 = arith.constant 0 : i32
    %c0_i32_0 = arith.constant 0 : i32
    %c0_i32_1 = arith.constant 0 : i32
    return %c0_i32, %c0_i32_0 : i32, i32
  }
  func.func @transform_9(%arg0: i32) -> (i32, i32) {
    %c0_i32 = arith.constant 0 : i32
    %c0_i32_0 = arith.constant 0 : i32
    %c0_i32_1 = arith.constant 0 : i32
    return %c0_i32, %c0_i32_0 : i32, i32
  }
  func.func @transform_10(%arg0: i32) -> (i32, i32) {
    %c0_i32 = arith.constant 0 : i32
    %c0_i32_0 = arith.constant 0 : i32
    %c0_i32_1 = arith.constant 0 : i32
    return %c0_i32, %c0_i32_0 : i32, i32
  }
  func.func @transform_11(%arg0: i32) -> (i32, i32) {
    %c0_i32 = arith.constant 0 : i32
    %c0_i32_0 = arith.constant 0 : i32
    %c0_i32_1 = arith.constant 0 : i32
    return %c0_i32, %c0_i32_0 : i32, i32
  }
  func.func @transform_12(%arg0: i32) -> (i32, i32) {
    %c0_i32 = arith.constant 0 : i32
    %c0_i32_0 = arith.constant 0 : i32
    %c0_i32_1 = arith.constant 0 : i32
    return %c0_i32, %c0_i32_0 : i32, i32
  }
  func.func @transform_13(%arg0: i32) -> (i32, i32) {
    %c0_i32 = arith.constant 0 : i32
    %c0_i32_0 = arith.constant 0 : i32
    %c0_i32_1 = arith.constant 0 : i32
    return %c0_i32, %c0_i32_0 : i32, i32
  }
  func.func @transform_14(%arg0: i32) -> (i32, i32) {
    %c0_i32 = arith.constant 0 : i32
    %c0_i32_0 = arith.constant 0 : i32
    %c0_i32_1 = arith.constant 0 : i32
    return %c0_i32, %c0_i32_0 : i32, i32
  }
  func.func @transform_15(%arg0: i32) -> (i32, i32) {
    %c0_i32 = arith.constant 0 : i32
    %c0_i32_0 = arith.constant 0 : i32
    %c0_i32_1 = arith.constant 0 : i32
    return %c0_i32, %c0_i32_0 : i32, i32
  }
  func.func @transform_16(%arg0: i32) -> (i32, i32, i32) {
    %c0_i32 = arith.constant 0 : i32
    %c0_i32_0 = arith.constant 0 : i32
    %c0_i32_1 = arith.constant 0 : i32
    return %arg0, %c0_i32, %c0_i32_0 : i32, i32, i32
  }
}

</mosaic_0001>

<llo_original>
// kernel: forward.1
$region0: #{forward.1}
  #allocation0 [shape = 'u32[]', space=smem, size = 0x4, offset = 0x4, fixed_abs, tag = 'smem constant byte address 0x4 - core index']
  #allocation1 [shape = 'u32[72,128]{1,0:T(1,128)}', space=vmem, size = 0x9000, scoped, tag = 'internal scratch']
  #allocation2 [shape = 'f32[128,32]{1,0:T(8,128)}', space=vmem, size = 0x10000, scoped, tag = 'scratch operand']
  #allocation3 [shape = 'f32[128,32]{1,0:T(8,128)}', space=vmem, size = 0x10000, scoped, tag = 'scratch operand']
  #allocation4 [shape = 'f32[128,128]{1,0:T(8,128)}', space=vmem, size = 0x10000, scoped, tag = 'scratch operand']
  #allocation5 [shape = 'f32[128,128]{1,0:T(8,128)}', space=vmem, size = 0x10000, scoped, tag = 'scratch operand']
  %s0 = inlined_call_operand.vmem [shape: f32[1,128,1], index: 0, kind: input, shape index: {}]
  %s1 = inlined_call_operand.vmem [shape: f32[1,128], index: 1, kind: input, shape index: {}]
  %s2 = inlined_call_operand.vmem [shape: f32[1,128], index: 2, kind: input, shape index: {}]
  %s3 = inlined_call_operand.vmem [shape: f32[1,128], index: 3, kind: input, shape index: {}]
  %s4 = inlined_call_operand.vmem [shape: bf16[32,128], index: 4, kind: input, shape index: {}]
  %s5 = inlined_call_operand.vmem [shape: f32[32,128], index: 5, kind: input, shape index: {}]
  %s6 = inlined_call_operand.hbm [shape: f32[32,128], index: 6, kind: input, shape index: {}]
  %s7 = inlined_call_operand.vmem [shape: f32[1,128], index: 7, kind: input, shape index: {}]
  %s8 = inlined_call_operand.hbm [shape: bf16[32,128], index: 8, kind: input, shape index: {}]
  %s9 = inlined_call_operand.vmem [shape: f32[1,128], index: 9, kind: input, shape index: {}]
  %s10 = inlined_call_operand.vmem [shape: f32[1,128], index: 10, kind: input, shape index: {}]
  %s11 = inlined_call_operand.hbm [shape: f32[32,128], index: 11, kind: input, shape index: {}]
  %s12 = inlined_call_operand.vmem [shape: f32[1,128], index: 12, kind: input, shape index: {}]
  %s13 = inlined_call_operand.vmem [shape: f32[128,128], index: 13, kind: input, shape index: {}]
  %s14 = inlined_call_operand.hbm [shape: f32[128,128], index: 14, kind: input, shape index: {}]
  %s15 = inlined_call_operand.vmem [shape: f32[1,128], index: 15, kind: input, shape index: {}]
  %s16 = inlined_call_operand.vmem [shape: f32[1,128,128], index: 16, kind: output, shape index: {}]
  %s17 = sld [smem:[#allocation0]]
  $region90: #{forward.1} parent=0
    _
  %s19 = ssub.s32 1, %s17
  %s20 = scalar_select 0, %s19, %s17
  $region1: #{forward.1} parent=0
    #allocation6 [shape = 'u8[16384]{0}', space=vmem, size = 0x4000, scoped, tag = 'input window, operand 6, single buffered']
    #allocation7 [shape = 's32[1]{0}', space=sflag, size = 0x4, scoped, tag = 'scoped memory for forward.1']
    #allocation8 [shape = 'u8[8192]{0}', space=vmem, size = 0x2000, scoped, tag = 'input window, operand 8, single buffered']
    #allocation9 [shape = 's32[1]{0}', space=sflag, size = 0x4, scoped, tag = 'scoped memory for forward.1']
    #allocation10 [shape = 'u8[16384]{0}', space=vmem, size = 0x4000, scoped, tag = 'input window, operand 11, single buffered']
    #allocation11 [shape = 'u8[65536]{0}', space=vmem, size = 0x10000, scoped, tag = 'input window, operand 14, single buffered']
    #allocation12 [shape = 's32[1]{0}', space=sflag, size = 0x4, scoped, tag = 'scoped memory for forward.1']
    %21 = vsyncpa [#allocation7], 0
    %22 = vsyncpa [#allocation9], 0
    %23 = vsyncpa [#allocation12], 0
    // Predicated region
    $region2: #{forward.1} parent=1 // pred_check
      _
    $region3: #{forward.1} parent=1 // pred_check_branch
      %25 = sbr.rel (0) target = $region5
    $region4: #{forward.1} parent=1 // pred_region
      _
    $region5: #{forward.1} parent=1 // pred_fallthru
      _
    // Predicated region
    $region6: #{forward.1} parent=1 // pred_check
      _
    $region7: #{forward.1} parent=1 // pred_check_branch
      %27 = sbr.rel (0) target = $region9
    $region8: #{forward.1} parent=1 // pred_region
      _
    $region9: #{forward.1} parent=1 // pred_fallthru
      _
    // Predicated region
    $region10: #{forward.1} parent=1 // pred_check
      _
    $region11: #{forward.1} parent=1 // pred_check_branch
      %29 = sbr.rel (0) target = $region13
    $region12: #{forward.1} parent=1 // pred_region
      _
    $region13: #{forward.1} parent=1 // pred_fallthru
      _
    // Predicated region
    $region14: #{forward.1} parent=1 // pred_check
      _
    $region15: #{forward.1} parent=1 // pred_check_branch
      %31 = sbr.rel (0) target = $region17
    $region16: #{forward.1} parent=1 // pred_region
      _
    $region17: #{forward.1} parent=1 // pred_fallthru
      _
    // Predicated region
    $region18: #{forward.1} parent=1 // pred_check
      _
    $region19: #{forward.1} parent=1 // pred_check_branch
      %33 = sbr.rel (0) target = $region21
    $region20: #{forward.1} parent=1 // pred_region
      _
    $region21: #{forward.1} parent=1 // pred_fallthru
      _
    // Predicated region
    $region22: #{forward.1} parent=1 // pred_check
      _
    $region23: #{forward.1} parent=1 // pred_check_branch
      %35 = sbr.rel (0) target = $region25
    $region24: #{forward.1} parent=1 // pred_region
      _
    $region25: #{forward.1} parent=1 // pred_fallthru
      _
    // Predicated region
    $region26: #{forward.1} parent=1 // pred_check
      _
    $region27: #{forward.1} parent=1 // pred_check_branch
      %37 = sbr.rel (0) target = $region29
    $region28: #{forward.1} parent=1 // pred_region
      %39 = vsyncadd [#allocation7], 0
      %s40 = sshll.u32 %s6, 4
      %s41 = int_to_ptr.hbm [resolvable:$true] %s40
      %s42 = sshll.u32 [#allocation6], 4
      %s43 = int_to_ptr.vmem [resolvable:$true] %s42
      %48 = dma.hbm_to_vmem [thread:$0]  %s41, 512, %s43, [#allocation7], 128, 128, 8
    $region29: #{forward.1} parent=1 // pred_fallthru
      _
    // Predicated region
    $region30: #{forward.1} parent=1 // pred_check
      _
    $region31: #{forward.1} parent=1 // pred_check_branch
      %50 = sbr.rel (0) target = $region33
    $region32: #{forward.1} parent=1 // pred_region
      _
    $region33: #{forward.1} parent=1 // pred_fallthru
      _
    // Predicated region
    $region34: #{forward.1} parent=1 // pred_check
      _
    $region35: #{forward.1} parent=1 // pred_check_branch
      %52 = sbr.rel (0) target = $region37
    $region36: #{forward.1} parent=1 // pred_region
      %54 = vsyncadd [#allocation9], 0
      %s55 = sshll.u32 %s8, 4
      %s56 = int_to_ptr.hbm [resolvable:$true] %s55
      %s57 = sshll.u32 [#allocation8], 4
      %s58 = int_to_ptr.vmem [resolvable:$true] %s57
      %63 = dma.hbm_to_vmem [thread:$0]  %s56, 256, %s58, [#allocation9], 64, 64, 4
    $region37: #{forward.1} parent=1 // pred_fallthru
      _
    // Predicated region
    $region38: #{forward.1} parent=1 // pred_check
      _
    $region39: #{forward.1} parent=1 // pred_check_branch
      %65 = sbr.rel (0) target = $region41
    $region40: #{forward.1} parent=1 // pred_region
      _
    $region41: #{forward.1} parent=1 // pred_fallthru
      _
    // Predicated region
    $region42: #{forward.1} parent=1 // pred_check
      _
    $region43: #{forward.1} parent=1 // pred_check_branch
      %67 = sbr.rel (0) target = $region45
    $region44: #{forward.1} parent=1 // pred_region
      _
    $region45: #{forward.1} parent=1 // pred_fallthru
      _
    // Predicated region
    $region46: #{forward.1} parent=1 // pred_check
      _
    $region47: #{forward.1} parent=1 // pred_check_branch
      %69 = sbr.rel (0) target = $region49
    $region48: #{forward.1} parent=1 // pred_region
      %71 = vsyncadd [#allocation9], 0
      %s72 = sshll.u32 %s11, 4
      %s73 = int_to_ptr.hbm [resolvable:$true] %s72
      %s74 = sshll.u32 [#allocation10], 4
      %s75 = int_to_ptr.vmem [resolvable:$true] %s74
      %80 = dma.hbm_to_vmem [thread:$0]  %s73, 512, %s75, [#allocation9], 128, 128, 8
    $region49: #{forward.1} parent=1 // pred_fallthru
      _
    // Predicated region
    $region50: #{forward.1} parent=1 // pred_check
      _
    $region51: #{forward.1} parent=1 // pred_check_branch
      %82 = sbr.rel (0) target = $region53
    $region52: #{forward.1} parent=1 // pred_region
      _
    $region53: #{forward.1} parent=1 // pred_fallthru
      _
    // Predicated region
    $region54: #{forward.1} parent=1 // pred_check
      _
    $region55: #{forward.1} parent=1 // pred_check_branch
      %84 = sbr.rel (0) target = $region57
    $region56: #{forward.1} parent=1 // pred_region
      _
    $region57: #{forward.1} parent=1 // pred_fallthru
      _
    // Predicated region
    $region58: #{forward.1} parent=1 // pred_check
      _
    $region59: #{forward.1} parent=1 // pred_check_branch
      %86 = sbr.rel (0) target = $region61
    $region60: #{forward.1} parent=1 // pred_region
      %88 = vsyncadd [#allocation12], 0
      %s89 = sshll.u32 %s14, 4
      %s90 = int_to_ptr.hbm [resolvable:$true] %s89
      %s91 = sshll.u32 [#allocation11], 4
      %s92 = int_to_ptr.vmem [resolvable:$true] %s91
      %97 = dma.hbm_to_vmem [thread:$0]  %s90, 2048, %s92, [#allocation12], 128, 128, 8
    $region61: #{forward.1} parent=1 // pred_fallthru
      _
    // Predicated region
    $region62: #{forward.1} parent=1 // pred_check
      _
    $region63: #{forward.1} parent=1 // pred_check_branch
      %99 = sbr.rel (0) target = $region65
    $region64: #{forward.1} parent=1 // pred_region
      _
    $region65: #{forward.1} parent=1 // pred_fallthru
      _
    // Predicated region
    $region66: #{forward.1} parent=1 // pred_check
      _
    $region67: #{forward.1} parent=1 // pred_check_branch
      %101 = sbr.rel (0) target = $region69
    $region68: #{forward.1} parent=1 // pred_region
      %103 = dma.done [#allocation7], 512
    $region69: #{forward.1} parent=1 // pred_fallthru
      _
    // Predicated region
    $region70: #{forward.1} parent=1 // pred_check
      _
    $region71: #{forward.1} parent=1 // pred_check_branch
      %105 = sbr.rel (0) target = $region73
    $region72: #{forward.1} parent=1 // pred_region
      %107 = dma.done [#allocation9], 256
    $region73: #{forward.1} parent=1 // pred_fallthru
      _
    // Predicated region
    $region74: #{forward.1} parent=1 // pred_check
      _
    $region75: #{forward.1} parent=1 // pred_check_branch
      %109 = sbr.rel (0) target = $region77
    $region76: #{forward.1} parent=1 // pred_region
      %111 = dma.done [#allocation9], 512
    $region77: #{forward.1} parent=1 // pred_fallthru
      _
    // Predicated region
    $region78: #{forward.1} parent=1 // pred_check
      _
    $region79: #{forward.1} parent=1 // pred_check_branch
      %113 = sbr.rel (0) target = $region81
    $region80: #{forward.1} parent=1 // pred_region
      %115 = dma.done [#allocation12], 2048
    $region81: #{forward.1} parent=1 // pred_fallthru
      _
    %v117 = vld [vmem:[%s0] sm:$0xff]
    %v118 = vld [vmem:[%s0 + $0x8] sm:$0xff]
    %v119 = vld [vmem:[%s0 + $0x10] sm:$0xff]
    %v120 = vld [vmem:[%s0 + $0x18] sm:$0xff]
    %v121 = vld [vmem:[%s0 + $0x20] sm:$0xff]
    %v122 = vld [vmem:[%s0 + $0x28] sm:$0xff]
    %v123 = vld [vmem:[%s0 + $0x30] sm:$0xff]
    %v124 = vld [vmem:[%s0 + $0x38] sm:$0xff]
    %v125 = vld [vmem:[%s0 + $0x40] sm:$0xff]
    %v126 = vld [vmem:[%s0 + $0x48] sm:$0xff]
    %v127 = vld [vmem:[%s0 + $0x50] sm:$0xff]
    %v128 = vld [vmem:[%s0 + $0x58] sm:$0xff]
    %v129 = vld [vmem:[%s0 + $0x60] sm:$0xff]
    %v130 = vld [vmem:[%s0 + $0x68] sm:$0xff]
    %v131 = vld [vmem:[%s0 + $0x70] sm:$0xff]
    %v132 = vld [vmem:[%s0 + $0x78] sm:$0xff]
    %v133 = vld [vmem:[%s1] sm:$0x1]
    %135 = vset.pattern.permute.xlu0 0
    %136 = vperm.xlu0 %135, %v117
    %v137 = vpop.permute.xlu0 %136
    %140 = vset.pattern.permute.xlu0 0
    %141 = vperm.xlu0 %140, %v118
    %v142 = vpop.permute.xlu0 %141
    %145 = vset.pattern.permute.xlu0 0
    %146 = vperm.xlu0 %145, %v119
    %v147 = vpop.permute.xlu0 %146
    %150 = vset.pattern.permute.xlu0 0
    %151 = vperm.xlu0 %150, %v120
    %v152 = vpop.permute.xlu0 %151
    %155 = vset.pattern.permute.xlu0 0
    %156 = vperm.xlu0 %155, %v121
    %v157 = vpop.permute.xlu0 %156
    %160 = vset.pattern.permute.xlu0 0
    %161 = vperm.xlu0 %160, %v122
    %v162 = vpop.permute.xlu0 %161
    %165 = vset.pattern.permute.xlu0 0
    %166 = vperm.xlu0 %165, %v123
    %v167 = vpop.permute.xlu0 %166
    %170 = vset.pattern.permute.xlu0 0
    %171 = vperm.xlu0 %170, %v124
    %v172 = vpop.permute.xlu0 %171
    %175 = vset.pattern.permute.xlu0 0
    %176 = vperm.xlu0 %175, %v125
    %v177 = vpop.permute.xlu0 %176
    %180 = vset.pattern.permute.xlu0 0
    %181 = vperm.xlu0 %180, %v126
    %v182 = vpop.permute.xlu0 %181
    %185 = vset.pattern.permute.xlu0 0
    %186 = vperm.xlu0 %185, %v127
    %v187 = vpop.permute.xlu0 %186
    %190 = vset.pattern.permute.xlu0 0
    %191 = vperm.xlu0 %190, %v128
    %v192 = vpop.permute.xlu0 %191
    %195 = vset.pattern.permute.xlu0 0
    %196 = vperm.xlu0 %195, %v129
    %v197 = vpop.permute.xlu0 %196
    %200 = vset.pattern.permute.xlu0 0
    %201 = vperm.xlu0 %200, %v130
    %v202 = vpop.permute.xlu0 %201
    %205 = vset.pattern.permute.xlu0 0
    %206 = vperm.xlu0 %205, %v131
    %v207 = vpop.permute.xlu0 %206
    %210 = vset.pattern.permute.xlu0 0
    %211 = vperm.xlu0 %210, %v132
    %v212 = vpop.permute.xlu0 %211
    %v215 = vperm.slane %v133, 0
    %v217 = vmul.f32 %v137, %v215
    %v218 = vmul.f32 %v142, %v215
    %v219 = vmul.f32 %v147, %v215
    %v220 = vmul.f32 %v152, %v215
    %v221 = vmul.f32 %v157, %v215
    %v222 = vmul.f32 %v162, %v215
    %v223 = vmul.f32 %v167, %v215
    %v224 = vmul.f32 %v172, %v215
    %v225 = vmul.f32 %v177, %v215
    %v226 = vmul.f32 %v182, %v215
    %v227 = vmul.f32 %v187, %v215
    %v228 = vmul.f32 %v192, %v215
    %v229 = vmul.f32 %v197, %v215
    %v230 = vmul.f32 %v202, %v215
    %v231 = vmul.f32 %v207, %v215
    %v232 = vmul.f32 %v212, %v215
    %v233 = vld [vmem:[%s3] sm:$0x1]
    %v235 = vperm.slane %v233, 0
    %v237 = vadd.f32 %v217, %v235
    %v238 = vadd.f32 %v218, %v235
    %v239 = vadd.f32 %v219, %v235
    %v240 = vadd.f32 %v220, %v235
    %v241 = vadd.f32 %v221, %v235
    %v242 = vadd.f32 %v222, %v235
    %v243 = vadd.f32 %v223, %v235
    %v244 = vadd.f32 %v224, %v235
    %v245 = vadd.f32 %v225, %v235
    %v246 = vadd.f32 %v226, %v235
    %v247 = vadd.f32 %v227, %v235
    %v248 = vadd.f32 %v228, %v235
    %v249 = vadd.f32 %v229, %v235
    %v250 = vadd.f32 %v230, %v235
    %v251 = vadd.f32 %v231, %v235
    %v252 = vadd.f32 %v232, %v235
    %253 = vst [vmem:[#allocation4] sm:$0xff] %v237
    %254 = vst [vmem:[#allocation4 + $0x8] sm:$0xff] %v238
    %255 = vst [vmem:[#allocation4 + $0x10] sm:$0xff] %v239
    %256 = vst [vmem:[#allocation4 + $0x18] sm:$0xff] %v240
    %257 = vst [vmem:[#allocation4 + $0x20] sm:$0xff] %v241
    %258 = vst [vmem:[#allocation4 + $0x28] sm:$0xff] %v242
    %259 = vst [vmem:[#allocation4 + $0x30] sm:$0xff] %v243
    %260 = vst [vmem:[#allocation4 + $0x38] sm:$0xff] %v244
    %261 = vst [vmem:[#allocation4 + $0x40] sm:$0xff] %v245
    %262 = vst [vmem:[#allocation4 + $0x48] sm:$0xff] %v246
    %263 = vst [vmem:[#allocation4 + $0x50] sm:$0xff] %v247
    %264 = vst [vmem:[#allocation4 + $0x58] sm:$0xff] %v248
    %265 = vst [vmem:[#allocation4 + $0x60] sm:$0xff] %v249
    %266 = vst [vmem:[#allocation4 + $0x68] sm:$0xff] %v250
    %267 = vst [vmem:[#allocation4 + $0x70] sm:$0xff] %v251
    %268 = vst [vmem:[#allocation4 + $0x78] sm:$0xff] %v252
    %v269 = vld [vmem:[%s2] sm:$0x1]
    %v271 = vperm.slane %v269, 0
    %v273 = vmul.f32 %v137, %v271
    %v274 = vmul.f32 %v142, %v271
    %v275 = vmul.f32 %v147, %v271
    %v276 = vmul.f32 %v152, %v271
    %v277 = vmul.f32 %v157, %v271
    %v278 = vmul.f32 %v162, %v271
    %v279 = vmul.f32 %v167, %v271
    %v280 = vmul.f32 %v172, %v271
    %v281 = vmul.f32 %v177, %v271
    %v282 = vmul.f32 %v182, %v271
    %v283 = vmul.f32 %v187, %v271
    %v284 = vmul.f32 %v192, %v271
    %v285 = vmul.f32 %v197, %v271
    %v286 = vmul.f32 %v202, %v271
    %v287 = vmul.f32 %v207, %v271
    %v288 = vmul.f32 %v212, %v271
    %289 = vst [vmem:[#allocation5] sm:$0xff] %v273
    %290 = vst [vmem:[#allocation5 + $0x8] sm:$0xff] %v274
    %291 = vst [vmem:[#allocation5 + $0x10] sm:$0xff] %v275
    %292 = vst [vmem:[#allocation5 + $0x18] sm:$0xff] %v276
    %293 = vst [vmem:[#allocation5 + $0x20] sm:$0xff] %v277
    %294 = vst [vmem:[#allocation5 + $0x28] sm:$0xff] %v278
    %295 = vst [vmem:[#allocation5 + $0x30] sm:$0xff] %v279
    %296 = vst [vmem:[#allocation5 + $0x38] sm:$0xff] %v280
    %297 = vst [vmem:[#allocation5 + $0x40] sm:$0xff] %v281
    %298 = vst [vmem:[#allocation5 + $0x48] sm:$0xff] %v282
    %299 = vst [vmem:[#allocation5 + $0x50] sm:$0xff] %v283
    %300 = vst [vmem:[#allocation5 + $0x58] sm:$0xff] %v284
    %301 = vst [vmem:[#allocation5 + $0x60] sm:$0xff] %v285
    %302 = vst [vmem:[#allocation5 + $0x68] sm:$0xff] %v286
    %303 = vst [vmem:[#allocation5 + $0x70] sm:$0xff] %v287
    %304 = vst [vmem:[#allocation5 + $0x78] sm:$0xff] %v288
    %v305 = vld [vmem:[%s4] sm:$0xf]
    %v306 = vld [vmem:[%s4 + $0x4] sm:$0xf]
    %v307 = vld [vmem:[%s4 + $0x8] sm:$0xf]
    %v308 = vld [vmem:[%s4 + $0xc] sm:$0xf]
    %v309 = vld [vmem:[#allocation4] sm:$0xff]
    %s310 = scalar_lea.vmem [#allocation5], 120
    %v311 = vld [vmem:[%s310] sm:$0xff]
    %v312 = vadd.f32 %v309, %v311
    %v317 = vunpack.c.l.b16 %v305
    %v318 = vunpack.c.l.b16 %v306
    %v319 = vunpack.c.l.b16 %v307
    %v320 = vunpack.c.l.b16 %v308
    %v321 = vpack.c.b16 %v318, %v317
    %v322 = vpack.c.b16 %v320, %v319
    %vm325 = vcmask 261120
    %v327 = vsel %vm325, 0, 0
    %329 = vmatpush.bf16.msra.mxu0 0
    %330 = vmatpush.bf16.msra.mxu0 0
    %331 = vmatpush.bf16.msra.mxu0 0
    %332 = vmatpush.bf16.msra.mxu0 0
    %333 = vmatpush.bf16.msra.mxu0 0
    %334 = vmatpush.bf16.msra.mxu0 0
    %335 = vmatpush.bf16.msra.mxu0 %v322
    %336 = vmatpush.bf16.msra.mxu0 %v321
    %337 = vmatmul.bf16.gmra.mxu0 %v327
    %v338 = vpop.f32.mrf.mxu0
    %v339 = vadd.f32 0.0, %v338
    %v340 = vpop.f32.mrf.mxu0
    %341 = vdwg.mxu0
    %v342 = vadd.f32 %v312, %v339
    %v343 = vxor.u32 %v342, 2147483648
    %v344 = vmul.f32 %v343, 1.442695
    %v345 = vpow.pop %v344
    %v346 = vadd.f32 %v345, 1.0
    %v347 = vrcp.pop %v346
    %v348 = vmul.f32 %v346, %v347
    %v349 = vsub.f32 1.0, %v348
    %v350 = vmul.f32 %v347, %v349
    %v351 = vadd.f32 %v347, %v350
    %vm352 = vweird.f32 %v346
    %vm353 = vweird.f32 %v347
    %vm354 = vmor %vm352, %vm353
    %v355 = vsel %vm354, %v347, %v351
    %v356 = vand.u32 2147483647, %v346
    %vm357 = vcmp.eq.f32.partialorder %v356, 8.507059e+37
    %v358 = vand.u32 %v346, 2147483648
    %v359 = vor.u32 1.1754944e-38, %v358
    %v360 = vsel %vm357, %v359, %v355
    %v361 = vmul.f32 1.0, %v360
    %v362 = vtanh.pop %v342
    %v363 = vmul.f32 %v361, 0.0
    %365 = vrot.lane.b32.xlu0 %v362, 64
    %v366 = vpop.permute.xlu0 %365
    %v368 = vmul.f32 %v361, %v366
    %370 = vrot.lane.b32.xlu0 %v368, 32
    %v371 = vpop.permute.xlu0 %370
    %v373 = vadd.f32 %v363, %v371
    %v374 = vtanh.pop %v373
    %376 = vrot.lane.b32.xlu0 %v374, 64
    %v377 = vpop.permute.xlu0 %376
    %v379 = vmul.f32 %v361, %v377
    %381 = vrot.lane.b32.xlu0 %v379, 32
    %v382 = vpop.permute.xlu0 %381
    %384 = vst.msk [vmem:[#allocation2] sm:$0xff] %vm325, %v382
    %s385 = scalar_lea.vmem [#allocation4], 8
    %v386 = vld [vmem:[%s385] sm:$0xff]
    %s387 = scalar_lea.vmem [#allocation5], 112
    %v388 = vld [vmem:[%s387] sm:$0xff]
    %v389 = vadd.f32 %v386, %v388
    %v390 = vpack.c.bf16 %v379, %v379
    %392 = vrot.lane.b32.xlu0 %v390, 32
    %v393 = vpop.permute.xlu0 %392
    %v395 = vsel %vm325, %v393, 0
    %397 = vmatpush.bf16.msra.mxu0 0
    %398 = vmatpush.bf16.msra.mxu0 0
    %399 = vmatpush.bf16.msra.mxu0 0
    %400 = vmatpush.bf16.msra.mxu0 0
    %401 = vmatpush.bf16.msra.mxu0 0
    %402 = vmatpush.bf16.msra.mxu0 0
    %403 = vmatpush.bf16.msra.mxu0 %v322
    %404 = vmatpush.bf16.msra.mxu0 %v321
    %405 = vmatmul.bf16.gmra.mxu0 %v395
    %v406 = vpop.f32.mrf.mxu0
    %v407 = vadd.f32 0.0, %v406
    %v408 = vpop.f32.mrf.mxu0
    %409 = vdwg.mxu0
    %v410 = vadd.f32 %v389, %v407
    %v411 = vxor.u32 %v410, 2147483648
    %v412 = vmul.f32 %v411, 1.442695
    %v413 = vpow.pop %v412
    %v414 = vadd.f32 %v413, 1.0
    %v415 = vrcp.pop %v414
    %v416 = vmul.f32 %v414, %v415
    %v417 = vsub.f32 1.0, %v416
    %v418 = vmul.f32 %v415, %v417
    %v419 = vadd.f32 %v415, %v418
    %vm420 = vweird.f32 %v414
    %vm421 = vweird.f32 %v415
    %vm422 = vmor %vm420, %vm421
    %v423 = vsel %vm422, %v415, %v419
    %v424 = vand.u32 2147483647, %v414
    %vm425 = vcmp.eq.f32.partialorder %v424, 8.507059e+37
    %v426 = vand.u32 %v414, 2147483648
    %v427 = vor.u32 1.1754944e-38, %v426
    %v428 = vsel %vm425, %v427, %v423
    %v429 = vmul.f32 1.0, %v428
    %v430 = vtanh.pop %v410
    %v431 = vmul.f32 %v429, %v373
    %433 = vrot.lane.b32.xlu0 %v430, 64
    %v434 = vpop.permute.xlu0 %433
    %v436 = vmul.f32 %v429, %v434
    %438 = vrot.lane.b32.xlu0 %v436, 32
    %v439 = vpop.permute.xlu0 %438
    %v441 = vadd.f32 %v431, %v439
    %v442 = vtanh.pop %v441
    %444 = vrot.lane.b32.xlu0 %v442, 64
    %v445 = vpop.permute.xlu0 %444
    %v447 = vmul.f32 %v429, %v445
    %449 = vrot.lane.b32.xlu0 %v447, 32
    %v450 = vpop.permute.xlu0 %449
    %s452 = scalar_lea.vmem [#allocation2], 8
    %453 = vst.msk [vmem:[%s452] sm:$0xff] %vm325, %v450
    %s454 = scalar_lea.vmem [#allocation4], 16
    %v455 = vld [vmem:[%s454] sm:$0xff]
    %s456 = scalar_lea.vmem [#allocation5], 104
    %v457 = vld [vmem:[%s456] sm:$0xff]
    %v458 = vadd.f32 %v455, %v457
    %v459 = vpack.c.bf16 %v447, %v447
    %461 = vrot.lane.b32.xlu0 %v459, 32
    %v462 = vpop.permute.xlu0 %461
    %v464 = vsel %vm325, %v462, 0
    %466 = vmatpush.bf16.msra.mxu0 0
    %467 = vmatpush.bf16.msra.mxu0 0
    %468 = vmatpush.bf16.msra.mxu0 0
    %469 = vmatpush.bf16.msra.mxu0 0
    %470 = vmatpush.bf16.msra.mxu0 0
    %471 = vmatpush.bf16.msra.mxu0 0
    %472 = vmatpush.bf16.msra.mxu0 %v322
    %473 = vmatpush.bf16.msra.mxu0 %v321
    %474 = vmatmul.bf16.gmra.mxu0 %v464
    %v475 = vpop.f32.mrf.mxu0
    %v476 = vadd.f32 0.0, %v475
    %v477 = vpop.f32.mrf.mxu0
    %478 = vdwg.mxu0
    %v479 = vadd.f32 %v458, %v476
    %v480 = vxor.u32 %v479, 2147483648
    %v481 = vmul.f32 %v480, 1.442695
    %v482 = vpow.pop %v481
    %v483 = vadd.f32 %v482, 1.0
    %v484 = vrcp.pop %v483
    %v485 = vmul.f32 %v483, %v484
    %v486 = vsub.f32 1.0, %v485
    %v487 = vmul.f32 %v484, %v486
    %v488 = vadd.f32 %v484, %v487
    %vm489 = vweird.f32 %v483
    %vm490 = vweird.f32 %v484
    %vm491 = vmor %vm489, %vm490
    %v492 = vsel %vm491, %v484, %v488
    %v493 = vand.u32 2147483647, %v483
    %vm494 = vcmp.eq.f32.partialorder %v493, 8.507059e+37
    %v495 = vand.u32 %v483, 2147483648
    %v496 = vor.u32 1.1754944e-38, %v495
    %v497 = vsel %vm494, %v496, %v492
    %v498 = vmul.f32 1.0, %v497
    %v499 = vtanh.pop %v479
    %v500 = vmul.f32 %v498, %v441
    %502 = vrot.lane.b32.xlu0 %v499, 64
    %v503 = vpop.permute.xlu0 %502
    %v505 = vmul.f32 %v498, %v503
    %507 = vrot.lane.b32.xlu0 %v505, 32
    %v508 = vpop.permute.xlu0 %507
    %v510 = vadd.f32 %v500, %v508
    %v511 = vtanh.pop %v510
    %513 = vrot.lane.b32.xlu0 %v511, 64
    %v514 = vpop.permute.xlu0 %513
    %v516 = vmul.f32 %v498, %v514
    %518 = vrot.lane.b32.xlu0 %v516, 32
    %v519 = vpop.permute.xlu0 %518
    %s521 = scalar_lea.vmem [#allocation2], 16
    %522 = vst.msk [vmem:[%s521] sm:$0xff] %vm325, %v519
    %s523 = scalar_lea.vmem [#allocation4], 24
    %v524 = vld [vmem:[%s523] sm:$0xff]
    %s525 = scalar_lea.vmem [#allocation5], 96
    %v526 = vld [vmem:[%s525] sm:$0xff]
    %v527 = vadd.f32 %v524, %v526
    %v528 = vpack.c.bf16 %v516, %v516
    %530 = vrot.lane.b32.xlu0 %v528, 32
    %v531 = vpop.permute.xlu0 %530
    %v533 = vsel %vm325, %v531, 0
    %535 = vmatpush.bf16.msra.mxu0 0
    %536 = vmatpush.bf16.msra.mxu0 0
    %537 = vmatpush.bf16.msra.mxu0 0
    %538 = vmatpush.bf16.msra.mxu0 0
    %539 = vmatpush.bf16.msra.mxu0 0
    %540 = vmatpush.bf16.msra.mxu0 0
    %541 = vmatpush.bf16.msra.mxu0 %v322
    %542 = vmatpush.bf16.msra.mxu0 %v321
    %543 = vmatmul.bf16.gmra.mxu0 %v533
    %v544 = vpop.f32.mrf.mxu0
    %v545 = vadd.f32 0.0, %v544
    %v546 = vpop.f32.mrf.mxu0
    %547 = vdwg.mxu0
    %v548 = vadd.f32 %v527, %v545
    %v549 = vxor.u32 %v548, 2147483648
    %v550 = vmul.f32 %v549, 1.442695
    %v551 = vpow.pop %v550
    %v552 = vadd.f32 %v551, 1.0
    %v553 = vrcp.pop %v552
    %v554 = vmul.f32 %v552, %v553
    %v555 = vsub.f32 1.0, %v554
    %v556 = vmul.f32 %v553, %v555
    %v557 = vadd.f32 %v553, %v556
    %vm558 = vweird.f32 %v552
    %vm559 = vweird.f32 %v553
    %vm560 = vmor %vm558, %vm559
    %v561 = vsel %vm560, %v553, %v557
    %v562 = vand.u32 2147483647, %v552
    %vm563 = vcmp.eq.f32.partialorder %v562, 8.507059e+37
    %v564 = vand.u32 %v552, 2147483648
    %v565 = vor.u32 1.1754944e-38, %v564
    %v566 = vsel %vm563, %v565, %v561
    %v567 = vmul.f32 1.0, %v566
    %v568 = vtanh.pop %v548
    %v569 = vmul.f32 %v567, %v510
    %571 = vrot.lane.b32.xlu0 %v568, 64
    %v572 = vpop.permute.xlu0 %571
    %v574 = vmul.f32 %v567, %v572
    %576 = vrot.lane.b32.xlu0 %v574, 32
    %v577 = vpop.permute.xlu0 %576
    %v579 = vadd.f32 %v569, %v577
    %v580 = vtanh.pop %v579
    %582 = vrot.lane.b32.xlu0 %v580, 64
    %v583 = vpop.permute.xlu0 %582
    %v585 = vmul.f32 %v567, %v583
    %587 = vrot.lane.b32.xlu0 %v585, 32
    %v588 = vpop.permute.xlu0 %587
    %s590 = scalar_lea.vmem [#allocation2], 24
    %591 = vst.msk [vmem:[%s590] sm:$0xff] %vm325, %v588
    %s592 = scalar_lea.vmem [#allocation4], 32
    %v593 = vld [vmem:[%s592] sm:$0xff]
    %s594 = scalar_lea.vmem [#allocation5], 88
    %v595 = vld [vmem:[%s594] sm:$0xff]
    %v596 = vadd.f32 %v593, %v595
    %v597 = vpack.c.bf16 %v585, %v585
    %599 = vrot.lane.b32.xlu0 %v597, 32
    %v600 = vpop.permute.xlu0 %599
    %v602 = vsel %vm325, %v600, 0
    %604 = vmatpush.bf16.msra.mxu0 0
    %605 = vmatpush.bf16.msra.mxu0 0
    %606 = vmatpush.bf16.msra.mxu0 0
    %607 = vmatpush.bf16.msra.mxu0 0
    %608 = vmatpush.bf16.msra.mxu0 0
    %609 = vmatpush.bf16.msra.mxu0 0
    %610 = vmatpush.bf16.msra.mxu0 %v322
    %611 = vmatpush.bf16.msra.mxu0 %v321
    %612 = vmatmul.bf16.gmra.mxu0 %v602
    %v613 = vpop.f32.mrf.mxu0
    %v614 = vadd.f32 0.0, %v613
    %v615 = vpop.f32.mrf.mxu0
    %616 = vdwg.mxu0
    %v617 = vadd.f32 %v596, %v614
    %v618 = vxor.u32 %v617, 2147483648
    %v619 = vmul.f32 %v618, 1.442695
    %v620 = vpow.pop %v619
    %v621 = vadd.f32 %v620, 1.0
    %v622 = vrcp.pop %v621
    %v623 = vmul.f32 %v621, %v622
    %v624 = vsub.f32 1.0, %v623
    %v625 = vmul.f32 %v622, %v624
    %v626 = vadd.f32 %v622, %v625
    %vm627 = vweird.f32 %v621
    %vm628 = vweird.f32 %v622
    %vm629 = vmor %vm627, %vm628
    %v630 = vsel %vm629, %v622, %v626
    %v631 = vand.u32 2147483647, %v621
    %vm632 = vcmp.eq.f32.partialorder %v631, 8.507059e+37
    %v633 = vand.u32 %v621, 2147483648
    %v634 = vor.u32 1.1754944e-38, %v633
    %v635 = vsel %vm632, %v634, %v630
    %v636 = vmul.f32 1.0, %v635
    %v637 = vtanh.pop %v617
    %v638 = vmul.f32 %v636, %v579
    %640 = vrot.lane.b32.xlu0 %v637, 64
    %v641 = vpop.permute.xlu0 %640
    %v643 = vmul.f32 %v636, %v641
    %645 = vrot.lane.b32.xlu0 %v643, 32
    %v646 = vpop.permute.xlu0 %645
    %v648 = vadd.f32 %v638, %v646
    %v649 = vtanh.pop %v648
    %651 = vrot.lane.b32.xlu0 %v649, 64
    %v652 = vpop.permute.xlu0 %651
    %v654 = vmul.f32 %v636, %v652
    %656 = vrot.lane.b32.xlu0 %v654, 32
    %v657 = vpop.permute.xlu0 %656
    %s659 = scalar_lea.vmem [#allocation2], 32
    %660 = vst.msk [vmem:[%s659] sm:$0xff] %vm325, %v657
    %s661 = scalar_lea.vmem [#allocation4], 40
    %v662 = vld [vmem:[%s661] sm:$0xff]
    %s663 = scalar_lea.vmem [#allocation5], 80
    %v664 = vld [vmem:[%s663] sm:$0xff]
    %v665 = vadd.f32 %v662, %v664
    %v666 = vpack.c.bf16 %v654, %v654
    %668 = vrot.lane.b32.xlu0 %v666, 32
    %v669 = vpop.permute.xlu0 %668
    %v671 = vsel %vm325, %v669, 0
    %673 = vmatpush.bf16.msra.mxu0 0
    %674 = vmatpush.bf16.msra.mxu0 0
    %675 = vmatpush.bf16.msra.mxu0 0
    %676 = vmatpush.bf16.msra.mxu0 0
    %677 = vmatpush.bf16.msra.mxu0 0
    %678 = vmatpush.bf16.msra.mxu0 0
    %679 = vmatpush.bf16.msra.mxu0 %v322
    %680 = vmatpush.bf16.msra.mxu0 %v321
    %681 = vmatmul.bf16.gmra.mxu0 %v671
    %v682 = vpop.f32.mrf.mxu0
    %v683 = vadd.f32 0.0, %v682
    %v684 = vpop.f32.mrf.mxu0
    %685 = vdwg.mxu0
    %v686 = vadd.f32 %v665, %v683
    %v687 = vxor.u32 %v686, 2147483648
    %v688 = vmul.f32 %v687, 1.442695
    %v689 = vpow.pop %v688
    %v690 = vadd.f32 %v689, 1.0
    %v691 = vrcp.pop %v690
    %v692 = vmul.f32 %v690, %v691
    %v693 = vsub.f32 1.0, %v692
    %v694 = vmul.f32 %v691, %v693
    %v695 = vadd.f32 %v691, %v694
    %vm696 = vweird.f32 %v690
    %vm697 = vweird.f32 %v691
    %vm698 = vmor %vm696, %vm697
    %v699 = vsel %vm698, %v691, %v695
    %v700 = vand.u32 2147483647, %v690
    %vm701 = vcmp.eq.f32.partialorder %v700, 8.507059e+37
    %v702 = vand.u32 %v690, 2147483648
    %v703 = vor.u32 1.1754944e-38, %v702
    %v704 = vsel %vm701, %v703, %v699
    %v705 = vmul.f32 1.0, %v704
    %v706 = vtanh.pop %v686
    %v707 = vmul.f32 %v705, %v648
    %709 = vrot.lane.b32.xlu0 %v706, 64
    %v710 = vpop.permute.xlu0 %709
    %v712 = vmul.f32 %v705, %v710
    %714 = vrot.lane.b32.xlu0 %v712, 32
    %v715 = vpop.permute.xlu0 %714
    %v717 = vadd.f32 %v707, %v715
    %v718 = vtanh.pop %v717
    %720 = vrot.lane.b32.xlu0 %v718, 64
    %v721 = vpop.permute.xlu0 %720
    %v723 = vmul.f32 %v705, %v721
    %725 = vrot.lane.b32.xlu0 %v723, 32
    %v726 = vpop.permute.xlu0 %725
    %s728 = scalar_lea.vmem [#allocation2], 40
    %729 = vst.msk [vmem:[%s728] sm:$0xff] %vm325, %v726
    %s730 = scalar_lea.vmem [#allocation4], 48
    %v731 = vld [vmem:[%s730] sm:$0xff]
    %s732 = scalar_lea.vmem [#allocation5], 72
    %v733 = vld [vmem:[%s732] sm:$0xff]
    %v734 = vadd.f32 %v731, %v733
    %v735 = vpack.c.bf16 %v723, %v723
    %737 = vrot.lane.b32.xlu0 %v735, 32
    %v738 = vpop.permute.xlu0 %737
    %v740 = vsel %vm325, %v738, 0
    %742 = vmatpush.bf16.msra.mxu0 0
    %743 = vmatpush.bf16.msra.mxu0 0
    %744 = vmatpush.bf16.msra.mxu0 0
    %745 = vmatpush.bf16.msra.mxu0 0
    %746 = vmatpush.bf16.msra.mxu0 0
    %747 = vmatpush.bf16.msra.mxu0 0
    %748 = vmatpush.bf16.msra.mxu0 %v322
    %749 = vmatpush.bf16.msra.mxu0 %v321
    %750 = vmatmul.bf16.gmra.mxu0 %v740
    %v751 = vpop.f32.mrf.mxu0
    %v752 = vadd.f32 0.0, %v751
    %v753 = vpop.f32.mrf.mxu0
    %754 = vdwg.mxu0
    %v755 = vadd.f32 %v734, %v752
    %v756 = vxor.u32 %v755, 2147483648
    %v757 = vmul.f32 %v756, 1.442695
    %v758 = vpow.pop %v757
    %v759 = vadd.f32 %v758, 1.0
    %v760 = vrcp.pop %v759
    %v761 = vmul.f32 %v759, %v760
    %v762 = vsub.f32 1.0, %v761
    %v763 = vmul.f32 %v760, %v762
    %v764 = vadd.f32 %v760, %v763
    %vm765 = vweird.f32 %v759
    %vm766 = vweird.f32 %v760
    %vm767 = vmor %vm765, %vm766
    %v768 = vsel %vm767, %v760, %v764
    %v769 = vand.u32 2147483647, %v759
    %vm770 = vcmp.eq.f32.partialorder %v769, 8.507059e+37
    %v771 = vand.u32 %v759, 2147483648
    %v772 = vor.u32 1.1754944e-38, %v771
    %v773 = vsel %vm770, %v772, %v768
    %v774 = vmul.f32 1.0, %v773
    %v775 = vtanh.pop %v755
    %v776 = vmul.f32 %v774, %v717
    %778 = vrot.lane.b32.xlu0 %v775, 64
    %v779 = vpop.permute.xlu0 %778
    %v781 = vmul.f32 %v774, %v779
    %783 = vrot.lane.b32.xlu0 %v781, 32
    %v784 = vpop.permute.xlu0 %783
    %v786 = vadd.f32 %v776, %v784
    %v787 = vtanh.pop %v786
    %789 = vrot.lane.b32.xlu0 %v787, 64
    %v790 = vpop.permute.xlu0 %789
    %v792 = vmul.f32 %v774, %v790
    %794 = vrot.lane.b32.xlu0 %v792, 32
    %v795 = vpop.permute.xlu0 %794
    %s797 = scalar_lea.vmem [#allocation2], 48
    %798 = vst.msk [vmem:[%s797] sm:$0xff] %vm325, %v795
    %s799 = scalar_lea.vmem [#allocation4], 56
    %v800 = vld [vmem:[%s799] sm:$0xff]
    %s801 = scalar_lea.vmem [#allocation5], 64
    %v802 = vld [vmem:[%s801] sm:$0xff]
    %v803 = vadd.f32 %v800, %v802
    %v804 = vpack.c.bf16 %v792, %v792
    %806 = vrot.lane.b32.xlu0 %v804, 32
    %v807 = vpop.permute.xlu0 %806
    %v809 = vsel %vm325, %v807, 0
    %811 = vmatpush.bf16.msra.mxu0 0
    %812 = vmatpush.bf16.msra.mxu0 0
    %813 = vmatpush.bf16.msra.mxu0 0
    %814 = vmatpush.bf16.msra.mxu0 0
    %815 = vmatpush.bf16.msra.mxu0 0
    %816 = vmatpush.bf16.msra.mxu0 0
    %817 = vmatpush.bf16.msra.mxu0 %v322
    %818 = vmatpush.bf16.msra.mxu0 %v321
    %819 = vmatmul.bf16.gmra.mxu0 %v809
    %v820 = vpop.f32.mrf.mxu0
    %v821 = vadd.f32 0.0, %v820
    %v822 = vpop.f32.mrf.mxu0
    %823 = vdwg.mxu0
    %v824 = vadd.f32 %v803, %v821
    %v825 = vxor.u32 %v824, 2147483648
    %v826 = vmul.f32 %v825, 1.442695
    %v827 = vpow.pop %v826
    %v828 = vadd.f32 %v827, 1.0
    %v829 = vrcp.pop %v828
    %v830 = vmul.f32 %v828, %v829
    %v831 = vsub.f32 1.0, %v830
    %v832 = vmul.f32 %v829, %v831
    %v833 = vadd.f32 %v829, %v832
    %vm834 = vweird.f32 %v828
    %vm835 = vweird.f32 %v829
    %vm836 = vmor %vm834, %vm835
    %v837 = vsel %vm836, %v829, %v833
    %v838 = vand.u32 2147483647, %v828
    %vm839 = vcmp.eq.f32.partialorder %v838, 8.507059e+37
    %v840 = vand.u32 %v828, 2147483648
    %v841 = vor.u32 1.1754944e-38, %v840
    %v842 = vsel %vm839, %v841, %v837
    %v843 = vmul.f32 1.0, %v842
    %v844 = vtanh.pop %v824
    %v845 = vmul.f32 %v843, %v786
    %847 = vrot.lane.b32.xlu0 %v844, 64
    %v848 = vpop.permute.xlu0 %847
    %v850 = vmul.f32 %v843, %v848
    %852 = vrot.lane.b32.xlu0 %v850, 32
    %v853 = vpop.permute.xlu0 %852
    %v855 = vadd.f32 %v845, %v853
    %v856 = vtanh.pop %v855
    %858 = vrot.lane.b32.xlu0 %v856, 64
    %v859 = vpop.permute.xlu0 %858
    %v861 = vmul.f32 %v843, %v859
    %863 = vrot.lane.b32.xlu0 %v861, 32
    %v864 = vpop.permute.xlu0 %863
    %s866 = scalar_lea.vmem [#allocation2], 56
    %867 = vst.msk [vmem:[%s866] sm:$0xff] %vm325, %v864
    %s868 = scalar_lea.vmem [#allocation4], 64
    %v869 = vld [vmem:[%s868] sm:$0xff]
    %s870 = scalar_lea.vmem [#allocation5], 56
    %v871 = vld [vmem:[%s870] sm:$0xff]
    %v872 = vadd.f32 %v869, %v871
    %v873 = vpack.c.bf16 %v861, %v861
    %875 = vrot.lane.b32.xlu0 %v873, 32
    %v876 = vpop.permute.xlu0 %875
    %v878 = vsel %vm325, %v876, 0
    %880 = vmatpush.bf16.msra.mxu0 0
    %881 = vmatpush.bf16.msra.mxu0 0
    %882 = vmatpush.bf16.msra.mxu0 0
    %883 = vmatpush.bf16.msra.mxu0 0
    %884 = vmatpush.bf16.msra.mxu0 0
    %885 = vmatpush.bf16.msra.mxu0 0
    %886 = vmatpush.bf16.msra.mxu0 %v322
    %887 = vmatpush.bf16.msra.mxu0 %v321
    %888 = vmatmul.bf16.gmra.mxu0 %v878
    %v889 = vpop.f32.mrf.mxu0
    %v890 = vadd.f32 0.0, %v889
    %v891 = vpop.f32.mrf.mxu0
    %892 = vdwg.mxu0
    %v893 = vadd.f32 %v872, %v890
    %v894 = vxor.u32 %v893, 2147483648
    %v895 = vmul.f32 %v894, 1.442695
    %v896 = vpow.pop %v895
    %v897 = vadd.f32 %v896, 1.0
    %v898 = vrcp.pop %v897
    %v899 = vmul.f32 %v897, %v898
    %v900 = vsub.f32 1.0, %v899
    %v901 = vmul.f32 %v898, %v900
    %v902 = vadd.f32 %v898, %v901
    %vm903 = vweird.f32 %v897
    %vm904 = vweird.f32 %v898
    %vm905 = vmor %vm903, %vm904
    %v906 = vsel %vm905, %v898, %v902
    %v907 = vand.u32 2147483647, %v897
    %vm908 = vcmp.eq.f32.partialorder %v907, 8.507059e+37
    %v909 = vand.u32 %v897, 2147483648
    %v910 = vor.u32 1.1754944e-38, %v909
    %v911 = vsel %vm908, %v910, %v906
    %v912 = vmul.f32 1.0, %v911
    %v913 = vtanh.pop %v893
    %v914 = vmul.f32 %v912, %v855
    %916 = vrot.lane.b32.xlu0 %v913, 64
    %v917 = vpop.permute.xlu0 %916
    %v919 = vmul.f32 %v912, %v917
    %921 = vrot.lane.b32.xlu0 %v919, 32
    %v922 = vpop.permute.xlu0 %921
    %v924 = vadd.f32 %v914, %v922
    %v925 = vtanh.pop %v924
    %927 = vrot.lane.b32.xlu0 %v925, 64
    %v928 = vpop.permute.xlu0 %927
    %v930 = vmul.f32 %v912, %v928
    %932 = vrot.lane.b32.xlu0 %v930, 32
    %v933 = vpop.permute.xlu0 %932
    %s935 = scalar_lea.vmem [#allocation2], 64
    %936 = vst.msk [vmem:[%s935] sm:$0xff] %vm325, %v933
    %s937 = scalar_lea.vmem [#allocation4], 72
    %v938 = vld [vmem:[%s937] sm:$0xff]
    %s939 = scalar_lea.vmem [#allocation5], 48
    %v940 = vld [vmem:[%s939] sm:$0xff]
    %v941 = vadd.f32 %v938, %v940
    %v942 = vpack.c.bf16 %v930, %v930
    %944 = vrot.lane.b32.xlu0 %v942, 32
    %v945 = vpop.permute.xlu0 %944
    %v947 = vsel %vm325, %v945, 0
    %949 = vmatpush.bf16.msra.mxu0 0
    %950 = vmatpush.bf16.msra.mxu0 0
    %951 = vmatpush.bf16.msra.mxu0 0
    %952 = vmatpush.bf16.msra.mxu0 0
    %953 = vmatpush.bf16.msra.mxu0 0
    %954 = vmatpush.bf16.msra.mxu0 0
    %955 = vmatpush.bf16.msra.mxu0 %v322
    %956 = vmatpush.bf16.msra.mxu0 %v321
    %957 = vmatmul.bf16.gmra.mxu0 %v947
    %v958 = vpop.f32.mrf.mxu0
    %v959 = vadd.f32 0.0, %v958
    %v960 = vpop.f32.mrf.mxu0
    %961 = vdwg.mxu0
    %v962 = vadd.f32 %v941, %v959
    %v963 = vxor.u32 %v962, 2147483648
    %v964 = vmul.f32 %v963, 1.442695
    %v965 = vpow.pop %v964
    %v966 = vadd.f32 %v965, 1.0
    %v967 = vrcp.pop %v966
    %v968 = vmul.f32 %v966, %v967
    %v969 = vsub.f32 1.0, %v968
    %v970 = vmul.f32 %v967, %v969
    %v971 = vadd.f32 %v967, %v970
    %vm972 = vweird.f32 %v966
    %vm973 = vweird.f32 %v967
    %vm974 = vmor %vm972, %vm973
    %v975 = vsel %vm974, %v967, %v971
    %v976 = vand.u32 2147483647, %v966
    %vm977 = vcmp.eq.f32.partialorder %v976, 8.507059e+37
    %v978 = vand.u32 %v966, 2147483648
    %v979 = vor.u32 1.1754944e-38, %v978
    %v980 = vsel %vm977, %v979, %v975
    %v981 = vmul.f32 1.0, %v980
    %v982 = vtanh.pop %v962
    %v983 = vmul.f32 %v981, %v924
    %985 = vrot.lane.b32.xlu0 %v982, 64
    %v986 = vpop.permute.xlu0 %985
    %v988 = vmul.f32 %v981, %v986
    %990 = vrot.lane.b32.xlu0 %v988, 32
    %v991 = vpop.permute.xlu0 %990
    %v993 = vadd.f32 %v983, %v991
    %v994 = vtanh.pop %v993
    %996 = vrot.lane.b32.xlu0 %v994, 64
    %v997 = vpop.permute.xlu0 %996
    %v999 = vmul.f32 %v981, %v997
    %1001 = vrot.lane.b32.xlu0 %v999, 32
    %v1002 = vpop.permute.xlu0 %1001
    %s1004 = scalar_lea.vmem [#allocation2], 72
    %1005 = vst.msk [vmem:[%s1004] sm:$0xff] %vm325, %v1002
    %s1006 = scalar_lea.vmem [#allocation4], 80
    %v1007 = vld [vmem:[%s1006] sm:$0xff]
    %s1008 = scalar_lea.vmem [#allocation5], 40
    %v1009 = vld [vmem:[%s1008] sm:$0xff]
    %v1010 = vadd.f32 %v1007, %v1009
    %v1011 = vpack.c.bf16 %v999, %v999
    %1013 = vrot.lane.b32.xlu0 %v1011, 32
    %v1014 = vpop.permute.xlu0 %1013
    %v1016 = vsel %vm325, %v1014, 0
    %1018 = vmatpush.bf16.msra.mxu0 0
    %1019 = vmatpush.bf16.msra.mxu0 0
    %1020 = vmatpush.bf16.msra.mxu0 0
    %1021 = vmatpush.bf16.msra.mxu0 0
    %1022 = vmatpush.bf16.msra.mxu0 0
    %1023 = vmatpush.bf16.msra.mxu0 0
    %1024 = vmatpush.bf16.msra.mxu0 %v322
    %1025 = vmatpush.bf16.msra.mxu0 %v321
    %1026 = vmatmul.bf16.gmra.mxu0 %v1016
    %v1027 = vpop.f32.mrf.mxu0
    %v1028 = vadd.f32 0.0, %v1027
    %v1029 = vpop.f32.mrf.mxu0
    %1030 = vdwg.mxu0
    %v1031 = vadd.f32 %v1010, %v1028
    %v1032 = vxor.u32 %v1031, 2147483648
    %v1033 = vmul.f32 %v1032, 1.442695
    %v1034 = vpow.pop %v1033
    %v1035 = vadd.f32 %v1034, 1.0
    %v1036 = vrcp.pop %v1035
    %v1037 = vmul.f32 %v1035, %v1036
    %v1038 = vsub.f32 1.0, %v1037
    %v1039 = vmul.f32 %v1036, %v1038
    %v1040 = vadd.f32 %v1036, %v1039
    %vm1041 = vweird.f32 %v1035
    %vm1042 = vweird.f32 %v1036
    %vm1043 = vmor %vm1041, %vm1042
    %v1044 = vsel %vm1043, %v1036, %v1040
    %v1045 = vand.u32 2147483647, %v1035
    %vm1046 = vcmp.eq.f32.partialorder %v1045, 8.507059e+37
    %v1047 = vand.u32 %v1035, 2147483648
    %v1048 = vor.u32 1.1754944e-38, %v1047
    %v1049 = vsel %vm1046, %v1048, %v1044
    %v1050 = vmul.f32 1.0, %v1049
    %v1051 = vtanh.pop %v1031
    %v1052 = vmul.f32 %v1050, %v993
    %1054 = vrot.lane.b32.xlu0 %v1051, 64
    %v1055 = vpop.permute.xlu0 %1054
    %v1057 = vmul.f32 %v1050, %v1055
    %1059 = vrot.lane.b32.xlu0 %v1057, 32
    %v1060 = vpop.permute.xlu0 %1059
    %v1062 = vadd.f32 %v1052, %v1060
    %v1063 = vtanh.pop %v1062
    %1065 = vrot.lane.b32.xlu0 %v1063, 64
    %v1066 = vpop.permute.xlu0 %1065
    %v1068 = vmul.f32 %v1050, %v1066
    %1070 = vrot.lane.b32.xlu0 %v1068, 32
    %v1071 = vpop.permute.xlu0 %1070
    %s1073 = scalar_lea.vmem [#allocation2], 80
    %1074 = vst.msk [vmem:[%s1073] sm:$0xff] %vm325, %v1071
    %s1075 = scalar_lea.vmem [#allocation4], 88
    %v1076 = vld [vmem:[%s1075] sm:$0xff]
    %s1077 = scalar_lea.vmem [#allocation5], 32
    %v1078 = vld [vmem:[%s1077] sm:$0xff]
    %v1079 = vadd.f32 %v1076, %v1078
    %v1080 = vpack.c.bf16 %v1068, %v1068
    %1082 = vrot.lane.b32.xlu0 %v1080, 32
    %v1083 = vpop.permute.xlu0 %1082
    %v1085 = vsel %vm325, %v1083, 0
    %1087 = vmatpush.bf16.msra.mxu0 0
    %1088 = vmatpush.bf16.msra.mxu0 0
    %1089 = vmatpush.bf16.msra.mxu0 0
    %1090 = vmatpush.bf16.msra.mxu0 0
    %1091 = vmatpush.bf16.msra.mxu0 0
    %1092 = vmatpush.bf16.msra.mxu0 0
    %1093 = vmatpush.bf16.msra.mxu0 %v322
    %1094 = vmatpush.bf16.msra.mxu0 %v321
    %1095 = vmatmul.bf16.gmra.mxu0 %v1085
    %v1096 = vpop.f32.mrf.mxu0
    %v1097 = vadd.f32 0.0, %v1096
    %v1098 = vpop.f32.mrf.mxu0
    %1099 = vdwg.mxu0
    %v1100 = vadd.f32 %v1079, %v1097
    %v1101 = vxor.u32 %v1100, 2147483648
    %v1102 = vmul.f32 %v1101, 1.442695
    %v1103 = vpow.pop %v1102
    %v1104 = vadd.f32 %v1103, 1.0
    %v1105 = vrcp.pop %v1104
    %v1106 = vmul.f32 %v1104, %v1105
    %v1107 = vsub.f32 1.0, %v1106
    %v1108 = vmul.f32 %v1105, %v1107
    %v1109 = vadd.f32 %v1105, %v1108
    %vm1110 = vweird.f32 %v1104
    %vm1111 = vweird.f32 %v1105
    %vm1112 = vmor %vm1110, %vm1111
    %v1113 = vsel %vm1112, %v1105, %v1109
    %v1114 = vand.u32 2147483647, %v1104
    %vm1115 = vcmp.eq.f32.partialorder %v1114, 8.507059e+37
    %v1116 = vand.u32 %v1104, 2147483648
    %v1117 = vor.u32 1.1754944e-38, %v1116
    %v1118 = vsel %vm1115, %v1117, %v1113
    %v1119 = vmul.f32 1.0, %v1118
    %v1120 = vtanh.pop %v1100
    %v1121 = vmul.f32 %v1119, %v1062
    %1123 = vrot.lane.b32.xlu0 %v1120, 64
    %v1124 = vpop.permute.xlu0 %1123
    %v1126 = vmul.f32 %v1119, %v1124
    %1128 = vrot.lane.b32.xlu0 %v1126, 32
    %v1129 = vpop.permute.xlu0 %1128
    %v1131 = vadd.f32 %v1121, %v1129
    %v1132 = vtanh.pop %v1131
    %1134 = vrot.lane.b32.xlu0 %v1132, 64
    %v1135 = vpop.permute.xlu0 %1134
    %v1137 = vmul.f32 %v1119, %v1135
    %1139 = vrot.lane.b32.xlu0 %v1137, 32
    %v1140 = vpop.permute.xlu0 %1139
    %s1142 = scalar_lea.vmem [#allocation2], 88
    %1143 = vst.msk [vmem:[%s1142] sm:$0xff] %vm325, %v1140
    %s1144 = scalar_lea.vmem [#allocation4], 96
    %v1145 = vld [vmem:[%s1144] sm:$0xff]
    %s1146 = scalar_lea.vmem [#allocation5], 24
    %v1147 = vld [vmem:[%s1146] sm:$0xff]
    %v1148 = vadd.f32 %v1145, %v1147
    %v1149 = vpack.c.bf16 %v1137, %v1137
    %1151 = vrot.lane.b32.xlu0 %v1149, 32
    %v1152 = vpop.permute.xlu0 %1151
    %v1154 = vsel %vm325, %v1152, 0
    %1156 = vmatpush.bf16.msra.mxu0 0
    %1157 = vmatpush.bf16.msra.mxu0 0
    %1158 = vmatpush.bf16.msra.mxu0 0
    %1159 = vmatpush.bf16.msra.mxu0 0
    %1160 = vmatpush.bf16.msra.mxu0 0
    %1161 = vmatpush.bf16.msra.mxu0 0
    %1162 = vmatpush.bf16.msra.mxu0 %v322
    %1163 = vmatpush.bf16.msra.mxu0 %v321
    %1164 = vmatmul.bf16.gmra.mxu0 %v1154
    %v1165 = vpop.f32.mrf.mxu0
    %v1166 = vadd.f32 0.0, %v1165
    %v1167 = vpop.f32.mrf.mxu0
    %1168 = vdwg.mxu0
    %v1169 = vadd.f32 %v1148, %v1166
    %v1170 = vxor.u32 %v1169, 2147483648
    %v1171 = vmul.f32 %v1170, 1.442695
    %v1172 = vpow.pop %v1171
    %v1173 = vadd.f32 %v1172, 1.0
    %v1174 = vrcp.pop %v1173
    %v1175 = vmul.f32 %v1173, %v1174
    %v1176 = vsub.f32 1.0, %v1175
    %v1177 = vmul.f32 %v1174, %v1176
    %v1178 = vadd.f32 %v1174, %v1177
    %vm1179 = vweird.f32 %v1173
    %vm1180 = vweird.f32 %v1174
    %vm1181 = vmor %vm1179, %vm1180
    %v1182 = vsel %vm1181, %v1174, %v1178
    %v1183 = vand.u32 2147483647, %v1173
    %vm1184 = vcmp.eq.f32.partialorder %v1183, 8.507059e+37
    %v1185 = vand.u32 %v1173, 2147483648
    %v1186 = vor.u32 1.1754944e-38, %v1185
    %v1187 = vsel %vm1184, %v1186, %v1182
    %v1188 = vmul.f32 1.0, %v1187
    %v1189 = vtanh.pop %v1169
    %v1190 = vmul.f32 %v1188, %v1131
    %1192 = vrot.lane.b32.xlu0 %v1189, 64
    %v1193 = vpop.permute.xlu0 %1192
    %v1195 = vmul.f32 %v1188, %v1193
    %1197 = vrot.lane.b32.xlu0 %v1195, 32
    %v1198 = vpop.permute.xlu0 %1197
    %v1200 = vadd.f32 %v1190, %v1198
    %v1201 = vtanh.pop %v1200
    %1203 = vrot.lane.b32.xlu0 %v1201, 64
    %v1204 = vpop.permute.xlu0 %1203
    %v1206 = vmul.f32 %v1188, %v1204
    %1208 = vrot.lane.b32.xlu0 %v1206, 32
    %v1209 = vpop.permute.xlu0 %1208
    %s1211 = scalar_lea.vmem [#allocation2], 96
    %1212 = vst.msk [vmem:[%s1211] sm:$0xff] %vm325, %v1209
    %s1213 = scalar_lea.vmem [#allocation4], 104
    %v1214 = vld [vmem:[%s1213] sm:$0xff]
    %s1215 = scalar_lea.vmem [#allocation5], 16
    %v1216 = vld [vmem:[%s1215] sm:$0xff]
    %v1217 = vadd.f32 %v1214, %v1216
    %v1218 = vpack.c.bf16 %v1206, %v1206
    %1220 = vrot.lane.b32.xlu0 %v1218, 32
    %v1221 = vpop.permute.xlu0 %1220
    %v1223 = vsel %vm325, %v1221, 0
    %1225 = vmatpush.bf16.msra.mxu0 0
    %1226 = vmatpush.bf16.msra.mxu0 0
    %1227 = vmatpush.bf16.msra.mxu0 0
    %1228 = vmatpush.bf16.msra.mxu0 0
    %1229 = vmatpush.bf16.msra.mxu0 0
    %1230 = vmatpush.bf16.msra.mxu0 0
    %1231 = vmatpush.bf16.msra.mxu0 %v322
    %1232 = vmatpush.bf16.msra.mxu0 %v321
    %1233 = vmatmul.bf16.gmra.mxu0 %v1223
    %v1234 = vpop.f32.mrf.mxu0
    %v1235 = vadd.f32 0.0, %v1234
    %v1236 = vpop.f32.mrf.mxu0
    %1237 = vdwg.mxu0
    %v1238 = vadd.f32 %v1217, %v1235
    %v1239 = vxor.u32 %v1238, 2147483648
    %v1240 = vmul.f32 %v1239, 1.442695
    %v1241 = vpow.pop %v1240
    %v1242 = vadd.f32 %v1241, 1.0
    %v1243 = vrcp.pop %v1242
    %v1244 = vmul.f32 %v1242, %v1243
    %v1245 = vsub.f32 1.0, %v1244
    %v1246 = vmul.f32 %v1243, %v1245
    %v1247 = vadd.f32 %v1243, %v1246
    %vm1248 = vweird.f32 %v1242
    %vm1249 = vweird.f32 %v1243
    %vm1250 = vmor %vm1248, %vm1249
    %v1251 = vsel %vm1250, %v1243, %v1247
    %v1252 = vand.u32 2147483647, %v1242
    %vm1253 = vcmp.eq.f32.partialorder %v1252, 8.507059e+37
    %v1254 = vand.u32 %v1242, 2147483648
    %v1255 = vor.u32 1.1754944e-38, %v1254
    %v1256 = vsel %vm1253, %v1255, %v1251
    %v1257 = vmul.f32 1.0, %v1256
    %v1258 = vtanh.pop %v1238
    %v1259 = vmul.f32 %v1257, %v1200
    %1261 = vrot.lane.b32.xlu0 %v1258, 64
    %v1262 = vpop.permute.xlu0 %1261
    %v1264 = vmul.f32 %v1257, %v1262
    %1266 = vrot.lane.b32.xlu0 %v1264, 32
    %v1267 = vpop.permute.xlu0 %1266
    %v1269 = vadd.f32 %v1259, %v1267
    %v1270 = vtanh.pop %v1269
    %1272 = vrot.lane.b32.xlu0 %v1270, 64
    %v1273 = vpop.permute.xlu0 %1272
    %v1275 = vmul.f32 %v1257, %v1273
    %1277 = vrot.lane.b32.xlu0 %v1275, 32
    %v1278 = vpop.permute.xlu0 %1277
    %s1280 = scalar_lea.vmem [#allocation2], 104
    %1281 = vst.msk [vmem:[%s1280] sm:$0xff] %vm325, %v1278
    %s1282 = scalar_lea.vmem [#allocation4], 112
    %v1283 = vld [vmem:[%s1282] sm:$0xff]
    %s1284 = scalar_lea.vmem [#allocation5], 8
    %v1285 = vld [vmem:[%s1284] sm:$0xff]
    %v1286 = vadd.f32 %v1283, %v1285
    %v1287 = vpack.c.bf16 %v1275, %v1275
    %1289 = vrot.lane.b32.xlu0 %v1287, 32
    %v1290 = vpop.permute.xlu0 %1289
    %v1292 = vsel %vm325, %v1290, 0
    %1294 = vmatpush.bf16.msra.mxu0 0
    %1295 = vmatpush.bf16.msra.mxu0 0
    %1296 = vmatpush.bf16.msra.mxu0 0
    %1297 = vmatpush.bf16.msra.mxu0 0
    %1298 = vmatpush.bf16.msra.mxu0 0
    %1299 = vmatpush.bf16.msra.mxu0 0
    %1300 = vmatpush.bf16.msra.mxu0 %v322
    %1301 = vmatpush.bf16.msra.mxu0 %v321
    %1302 = vmatmul.bf16.gmra.mxu0 %v1292
    %v1303 = vpop.f32.mrf.mxu0
    %v1304 = vadd.f32 0.0, %v1303
    %v1305 = vpop.f32.mrf.mxu0
    %1306 = vdwg.mxu0
    %v1307 = vadd.f32 %v1286, %v1304
    %v1308 = vxor.u32 %v1307, 2147483648
    %v1309 = vmul.f32 %v1308, 1.442695
    %v1310 = vpow.pop %v1309
    %v1311 = vadd.f32 %v1310, 1.0
    %v1312 = vrcp.pop %v1311
    %v1313 = vmul.f32 %v1311, %v1312
    %v1314 = vsub.f32 1.0, %v1313
    %v1315 = vmul.f32 %v1312, %v1314
    %v1316 = vadd.f32 %v1312, %v1315
    %vm1317 = vweird.f32 %v1311
    %vm1318 = vweird.f32 %v1312
    %vm1319 = vmor %vm1317, %vm1318
    %v1320 = vsel %vm1319, %v1312, %v1316
    %v1321 = vand.u32 2147483647, %v1311
    %vm1322 = vcmp.eq.f32.partialorder %v1321, 8.507059e+37
    %v1323 = vand.u32 %v1311, 2147483648
    %v1324 = vor.u32 1.1754944e-38, %v1323
    %v1325 = vsel %vm1322, %v1324, %v1320
    %v1326 = vmul.f32 1.0, %v1325
    %v1327 = vtanh.pop %v1307
    %v1328 = vmul.f32 %v1326, %v1269
    %1330 = vrot.lane.b32.xlu0 %v1327, 64
    %v1331 = vpop.permute.xlu0 %1330
    %v1333 = vmul.f32 %v1326, %v1331
    %1335 = vrot.lane.b32.xlu0 %v1333, 32
    %v1336 = vpop.permute.xlu0 %1335
    %v1338 = vadd.f32 %v1328, %v1336
    %v1339 = vtanh.pop %v1338
    %1341 = vrot.lane.b32.xlu0 %v1339, 64
    %v1342 = vpop.permute.xlu0 %1341
    %v1344 = vmul.f32 %v1326, %v1342
    %1346 = vrot.lane.b32.xlu0 %v1344, 32
    %v1347 = vpop.permute.xlu0 %1346
    %s1349 = scalar_lea.vmem [#allocation2], 112
    %1350 = vst.msk [vmem:[%s1349] sm:$0xff] %vm325, %v1347
    %s1351 = scalar_lea.vmem [#allocation4], 120
    %v1352 = vld [vmem:[%s1351] sm:$0xff]
    %v1353 = vld [vmem:[#allocation5] sm:$0xff]
    %v1354 = vadd.f32 %v1352, %v1353
    %v1355 = vpack.c.bf16 %v1344, %v1344
    %1357 = vrot.lane.b32.xlu0 %v1355, 32
    %v1358 = vpop.permute.xlu0 %1357
    %v1360 = vsel %vm325, %v1358, 0
    %1362 = vmatpush.bf16.msra.mxu0 0
    %1363 = vmatpush.bf16.msra.mxu0 0
    %1364 = vmatpush.bf16.msra.mxu0 0
    %1365 = vmatpush.bf16.msra.mxu0 0
    %1366 = vmatpush.bf16.msra.mxu0 0
    %1367 = vmatpush.bf16.msra.mxu0 0
    %1368 = vmatpush.bf16.msra.mxu0 %v322
    %1369 = vmatpush.bf16.msra.mxu0 %v321
    %1370 = vmatmul.bf16.gmra.mxu0 %v1360
    %v1371 = vpop.f32.mrf.mxu0
    %v1372 = vadd.f32 0.0, %v1371
    %v1373 = vpop.f32.mrf.mxu0
    %1374 = vdwg.mxu0
    %v1375 = vadd.f32 %v1354, %v1372
    %v1376 = vxor.u32 %v1375, 2147483648
    %v1377 = vmul.f32 %v1376, 1.442695
    %v1378 = vpow.pop %v1377
    %v1379 = vadd.f32 %v1378, 1.0
    %v1380 = vrcp.pop %v1379
    %v1381 = vmul.f32 %v1379, %v1380
    %v1382 = vsub.f32 1.0, %v1381
    %v1383 = vmul.f32 %v1380, %v1382
    %v1384 = vadd.f32 %v1380, %v1383
    %vm1385 = vweird.f32 %v1379
    %vm1386 = vweird.f32 %v1380
    %vm1387 = vmor %vm1385, %vm1386
    %v1388 = vsel %vm1387, %v1380, %v1384
    %v1389 = vand.u32 2147483647, %v1379
    %vm1390 = vcmp.eq.f32.partialorder %v1389, 8.507059e+37
    %v1391 = vand.u32 %v1379, 2147483648
    %v1392 = vor.u32 1.1754944e-38, %v1391
    %v1393 = vsel %vm1390, %v1392, %v1388
    %v1394 = vmul.f32 1.0, %v1393
    %v1395 = vtanh.pop %v1375
    %v1396 = vmul.f32 %v1394, %v1338
    %1398 = vrot.lane.b32.xlu0 %v1395, 64
    %v1399 = vpop.permute.xlu0 %1398
    %v1401 = vmul.f32 %v1394, %v1399
    %1403 = vrot.lane.b32.xlu0 %v1401, 32
    %v1404 = vpop.permute.xlu0 %1403
    %v1406 = vadd.f32 %v1396, %v1404
    %v1407 = vtanh.pop %v1406
    %1409 = vrot.lane.b32.xlu0 %v1407, 64
    %v1410 = vpop.permute.xlu0 %1409
    %v1412 = vmul.f32 %v1394, %v1410
    %1414 = vrot.lane.b32.xlu0 %v1412, 32
    %v1415 = vpop.permute.xlu0 %1414
    %s1417 = scalar_lea.vmem [#allocation2], 120
    %1418 = vst.msk [vmem:[%s1417] sm:$0xff] %vm325, %v1415
    %v1419 = vld [vmem:[#allocation2] sm:$0xff]
    %v1420 = vld [vmem:[#allocation2 + $0x8] sm:$0xff]
    %v1421 = vld [vmem:[#allocation2 + $0x10] sm:$0xff]
    %v1422 = vld [vmem:[#allocation2 + $0x18] sm:$0xff]
    %v1423 = vld [vmem:[#allocation2 + $0x20] sm:$0xff]
    %v1424 = vld [vmem:[#allocation2 + $0x28] sm:$0xff]
    %v1425 = vld [vmem:[#allocation2 + $0x30] sm:$0xff]
    %v1426 = vld [vmem:[#allocation2 + $0x38] sm:$0xff]
    %v1427 = vld [vmem:[#allocation2 + $0x40] sm:$0xff]
    %v1428 = vld [vmem:[#allocation2 + $0x48] sm:$0xff]
    %v1429 = vld [vmem:[#allocation2 + $0x50] sm:$0xff]
    %v1430 = vld [vmem:[#allocation2 + $0x58] sm:$0xff]
    %v1431 = vld [vmem:[#allocation2 + $0x60] sm:$0xff]
    %v1432 = vld [vmem:[#allocation2 + $0x68] sm:$0xff]
    %v1433 = vld [vmem:[#allocation2 + $0x70] sm:$0xff]
    %v1434 = vld [vmem:[#allocation2 + $0x78] sm:$0xff]
    %vm1435 = vcmask 130048
    %1436 = vst.msk [vmem:[#allocation3] sm:$0xff] %vm1435, %v1419
    %1437 = vst.msk [vmem:[#allocation3 + $0x8] sm:$0xff] %vm1435, %v1420
    %1438 = vst.msk [vmem:[#allocation3 + $0x10] sm:$0xff] %vm1435, %v1421
    %1439 = vst.msk [vmem:[#allocation3 + $0x18] sm:$0xff] %vm1435, %v1422
    %1440 = vst.msk [vmem:[#allocation3 + $0x20] sm:$0xff] %vm1435, %v1423
    %1441 = vst.msk [vmem:[#allocation3 + $0x28] sm:$0xff] %vm1435, %v1424
    %1442 = vst.msk [vmem:[#allocation3 + $0x30] sm:$0xff] %vm1435, %v1425
    %1443 = vst.msk [vmem:[#allocation3 + $0x38] sm:$0xff] %vm1435, %v1426
    %1444 = vst.msk [vmem:[#allocation3 + $0x40] sm:$0xff] %vm1435, %v1427
    %1445 = vst.msk [vmem:[#allocation3 + $0x48] sm:$0xff] %vm1435, %v1428
    %1446 = vst.msk [vmem:[#allocation3 + $0x50] sm:$0xff] %vm1435, %v1429
    %1447 = vst.msk [vmem:[#allocation3 + $0x58] sm:$0xff] %vm1435, %v1430
    %1448 = vst.msk [vmem:[#allocation3 + $0x60] sm:$0xff] %vm1435, %v1431
    %1449 = vst.msk [vmem:[#allocation3 + $0x68] sm:$0xff] %vm1435, %v1432
    %1450 = vst.msk [vmem:[#allocation3 + $0x70] sm:$0xff] %vm1435, %v1433
    %1451 = vst.msk [vmem:[#allocation3 + $0x78] sm:$0xff] %vm1435, %v1434
    %v1452 = vld [vmem:[#allocation2 + $0x78] sm:$0xff]
    %vm1453 = vcmask 261248
    %1454 = vst.msk [vmem:[#allocation3] sm:$0xff] %vm1453, %v1452
    %v1455 = vld [vmem:[#allocation2 + $0x70] sm:$0xff]
    %1456 = vst.msk [vmem:[#allocation3 + $0x8] sm:$0xff] %vm1453, %v1455
    %v1457 = vld [vmem:[#allocation2 + $0x68] sm:$0xff]
    %1458 = vst.msk [vmem:[#allocation3 + $0x10] sm:$0xff] %vm1453, %v1457
    %v1459 = vld [vmem:[#allocation2 + $0x60] sm:$0xff]
    %1460 = vst.msk [vmem:[#allocation3 + $0x18] sm:$0xff] %vm1453, %v1459
    %v1461 = vld [vmem:[#allocation2 + $0x58] sm:$0xff]
    %1462 = vst.msk [vmem:[#allocation3 + $0x20] sm:$0xff] %vm1453, %v1461
    %v1463 = vld [vmem:[#allocation2 + $0x50] sm:$0xff]
    %1464 = vst.msk [vmem:[#allocation3 + $0x28] sm:$0xff] %vm1453, %v1463
    %v1465 = vld [vmem:[#allocation2 + $0x48] sm:$0xff]
    %1466 = vst.msk [vmem:[#allocation3 + $0x30] sm:$0xff] %vm1453, %v1465
    %v1467 = vld [vmem:[#allocation2 + $0x40] sm:$0xff]
    %1468 = vst.msk [vmem:[#allocation3 + $0x38] sm:$0xff] %vm1453, %v1467
    %v1469 = vld [vmem:[#allocation2 + $0x38] sm:$0xff]
    %1470 = vst.msk [vmem:[#allocation3 + $0x40] sm:$0xff] %vm1453, %v1469
    %v1471 = vld [vmem:[#allocation2 + $0x30] sm:$0xff]
    %1472 = vst.msk [vmem:[#allocation3 + $0x48] sm:$0xff] %vm1453, %v1471
    %v1473 = vld [vmem:[#allocation2 + $0x28] sm:$0xff]
    %1474 = vst.msk [vmem:[#allocation3 + $0x50] sm:$0xff] %vm1453, %v1473
    %v1475 = vld [vmem:[#allocation2 + $0x20] sm:$0xff]
    %1476 = vst.msk [vmem:[#allocation3 + $0x58] sm:$0xff] %vm1453, %v1475
    %v1477 = vld [vmem:[#allocation2 + $0x18] sm:$0xff]
    %1478 = vst.msk [vmem:[#allocation3 + $0x60] sm:$0xff] %vm1453, %v1477
    %v1479 = vld [vmem:[#allocation2 + $0x10] sm:$0xff]
    %1480 = vst.msk [vmem:[#allocation3 + $0x68] sm:$0xff] %vm1453, %v1479
    %v1481 = vld [vmem:[#allocation2 + $0x8] sm:$0xff]
    %1482 = vst.msk [vmem:[#allocation3 + $0x70] sm:$0xff] %vm1453, %v1481
    %v1483 = vld [vmem:[#allocation2] sm:$0xff]
    %1484 = vst.msk [vmem:[#allocation3 + $0x78] sm:$0xff] %vm1453, %v1483
    %v1485 = vld [vmem:[#allocation3] sm:$0xff]
    %v1486 = vld [vmem:[#allocation3 + $0x8] sm:$0xff]
    %v1487 = vld [vmem:[#allocation3 + $0x10] sm:$0xff]
    %v1488 = vld [vmem:[#allocation3 + $0x18] sm:$0xff]
    %v1489 = vld [vmem:[#allocation3 + $0x20] sm:$0xff]
    %v1490 = vld [vmem:[#allocation3 + $0x28] sm:$0xff]
    %v1491 = vld [vmem:[#allocation3 + $0x30] sm:$0xff]
    %v1492 = vld [vmem:[#allocation3 + $0x38] sm:$0xff]
    %v1493 = vld [vmem:[#allocation3 + $0x40] sm:$0xff]
    %v1494 = vld [vmem:[#allocation3 + $0x48] sm:$0xff]
    %v1495 = vld [vmem:[#allocation3 + $0x50] sm:$0xff]
    %v1496 = vld [vmem:[#allocation3 + $0x58] sm:$0xff]
    %v1497 = vld [vmem:[#allocation3 + $0x60] sm:$0xff]
    %v1498 = vld [vmem:[#allocation3 + $0x68] sm:$0xff]
    %v1499 = vld [vmem:[#allocation3 + $0x70] sm:$0xff]
    %v1500 = vld [vmem:[#allocation3 + $0x78] sm:$0xff]
    %v1501 = vld [vmem:[%s5] sm:$0xff]
    %v1502 = vld [vmem:[%s5 + $0x8] sm:$0xff]
    %v1503 = vld [vmem:[%s5 + $0x10] sm:$0xff]
    %v1504 = vld [vmem:[%s5 + $0x18] sm:$0xff]
    %v1505 = vld [vmem:[%s7] sm:$0x1]
    %v1507 = vperm.slane %v1505, 0
    %v1510 = vsel %vm325, %v1485, 0
    %v1513 = vsel %vm325, %v1486, 0
    %v1516 = vsel %vm325, %v1487, 0
    %v1519 = vsel %vm325, %v1488, 0
    %v1522 = vsel %vm325, %v1489, 0
    %v1525 = vsel %vm325, %v1490, 0
    %v1528 = vsel %vm325, %v1491, 0
    %v1531 = vsel %vm325, %v1492, 0
    %v1534 = vsel %vm325, %v1493, 0
    %v1537 = vsel %vm325, %v1494, 0
    %v1540 = vsel %vm325, %v1495, 0
    %v1543 = vsel %vm325, %v1496, 0
    %v1546 = vsel %vm325, %v1497, 0
    %v1549 = vsel %vm325, %v1498, 0
    %v1552 = vsel %vm325, %v1499, 0
    %v1555 = vsel %vm325, %v1500, 0
    %1557 = vmatpush.msra.mxu0 0.0
    %1558 = vmatpush.msra.mxu0 0.0
    %1559 = vmatpush.msra.mxu0 0.0
    %1560 = vmatpush.msra.mxu0 0.0
    %1561 = vmatpush.msra.mxu0 0.0
    %1562 = vmatpush.msra.mxu0 0.0
    %1563 = vmatpush.msra.mxu0 0.0
    %1564 = vmatpush.msra.mxu0 0.0
    %1565 = vmatpush.msra.mxu0 0.0
    %1566 = vmatpush.msra.mxu0 0.0
    %1567 = vmatpush.msra.mxu0 0.0
    %1568 = vmatpush.msra.mxu0 0.0
    %1569 = vmatpush.msra.mxu0 %v1504
    %1570 = vmatpush.msra.mxu0 %v1503
    %1571 = vmatpush.msra.mxu0 %v1502
    %1572 = vmatpush.msra.mxu0 %v1501
    %1573 = vmatmul.f32.gmra.mxu0 %v1510
    %v1574 = vpop.f32.mrf.mxu0
    %v1575 = vadd.f32 %v1507, %v1574
    %1576 = vmatmul.f32.gmra.mxu0 %v1513
    %v1577 = vpop.f32.mrf.mxu0
    %v1578 = vadd.f32 %v1507, %v1577
    %1579 = vmatmul.f32.gmra.mxu0 %v1516
    %v1580 = vpop.f32.mrf.mxu0
    %v1581 = vadd.f32 %v1507, %v1580
    %1582 = vmatmul.f32.gmra.mxu0 %v1519
    %v1583 = vpop.f32.mrf.mxu0
    %v1584 = vadd.f32 %v1507, %v1583
    %1585 = vmatmul.f32.gmra.mxu0 %v1522
    %v1586 = vpop.f32.mrf.mxu0
    %v1587 = vadd.f32 %v1507, %v1586
    %1588 = vmatmul.f32.gmra.mxu0 %v1525
    %v1589 = vpop.f32.mrf.mxu0
    %v1590 = vadd.f32 %v1507, %v1589
    %1591 = vmatmul.f32.gmra.mxu0 %v1528
    %v1592 = vpop.f32.mrf.mxu0
    %v1593 = vadd.f32 %v1507, %v1592
    %1594 = vmatmul.f32.gmra.mxu0 %v1531
    %v1595 = vpop.f32.mrf.mxu0
    %v1596 = vadd.f32 %v1507, %v1595
    %1597 = vmatmul.f32.gmra.mxu0 %v1534
    %v1598 = vpop.f32.mrf.mxu0
    %v1599 = vadd.f32 %v1507, %v1598
    %1600 = vmatmul.f32.gmra.mxu0 %v1537
    %v1601 = vpop.f32.mrf.mxu0
    %v1602 = vadd.f32 %v1507, %v1601
    %1603 = vmatmul.f32.gmra.mxu0 %v1540
    %v1604 = vpop.f32.mrf.mxu0
    %v1605 = vadd.f32 %v1507, %v1604
    %1606 = vmatmul.f32.gmra.mxu0 %v1543
    %v1607 = vpop.f32.mrf.mxu0
    %v1608 = vadd.f32 %v1507, %v1607
    %1609 = vmatmul.f32.gmra.mxu0 %v1546
    %v1610 = vpop.f32.mrf.mxu0
    %v1611 = vadd.f32 %v1507, %v1610
    %1612 = vmatmul.f32.gmra.mxu0 %v1549
    %v1613 = vpop.f32.mrf.mxu0
    %v1614 = vadd.f32 %v1507, %v1613
    %1615 = vmatmul.f32.gmra.mxu0 %v1552
    %v1616 = vpop.f32.mrf.mxu0
    %v1617 = vadd.f32 %v1507, %v1616
    %1618 = vmatmul.f32.gmra.mxu0 %v1555
    %v1619 = vpop.f32.mrf.mxu0
    %v1620 = vadd.f32 %v1507, %v1619
    %1621 = vdwg.mxu0
    %1622 = vst [vmem:[#allocation4] sm:$0xff] %v1575
    %1623 = vst [vmem:[#allocation4 + $0x8] sm:$0xff] %v1578
    %1624 = vst [vmem:[#allocation4 + $0x10] sm:$0xff] %v1581
    %1625 = vst [vmem:[#allocation4 + $0x18] sm:$0xff] %v1584
    %1626 = vst [vmem:[#allocation4 + $0x20] sm:$0xff] %v1587
    %1627 = vst [vmem:[#allocation4 + $0x28] sm:$0xff] %v1590
    %1628 = vst [vmem:[#allocation4 + $0x30] sm:$0xff] %v1593
    %1629 = vst [vmem:[#allocation4 + $0x38] sm:$0xff] %v1596
    %1630 = vst [vmem:[#allocation4 + $0x40] sm:$0xff] %v1599
    %1631 = vst [vmem:[#allocation4 + $0x48] sm:$0xff] %v1602
    %1632 = vst [vmem:[#allocation4 + $0x50] sm:$0xff] %v1605
    %1633 = vst [vmem:[#allocation4 + $0x58] sm:$0xff] %v1608
    %1634 = vst [vmem:[#allocation4 + $0x60] sm:$0xff] %v1611
    %1635 = vst [vmem:[#allocation4 + $0x68] sm:$0xff] %v1614
    %1636 = vst [vmem:[#allocation4 + $0x70] sm:$0xff] %v1617
    %1637 = vst [vmem:[#allocation4 + $0x78] sm:$0xff] %v1620
    %v1638 = vld [vmem:[#allocation6] sm:$0xff]
    %v1639 = vld [vmem:[#allocation6 + $0x8] sm:$0xff]
    %v1640 = vld [vmem:[#allocation6 + $0x10] sm:$0xff]
    %v1641 = vld [vmem:[#allocation6 + $0x18] sm:$0xff]
    %1642 = vmatpush.msra.mxu0 0.0
    %1643 = vmatpush.msra.mxu0 0.0
    %1644 = vmatpush.msra.mxu0 0.0
    %1645 = vmatpush.msra.mxu0 0.0
    %1646 = vmatpush.msra.mxu0 0.0
    %1647 = vmatpush.msra.mxu0 0.0
    %1648 = vmatpush.msra.mxu0 0.0
    %1649 = vmatpush.msra.mxu0 0.0
    %1650 = vmatpush.msra.mxu0 0.0
    %1651 = vmatpush.msra.mxu0 0.0
    %1652 = vmatpush.msra.mxu0 0.0
    %1653 = vmatpush.msra.mxu0 0.0
    %1654 = vmatpush.msra.mxu0 %v1641
    %1655 = vmatpush.msra.mxu0 %v1640
    %1656 = vmatpush.msra.mxu0 %v1639
    %1657 = vmatpush.msra.mxu0 %v1638
    %1658 = vmatmul.f32.gmra.mxu0 %v1510
    %v1659 = vpop.f32.mrf.mxu0
    %v1660 = vadd.f32 0.0, %v1659
    %1661 = vmatmul.f32.gmra.mxu0 %v1513
    %v1662 = vpop.f32.mrf.mxu0
    %v1663 = vadd.f32 0.0, %v1662
    %1664 = vmatmul.f32.gmra.mxu0 %v1516
    %v1665 = vpop.f32.mrf.mxu0
    %v1666 = vadd.f32 0.0, %v1665
    %1667 = vmatmul.f32.gmra.mxu0 %v1519
    %v1668 = vpop.f32.mrf.mxu0
    %v1669 = vadd.f32 0.0, %v1668
    %1670 = vmatmul.f32.gmra.mxu0 %v1522
    %v1671 = vpop.f32.mrf.mxu0
    %v1672 = vadd.f32 0.0, %v1671
    %1673 = vmatmul.f32.gmra.mxu0 %v1525
    %v1674 = vpop.f32.mrf.mxu0
    %v1675 = vadd.f32 0.0, %v1674
    %1676 = vmatmul.f32.gmra.mxu0 %v1528
    %v1677 = vpop.f32.mrf.mxu0
    %v1678 = vadd.f32 0.0, %v1677
    %1679 = vmatmul.f32.gmra.mxu0 %v1531
    %v1680 = vpop.f32.mrf.mxu0
    %v1681 = vadd.f32 0.0, %v1680
    %1682 = vmatmul.f32.gmra.mxu0 %v1534
    %v1683 = vpop.f32.mrf.mxu0
    %v1684 = vadd.f32 0.0, %v1683
    %1685 = vmatmul.f32.gmra.mxu0 %v1537
    %v1686 = vpop.f32.mrf.mxu0
    %v1687 = vadd.f32 0.0, %v1686
    %1688 = vmatmul.f32.gmra.mxu0 %v1540
    %v1689 = vpop.f32.mrf.mxu0
    %v1690 = vadd.f32 0.0, %v1689
    %1691 = vmatmul.f32.gmra.mxu0 %v1543
    %v1692 = vpop.f32.mrf.mxu0
    %v1693 = vadd.f32 0.0, %v1692
    %1694 = vmatmul.f32.gmra.mxu0 %v1546
    %v1695 = vpop.f32.mrf.mxu0
    %v1696 = vadd.f32 0.0, %v1695
    %1697 = vmatmul.f32.gmra.mxu0 %v1549
    %v1698 = vpop.f32.mrf.mxu0
    %v1699 = vadd.f32 0.0, %v1698
    %1700 = vmatmul.f32.gmra.mxu0 %v1552
    %v1701 = vpop.f32.mrf.mxu0
    %v1702 = vadd.f32 0.0, %v1701
    %1703 = vmatmul.f32.gmra.mxu0 %v1555
    %v1704 = vpop.f32.mrf.mxu0
    %v1705 = vadd.f32 0.0, %v1704
    %1706 = vdwg.mxu0
    %1707 = vst [vmem:[#allocation5] sm:$0xff] %v1660
    %1708 = vst [vmem:[#allocation5 + $0x8] sm:$0xff] %v1663
    %1709 = vst [vmem:[#allocation5 + $0x10] sm:$0xff] %v1666
    %1710 = vst [vmem:[#allocation5 + $0x18] sm:$0xff] %v1669
    %1711 = vst [vmem:[#allocation5 + $0x20] sm:$0xff] %v1672
    %1712 = vst [vmem:[#allocation5 + $0x28] sm:$0xff] %v1675
    %1713 = vst [vmem:[#allocation5 + $0x30] sm:$0xff] %v1678
    %1714 = vst [vmem:[#allocation5 + $0x38] sm:$0xff] %v1681
    %1715 = vst [vmem:[#allocation5 + $0x40] sm:$0xff] %v1684
    %1716 = vst [vmem:[#allocation5 + $0x48] sm:$0xff] %v1687
    %1717 = vst [vmem:[#allocation5 + $0x50] sm:$0xff] %v1690
    %1718 = vst [vmem:[#allocation5 + $0x58] sm:$0xff] %v1693
    %1719 = vst [vmem:[#allocation5 + $0x60] sm:$0xff] %v1696
    %1720 = vst [vmem:[#allocation5 + $0x68] sm:$0xff] %v1699
    %1721 = vst [vmem:[#allocation5 + $0x70] sm:$0xff] %v1702
    %1722 = vst [vmem:[#allocation5 + $0x78] sm:$0xff] %v1705
    %v1723 = vld [vmem:[#allocation8] sm:$0xf]
    %v1724 = vld [vmem:[#allocation8 + $0x4] sm:$0xf]
    %v1725 = vld [vmem:[#allocation8 + $0x8] sm:$0xf]
    %v1726 = vld [vmem:[#allocation8 + $0xc] sm:$0xf]
    %v1727 = vld [vmem:[#allocation4] sm:$0xff]
    %v1728 = vld [vmem:[%s310] sm:$0xff]
    %v1729 = vadd.f32 %v1727, %v1728
    %v1734 = vunpack.c.l.b16 %v1723
    %v1735 = vunpack.c.l.b16 %v1724
    %v1736 = vunpack.c.l.b16 %v1725
    %v1737 = vunpack.c.l.b16 %v1726
    %v1738 = vpack.c.b16 %v1735, %v1734
    %v1739 = vpack.c.b16 %v1737, %v1736
    %1742 = vmatpush.bf16.msra.mxu0 0
    %1743 = vmatpush.bf16.msra.mxu0 0
    %1744 = vmatpush.bf16.msra.mxu0 0
    %1745 = vmatpush.bf16.msra.mxu0 0
    %1746 = vmatpush.bf16.msra.mxu0 0
    %1747 = vmatpush.bf16.msra.mxu0 0
    %1748 = vmatpush.bf16.msra.mxu0 %v1739
    %1749 = vmatpush.bf16.msra.mxu0 %v1738
    %1750 = vmatmul.bf16.gmra.mxu0 %v327
    %v1751 = vpop.f32.mrf.mxu0
    %v1752 = vadd.f32 0.0, %v1751
    %v1753 = vpop.f32.mrf.mxu0
    %1754 = vdwg.mxu0
    %v1755 = vadd.f32 %v1729, %v1752
    %v1756 = vxor.u32 %v1755, 2147483648
    %v1757 = vmul.f32 %v1756, 1.442695
    %v1758 = vpow.pop %v1757
    %v1759 = vadd.f32 %v1758, 1.0
    %v1760 = vrcp.pop %v1759
    %v1761 = vmul.f32 %v1759, %v1760
    %v1762 = vsub.f32 1.0, %v1761
    %v1763 = vmul.f32 %v1760, %v1762
    %v1764 = vadd.f32 %v1760, %v1763
    %vm1765 = vweird.f32 %v1759
    %vm1766 = vweird.f32 %v1760
    %vm1767 = vmor %vm1765, %vm1766
    %v1768 = vsel %vm1767, %v1760, %v1764
    %v1769 = vand.u32 2147483647, %v1759
    %vm1770 = vcmp.eq.f32.partialorder %v1769, 8.507059e+37
    %v1771 = vand.u32 %v1759, 2147483648
    %v1772 = vor.u32 1.1754944e-38, %v1771
    %v1773 = vsel %vm1770, %v1772, %v1768
    %v1774 = vmul.f32 1.0, %v1773
    %v1775 = vtanh.pop %v1755
    %v1776 = vmul.f32 %v1774, 0.0
    %1778 = vrot.lane.b32.xlu0 %v1775, 64
    %v1779 = vpop.permute.xlu0 %1778
    %v1781 = vmul.f32 %v1774, %v1779
    %1783 = vrot.lane.b32.xlu0 %v1781, 32
    %v1784 = vpop.permute.xlu0 %1783
    %v1786 = vadd.f32 %v1776, %v1784
    %v1787 = vtanh.pop %v1786
    %1789 = vrot.lane.b32.xlu0 %v1787, 64
    %v1790 = vpop.permute.xlu0 %1789
    %v1792 = vmul.f32 %v1774, %v1790
    %1794 = vrot.lane.b32.xlu0 %v1792, 32
    %v1795 = vpop.permute.xlu0 %1794
    %1797 = vst.msk [vmem:[#allocation2] sm:$0xff] %vm325, %v1795
    %v1798 = vld [vmem:[%s385] sm:$0xff]
    %v1799 = vld [vmem:[%s387] sm:$0xff]
    %v1800 = vadd.f32 %v1798, %v1799
    %v1801 = vpack.c.bf16 %v1792, %v1792
    %1803 = vrot.lane.b32.xlu0 %v1801, 32
    %v1804 = vpop.permute.xlu0 %1803
    %v1806 = vsel %vm325, %v1804, 0
    %1808 = vmatpush.bf16.msra.mxu0 0
    %1809 = vmatpush.bf16.msra.mxu0 0
    %1810 = vmatpush.bf16.msra.mxu0 0
    %1811 = vmatpush.bf16.msra.mxu0 0
    %1812 = vmatpush.bf16.msra.mxu0 0
    %1813 = vmatpush.bf16.msra.mxu0 0
    %1814 = vmatpush.bf16.msra.mxu0 %v1739
    %1815 = vmatpush.bf16.msra.mxu0 %v1738
    %1816 = vmatmul.bf16.gmra.mxu0 %v1806
    %v1817 = vpop.f32.mrf.mxu0
    %v1818 = vadd.f32 0.0, %v1817
    %v1819 = vpop.f32.mrf.mxu0
    %1820 = vdwg.mxu0
    %v1821 = vadd.f32 %v1800, %v1818
    %v1822 = vxor.u32 %v1821, 2147483648
    %v1823 = vmul.f32 %v1822, 1.442695
    %v1824 = vpow.pop %v1823
    %v1825 = vadd.f32 %v1824, 1.0
    %v1826 = vrcp.pop %v1825
    %v1827 = vmul.f32 %v1825, %v1826
    %v1828 = vsub.f32 1.0, %v1827
    %v1829 = vmul.f32 %v1826, %v1828
    %v1830 = vadd.f32 %v1826, %v1829
    %vm1831 = vweird.f32 %v1825
    %vm1832 = vweird.f32 %v1826
    %vm1833 = vmor %vm1831, %vm1832
    %v1834 = vsel %vm1833, %v1826, %v1830
    %v1835 = vand.u32 2147483647, %v1825
    %vm1836 = vcmp.eq.f32.partialorder %v1835, 8.507059e+37
    %v1837 = vand.u32 %v1825, 2147483648
    %v1838 = vor.u32 1.1754944e-38, %v1837
    %v1839 = vsel %vm1836, %v1838, %v1834
    %v1840 = vmul.f32 1.0, %v1839
    %v1841 = vtanh.pop %v1821
    %v1842 = vmul.f32 %v1840, %v1786
    %1844 = vrot.lane.b32.xlu0 %v1841, 64
    %v1845 = vpop.permute.xlu0 %1844
    %v1847 = vmul.f32 %v1840, %v1845
    %1849 = vrot.lane.b32.xlu0 %v1847, 32
    %v1850 = vpop.permute.xlu0 %1849
    %v1852 = vadd.f32 %v1842, %v1850
    %v1853 = vtanh.pop %v1852
    %1855 = vrot.lane.b32.xlu0 %v1853, 64
    %v1856 = vpop.permute.xlu0 %1855
    %v1858 = vmul.f32 %v1840, %v1856
    %1860 = vrot.lane.b32.xlu0 %v1858, 32
    %v1861 = vpop.permute.xlu0 %1860
    %1863 = vst.msk [vmem:[%s452] sm:$0xff] %vm325, %v1861
    %v1864 = vld [vmem:[%s454] sm:$0xff]
    %v1865 = vld [vmem:[%s456] sm:$0xff]
    %v1866 = vadd.f32 %v1864, %v1865
    %v1867 = vpack.c.bf16 %v1858, %v1858
    %1869 = vrot.lane.b32.xlu0 %v1867, 32
    %v1870 = vpop.permute.xlu0 %1869
    %v1872 = vsel %vm325, %v1870, 0
    %1874 = vmatpush.bf16.msra.mxu0 0
    %1875 = vmatpush.bf16.msra.mxu0 0
    %1876 = vmatpush.bf16.msra.mxu0 0
    %1877 = vmatpush.bf16.msra.mxu0 0
    %1878 = vmatpush.bf16.msra.mxu0 0
    %1879 = vmatpush.bf16.msra.mxu0 0
    %1880 = vmatpush.bf16.msra.mxu0 %v1739
    %1881 = vmatpush.bf16.msra.mxu0 %v1738
    %1882 = vmatmul.bf16.gmra.mxu0 %v1872
    %v1883 = vpop.f32.mrf.mxu0
    %v1884 = vadd.f32 0.0, %v1883
    %v1885 = vpop.f32.mrf.mxu0
    %1886 = vdwg.mxu0
    %v1887 = vadd.f32 %v1866, %v1884
    %v1888 = vxor.u32 %v1887, 2147483648
    %v1889 = vmul.f32 %v1888, 1.442695
    %v1890 = vpow.pop %v1889
    %v1891 = vadd.f32 %v1890, 1.0
    %v1892 = vrcp.pop %v1891
    %v1893 = vmul.f32 %v1891, %v1892
    %v1894 = vsub.f32 1.0, %v1893
    %v1895 = vmul.f32 %v1892, %v1894
    %v1896 = vadd.f32 %v1892, %v1895
    %vm1897 = vweird.f32 %v1891
    %vm1898 = vweird.f32 %v1892
    %vm1899 = vmor %vm1897, %vm1898
    %v1900 = vsel %vm1899, %v1892, %v1896
    %v1901 = vand.u32 2147483647, %v1891
    %vm1902 = vcmp.eq.f32.partialorder %v1901, 8.507059e+37
    %v1903 = vand.u32 %v1891, 2147483648
    %v1904 = vor.u32 1.1754944e-38, %v1903
    %v1905 = vsel %vm1902, %v1904, %v1900
    %v1906 = vmul.f32 1.0, %v1905
    %v1907 = vtanh.pop %v1887
    %v1908 = vmul.f32 %v1906, %v1852
    %1910 = vrot.lane.b32.xlu0 %v1907, 64
    %v1911 = vpop.permute.xlu0 %1910
    %v1913 = vmul.f32 %v1906, %v1911
    %1915 = vrot.lane.b32.xlu0 %v1913, 32
    %v1916 = vpop.permute.xlu0 %1915
    %v1918 = vadd.f32 %v1908, %v1916
    %v1919 = vtanh.pop %v1918
    %1921 = vrot.lane.b32.xlu0 %v1919, 64
    %v1922 = vpop.permute.xlu0 %1921
    %v1924 = vmul.f32 %v1906, %v1922
    %1926 = vrot.lane.b32.xlu0 %v1924, 32
    %v1927 = vpop.permute.xlu0 %1926
    %1929 = vst.msk [vmem:[%s521] sm:$0xff] %vm325, %v1927
    %v1930 = vld [vmem:[%s523] sm:$0xff]
    %v1931 = vld [vmem:[%s525] sm:$0xff]
    %v1932 = vadd.f32 %v1930, %v1931
    %v1933 = vpack.c.bf16 %v1924, %v1924
    %1935 = vrot.lane.b32.xlu0 %v1933, 32
    %v1936 = vpop.permute.xlu0 %1935
    %v1938 = vsel %vm325, %v1936, 0
    %1940 = vmatpush.bf16.msra.mxu0 0
    %1941 = vmatpush.bf16.msra.mxu0 0
    %1942 = vmatpush.bf16.msra.mxu0 0
    %1943 = vmatpush.bf16.msra.mxu0 0
    %1944 = vmatpush.bf16.msra.mxu0 0
    %1945 = vmatpush.bf16.msra.mxu0 0
    %1946 = vmatpush.bf16.msra.mxu0 %v1739
    %1947 = vmatpush.bf16.msra.mxu0 %v1738
    %1948 = vmatmul.bf16.gmra.mxu0 %v1938
    %v1949 = vpop.f32.mrf.mxu0
    %v1950 = vadd.f32 0.0, %v1949
    %v1951 = vpop.f32.mrf.mxu0
    %1952 = vdwg.mxu0
    %v1953 = vadd.f32 %v1932, %v1950
    %v1954 = vxor.u32 %v1953, 2147483648
    %v1955 = vmul.f32 %v1954, 1.442695
    %v1956 = vpow.pop %v1955
    %v1957 = vadd.f32 %v1956, 1.0
    %v1958 = vrcp.pop %v1957
    %v1959 = vmul.f32 %v1957, %v1958
    %v1960 = vsub.f32 1.0, %v1959
    %v1961 = vmul.f32 %v1958, %v1960
    %v1962 = vadd.f32 %v1958, %v1961
    %vm1963 = vweird.f32 %v1957
    %vm1964 = vweird.f32 %v1958
    %vm1965 = vmor %vm1963, %vm1964
    %v1966 = vsel %vm1965, %v1958, %v1962
    %v1967 = vand.u32 2147483647, %v1957
    %vm1968 = vcmp.eq.f32.partialorder %v1967, 8.507059e+37
    %v1969 = vand.u32 %v1957, 2147483648
    %v1970 = vor.u32 1.1754944e-38, %v1969
    %v1971 = vsel %vm1968, %v1970, %v1966
    %v1972 = vmul.f32 1.0, %v1971
    %v1973 = vtanh.pop %v1953
    %v1974 = vmul.f32 %v1972, %v1918
    %1976 = vrot.lane.b32.xlu0 %v1973, 64
    %v1977 = vpop.permute.xlu0 %1976
    %v1979 = vmul.f32 %v1972, %v1977
    %1981 = vrot.lane.b32.xlu0 %v1979, 32
    %v1982 = vpop.permute.xlu0 %1981
    %v1984 = vadd.f32 %v1974, %v1982
    %v1985 = vtanh.pop %v1984
    %1987 = vrot.lane.b32.xlu0 %v1985, 64
    %v1988 = vpop.permute.xlu0 %1987
    %v1990 = vmul.f32 %v1972, %v1988
    %1992 = vrot.lane.b32.xlu0 %v1990, 32
    %v1993 = vpop.permute.xlu0 %1992
    %1995 = vst.msk [vmem:[%s590] sm:$0xff] %vm325, %v1993
    %v1996 = vld [vmem:[%s592] sm:$0xff]
    %v1997 = vld [vmem:[%s594] sm:$0xff]
    %v1998 = vadd.f32 %v1996, %v1997
    %v1999 = vpack.c.bf16 %v1990, %v1990
    %2001 = vrot.lane.b32.xlu0 %v1999, 32
    %v2002 = vpop.permute.xlu0 %2001
    %v2004 = vsel %vm325, %v2002, 0
    %2006 = vmatpush.bf16.msra.mxu0 0
    %2007 = vmatpush.bf16.msra.mxu0 0
    %2008 = vmatpush.bf16.msra.mxu0 0
    %2009 = vmatpush.bf16.msra.mxu0 0
    %2010 = vmatpush.bf16.msra.mxu0 0
    %2011 = vmatpush.bf16.msra.mxu0 0
    %2012 = vmatpush.bf16.msra.mxu0 %v1739
    %2013 = vmatpush.bf16.msra.mxu0 %v1738
    %2014 = vmatmul.bf16.gmra.mxu0 %v2004
    %v2015 = vpop.f32.mrf.mxu0
    %v2016 = vadd.f32 0.0, %v2015
    %v2017 = vpop.f32.mrf.mxu0
    %2018 = vdwg.mxu0
    %v2019 = vadd.f32 %v1998, %v2016
    %v2020 = vxor.u32 %v2019, 2147483648
    %v2021 = vmul.f32 %v2020, 1.442695
    %v2022 = vpow.pop %v2021
    %v2023 = vadd.f32 %v2022, 1.0
    %v2024 = vrcp.pop %v2023
    %v2025 = vmul.f32 %v2023, %v2024
    %v2026 = vsub.f32 1.0, %v2025
    %v2027 = vmul.f32 %v2024, %v2026
    %v2028 = vadd.f32 %v2024, %v2027
    %vm2029 = vweird.f32 %v2023
    %vm2030 = vweird.f32 %v2024
    %vm2031 = vmor %vm2029, %vm2030
    %v2032 = vsel %vm2031, %v2024, %v2028
    %v2033 = vand.u32 2147483647, %v2023
    %vm2034 = vcmp.eq.f32.partialorder %v2033, 8.507059e+37
    %v2035 = vand.u32 %v2023, 2147483648
    %v2036 = vor.u32 1.1754944e-38, %v2035
    %v2037 = vsel %vm2034, %v2036, %v2032
    %v2038 = vmul.f32 1.0, %v2037
    %v2039 = vtanh.pop %v2019
    %v2040 = vmul.f32 %v2038, %v1984
    %2042 = vrot.lane.b32.xlu0 %v2039, 64
    %v2043 = vpop.permute.xlu0 %2042
    %v2045 = vmul.f32 %v2038, %v2043
    %2047 = vrot.lane.b32.xlu0 %v2045, 32
    %v2048 = vpop.permute.xlu0 %2047
    %v2050 = vadd.f32 %v2040, %v2048
    %v2051 = vtanh.pop %v2050
    %2053 = vrot.lane.b32.xlu0 %v2051, 64
    %v2054 = vpop.permute.xlu0 %2053
    %v2056 = vmul.f32 %v2038, %v2054
    %2058 = vrot.lane.b32.xlu0 %v2056, 32
    %v2059 = vpop.permute.xlu0 %2058
    %2061 = vst.msk [vmem:[%s659] sm:$0xff] %vm325, %v2059
    %v2062 = vld [vmem:[%s661] sm:$0xff]
    %v2063 = vld [vmem:[%s663] sm:$0xff]
    %v2064 = vadd.f32 %v2062, %v2063
    %v2065 = vpack.c.bf16 %v2056, %v2056
    %2067 = vrot.lane.b32.xlu0 %v2065, 32
    %v2068 = vpop.permute.xlu0 %2067
    %v2070 = vsel %vm325, %v2068, 0
    %2072 = vmatpush.bf16.msra.mxu0 0
    %2073 = vmatpush.bf16.msra.mxu0 0
    %2074 = vmatpush.bf16.msra.mxu0 0
    %2075 = vmatpush.bf16.msra.mxu0 0
    %2076 = vmatpush.bf16.msra.mxu0 0
    %2077 = vmatpush.bf16.msra.mxu0 0
    %2078 = vmatpush.bf16.msra.mxu0 %v1739
    %2079 = vmatpush.bf16.msra.mxu0 %v1738
    %2080 = vmatmul.bf16.gmra.mxu0 %v2070
    %v2081 = vpop.f32.mrf.mxu0
    %v2082 = vadd.f32 0.0, %v2081
    %v2083 = vpop.f32.mrf.mxu0
    %2084 = vdwg.mxu0
    %v2085 = vadd.f32 %v2064, %v2082
    %v2086 = vxor.u32 %v2085, 2147483648
    %v2087 = vmul.f32 %v2086, 1.442695
    %v2088 = vpow.pop %v2087
    %v2089 = vadd.f32 %v2088, 1.0
    %v2090 = vrcp.pop %v2089
    %v2091 = vmul.f32 %v2089, %v2090
    %v2092 = vsub.f32 1.0, %v2091
    %v2093 = vmul.f32 %v2090, %v2092
    %v2094 = vadd.f32 %v2090, %v2093
    %vm2095 = vweird.f32 %v2089
    %vm2096 = vweird.f32 %v2090
    %vm2097 = vmor %vm2095, %vm2096
    %v2098 = vsel %vm2097, %v2090, %v2094
    %v2099 = vand.u32 2147483647, %v2089
    %vm2100 = vcmp.eq.f32.partialorder %v2099, 8.507059e+37
    %v2101 = vand.u32 %v2089, 2147483648
    %v2102 = vor.u32 1.1754944e-38, %v2101
    %v2103 = vsel %vm2100, %v2102, %v2098
    %v2104 = vmul.f32 1.0, %v2103
    %v2105 = vtanh.pop %v2085
    %v2106 = vmul.f32 %v2104, %v2050
    %2108 = vrot.lane.b32.xlu0 %v2105, 64
    %v2109 = vpop.permute.xlu0 %2108
    %v2111 = vmul.f32 %v2104, %v2109
    %2113 = vrot.lane.b32.xlu0 %v2111, 32
    %v2114 = vpop.permute.xlu0 %2113
    %v2116 = vadd.f32 %v2106, %v2114
    %v2117 = vtanh.pop %v2116
    %2119 = vrot.lane.b32.xlu0 %v2117, 64
    %v2120 = vpop.permute.xlu0 %2119
    %v2122 = vmul.f32 %v2104, %v2120
    %2124 = vrot.lane.b32.xlu0 %v2122, 32
    %v2125 = vpop.permute.xlu0 %2124
    %2127 = vst.msk [vmem:[%s728] sm:$0xff] %vm325, %v2125
    %v2128 = vld [vmem:[%s730] sm:$0xff]
    %v2129 = vld [vmem:[%s732] sm:$0xff]
    %v2130 = vadd.f32 %v2128, %v2129
    %v2131 = vpack.c.bf16 %v2122, %v2122
    %2133 = vrot.lane.b32.xlu0 %v2131, 32
    %v2134 = vpop.permute.xlu0 %2133
    %v2136 = vsel %vm325, %v2134, 0
    %2138 = vmatpush.bf16.msra.mxu0 0
    %2139 = vmatpush.bf16.msra.mxu0 0
    %2140 = vmatpush.bf16.msra.mxu0 0
    %2141 = vmatpush.bf16.msra.mxu0 0
    %2142 = vmatpush.bf16.msra.mxu0 0
    %2143 = vmatpush.bf16.msra.mxu0 0
    %2144 = vmatpush.bf16.msra.mxu0 %v1739
    %2145 = vmatpush.bf16.msra.mxu0 %v1738
    %2146 = vmatmul.bf16.gmra.mxu0 %v2136
    %v2147 = vpop.f32.mrf.mxu0
    %v2148 = vadd.f32 0.0, %v2147
    %v2149 = vpop.f32.mrf.mxu0
    %2150 = vdwg.mxu0
    %v2151 = vadd.f32 %v2130, %v2148
    %v2152 = vxor.u32 %v2151, 2147483648
    %v2153 = vmul.f32 %v2152, 1.442695
    %v2154 = vpow.pop %v2153
    %v2155 = vadd.f32 %v2154, 1.0
    %v2156 = vrcp.pop %v2155
    %v2157 = vmul.f32 %v2155, %v2156
    %v2158 = vsub.f32 1.0, %v2157
    %v2159 = vmul.f32 %v2156, %v2158
    %v2160 = vadd.f32 %v2156, %v2159
    %vm2161 = vweird.f32 %v2155
    %vm2162 = vweird.f32 %v2156
    %vm2163 = vmor %vm2161, %vm2162
    %v2164 = vsel %vm2163, %v2156, %v2160
    %v2165 = vand.u32 2147483647, %v2155
    %vm2166 = vcmp.eq.f32.partialorder %v2165, 8.507059e+37
    %v2167 = vand.u32 %v2155, 2147483648
    %v2168 = vor.u32 1.1754944e-38, %v2167
    %v2169 = vsel %vm2166, %v2168, %v2164
    %v2170 = vmul.f32 1.0, %v2169
    %v2171 = vtanh.pop %v2151
    %v2172 = vmul.f32 %v2170, %v2116
    %2174 = vrot.lane.b32.xlu0 %v2171, 64
    %v2175 = vpop.permute.xlu0 %2174
    %v2177 = vmul.f32 %v2170, %v2175
    %2179 = vrot.lane.b32.xlu0 %v2177, 32
    %v2180 = vpop.permute.xlu0 %2179
    %v2182 = vadd.f32 %v2172, %v2180
    %v2183 = vtanh.pop %v2182
    %2185 = vrot.lane.b32.xlu0 %v2183, 64
    %v2186 = vpop.permute.xlu0 %2185
    %v2188 = vmul.f32 %v2170, %v2186
    %2190 = vrot.lane.b32.xlu0 %v2188, 32
    %v2191 = vpop.permute.xlu0 %2190
    %2193 = vst.msk [vmem:[%s797] sm:$0xff] %vm325, %v2191
    %v2194 = vld [vmem:[%s799] sm:$0xff]
    %v2195 = vld [vmem:[%s801] sm:$0xff]
    %v2196 = vadd.f32 %v2194, %v2195
    %v2197 = vpack.c.bf16 %v2188, %v2188
    %2199 = vrot.lane.b32.xlu0 %v2197, 32
    %v2200 = vpop.permute.xlu0 %2199
    %v2202 = vsel %vm325, %v2200, 0
    %2204 = vmatpush.bf16.msra.mxu0 0
    %2205 = vmatpush.bf16.msra.mxu0 0
    %2206 = vmatpush.bf16.msra.mxu0 0
    %2207 = vmatpush.bf16.msra.mxu0 0
    %2208 = vmatpush.bf16.msra.mxu0 0
    %2209 = vmatpush.bf16.msra.mxu0 0
    %2210 = vmatpush.bf16.msra.mxu0 %v1739
    %2211 = vmatpush.bf16.msra.mxu0 %v1738
    %2212 = vmatmul.bf16.gmra.mxu0 %v2202
    %v2213 = vpop.f32.mrf.mxu0
    %v2214 = vadd.f32 0.0, %v2213
    %v2215 = vpop.f32.mrf.mxu0
    %2216 = vdwg.mxu0
    %v2217 = vadd.f32 %v2196, %v2214
    %v2218 = vxor.u32 %v2217, 2147483648
    %v2219 = vmul.f32 %v2218, 1.442695
    %v2220 = vpow.pop %v2219
    %v2221 = vadd.f32 %v2220, 1.0
    %v2222 = vrcp.pop %v2221
    %v2223 = vmul.f32 %v2221, %v2222
    %v2224 = vsub.f32 1.0, %v2223
    %v2225 = vmul.f32 %v2222, %v2224
    %v2226 = vadd.f32 %v2222, %v2225
    %vm2227 = vweird.f32 %v2221
    %vm2228 = vweird.f32 %v2222
    %vm2229 = vmor %vm2227, %vm2228
    %v2230 = vsel %vm2229, %v2222, %v2226
    %v2231 = vand.u32 2147483647, %v2221
    %vm2232 = vcmp.eq.f32.partialorder %v2231, 8.507059e+37
    %v2233 = vand.u32 %v2221, 2147483648
    %v2234 = vor.u32 1.1754944e-38, %v2233
    %v2235 = vsel %vm2232, %v2234, %v2230
    %v2236 = vmul.f32 1.0, %v2235
    %v2237 = vtanh.pop %v2217
    %v2238 = vmul.f32 %v2236, %v2182
    %2240 = vrot.lane.b32.xlu0 %v2237, 64
    %v2241 = vpop.permute.xlu0 %2240
    %v2243 = vmul.f32 %v2236, %v2241
    %2245 = vrot.lane.b32.xlu0 %v2243, 32
    %v2246 = vpop.permute.xlu0 %2245
    %v2248 = vadd.f32 %v2238, %v2246
    %v2249 = vtanh.pop %v2248
    %2251 = vrot.lane.b32.xlu0 %v2249, 64
    %v2252 = vpop.permute.xlu0 %2251
    %v2254 = vmul.f32 %v2236, %v2252
    %2256 = vrot.lane.b32.xlu0 %v2254, 32
    %v2257 = vpop.permute.xlu0 %2256
    %2259 = vst.msk [vmem:[%s866] sm:$0xff] %vm325, %v2257
    %v2260 = vld [vmem:[%s868] sm:$0xff]
    %v2261 = vld [vmem:[%s870] sm:$0xff]
    %v2262 = vadd.f32 %v2260, %v2261
    %v2263 = vpack.c.bf16 %v2254, %v2254
    %2265 = vrot.lane.b32.xlu0 %v2263, 32
    %v2266 = vpop.permute.xlu0 %2265
    %v2268 = vsel %vm325, %v2266, 0
    %2270 = vmatpush.bf16.msra.mxu0 0
    %2271 = vmatpush.bf16.msra.mxu0 0
    %2272 = vmatpush.bf16.msra.mxu0 0
    %2273 = vmatpush.bf16.msra.mxu0 0
    %2274 = vmatpush.bf16.msra.mxu0 0
    %2275 = vmatpush.bf16.msra.mxu0 0
    %2276 = vmatpush.bf16.msra.mxu0 %v1739
    %2277 = vmatpush.bf16.msra.mxu0 %v1738
    %2278 = vmatmul.bf16.gmra.mxu0 %v2268
    %v2279 = vpop.f32.mrf.mxu0
    %v2280 = vadd.f32 0.0, %v2279
    %v2281 = vpop.f32.mrf.mxu0
    %2282 = vdwg.mxu0
    %v2283 = vadd.f32 %v2262, %v2280
    %v2284 = vxor.u32 %v2283, 2147483648
    %v2285 = vmul.f32 %v2284, 1.442695
    %v2286 = vpow.pop %v2285
    %v2287 = vadd.f32 %v2286, 1.0
    %v2288 = vrcp.pop %v2287
    %v2289 = vmul.f32 %v2287, %v2288
    %v2290 = vsub.f32 1.0, %v2289
    %v2291 = vmul.f32 %v2288, %v2290
    %v2292 = vadd.f32 %v2288, %v2291
    %vm2293 = vweird.f32 %v2287
    %vm2294 = vweird.f32 %v2288
    %vm2295 = vmor %vm2293, %vm2294
    %v2296 = vsel %vm2295, %v2288, %v2292
    %v2297 = vand.u32 2147483647, %v2287
    %vm2298 = vcmp.eq.f32.partialorder %v2297, 8.507059e+37
    %v2299 = vand.u32 %v2287, 2147483648
    %v2300 = vor.u32 1.1754944e-38, %v2299
    %v2301 = vsel %vm2298, %v2300, %v2296
    %v2302 = vmul.f32 1.0, %v2301
    %v2303 = vtanh.pop %v2283
    %v2304 = vmul.f32 %v2302, %v2248
    %2306 = vrot.lane.b32.xlu0 %v2303, 64
    %v2307 = vpop.permute.xlu0 %2306
    %v2309 = vmul.f32 %v2302, %v2307
    %2311 = vrot.lane.b32.xlu0 %v2309, 32
    %v2312 = vpop.permute.xlu0 %2311
    %v2314 = vadd.f32 %v2304, %v2312
    %v2315 = vtanh.pop %v2314
    %2317 = vrot.lane.b32.xlu0 %v2315, 64
    %v2318 = vpop.permute.xlu0 %2317
    %v2320 = vmul.f32 %v2302, %v2318
    %2322 = vrot.lane.b32.xlu0 %v2320, 32
    %v2323 = vpop.permute.xlu0 %2322
    %2325 = vst.msk [vmem:[%s935] sm:$0xff] %vm325, %v2323
    %v2326 = vld [vmem:[%s937] sm:$0xff]
    %v2327 = vld [vmem:[%s939] sm:$0xff]
    %v2328 = vadd.f32 %v2326, %v2327
    %v2329 = vpack.c.bf16 %v2320, %v2320
    %2331 = vrot.lane.b32.xlu0 %v2329, 32
    %v2332 = vpop.permute.xlu0 %2331
    %v2334 = vsel %vm325, %v2332, 0
    %2336 = vmatpush.bf16.msra.mxu0 0
    %2337 = vmatpush.bf16.msra.mxu0 0
    %2338 = vmatpush.bf16.msra.mxu0 0
    %2339 = vmatpush.bf16.msra.mxu0 0
    %2340 = vmatpush.bf16.msra.mxu0 0
    %2341 = vmatpush.bf16.msra.mxu0 0
    %2342 = vmatpush.bf16.msra.mxu0 %v1739
    %2343 = vmatpush.bf16.msra.mxu0 %v1738
    %2344 = vmatmul.bf16.gmra.mxu0 %v2334
    %v2345 = vpop.f32.mrf.mxu0
    %v2346 = vadd.f32 0.0, %v2345
    %v2347 = vpop.f32.mrf.mxu0
    %2348 = vdwg.mxu0
    %v2349 = vadd.f32 %v2328, %v2346
    %v2350 = vxor.u32 %v2349, 2147483648
    %v2351 = vmul.f32 %v2350, 1.442695
    %v2352 = vpow.pop %v2351
    %v2353 = vadd.f32 %v2352, 1.0
    %v2354 = vrcp.pop %v2353
    %v2355 = vmul.f32 %v2353, %v2354
    %v2356 = vsub.f32 1.0, %v2355
    %v2357 = vmul.f32 %v2354, %v2356
    %v2358 = vadd.f32 %v2354, %v2357
    %vm2359 = vweird.f32 %v2353
    %vm2360 = vweird.f32 %v2354
    %vm2361 = vmor %vm2359, %vm2360
    %v2362 = vsel %vm2361, %v2354, %v2358
    %v2363 = vand.u32 2147483647, %v2353
    %vm2364 = vcmp.eq.f32.partialorder %v2363, 8.507059e+37
    %v2365 = vand.u32 %v2353, 2147483648
    %v2366 = vor.u32 1.1754944e-38, %v2365
    %v2367 = vsel %vm2364, %v2366, %v2362
    %v2368 = vmul.f32 1.0, %v2367
    %v2369 = vtanh.pop %v2349
    %v2370 = vmul.f32 %v2368, %v2314
    %2372 = vrot.lane.b32.xlu0 %v2369, 64
    %v2373 = vpop.permute.xlu0 %2372
    %v2375 = vmul.f32 %v2368, %v2373
    %2377 = vrot.lane.b32.xlu0 %v2375, 32
    %v2378 = vpop.permute.xlu0 %2377
    %v2380 = vadd.f32 %v2370, %v2378
    %v2381 = vtanh.pop %v2380
    %2383 = vrot.lane.b32.xlu0 %v2381, 64
    %v2384 = vpop.permute.xlu0 %2383
    %v2386 = vmul.f32 %v2368, %v2384
    %2388 = vrot.lane.b32.xlu0 %v2386, 32
    %v2389 = vpop.permute.xlu0 %2388
    %2391 = vst.msk [vmem:[%s1004] sm:$0xff] %vm325, %v2389
    %v2392 = vld [vmem:[%s1006] sm:$0xff]
    %v2393 = vld [vmem:[%s1008] sm:$0xff]
    %v2394 = vadd.f32 %v2392, %v2393
    %v2395 = vpack.c.bf16 %v2386, %v2386
    %2397 = vrot.lane.b32.xlu0 %v2395, 32
    %v2398 = vpop.permute.xlu0 %2397
    %v2400 = vsel %vm325, %v2398, 0
    %2402 = vmatpush.bf16.msra.mxu0 0
    %2403 = vmatpush.bf16.msra.mxu0 0
    %2404 = vmatpush.bf16.msra.mxu0 0
    %2405 = vmatpush.bf16.msra.mxu0 0
    %2406 = vmatpush.bf16.msra.mxu0 0
    %2407 = vmatpush.bf16.msra.mxu0 0
    %2408 = vmatpush.bf16.msra.mxu0 %v1739
    %2409 = vmatpush.bf16.msra.mxu0 %v1738
    %2410 = vmatmul.bf16.gmra.mxu0 %v2400
    %v2411 = vpop.f32.mrf.mxu0
    %v2412 = vadd.f32 0.0, %v2411
    %v2413 = vpop.f32.mrf.mxu0
    %2414 = vdwg.mxu0
    %v2415 = vadd.f32 %v2394, %v2412
    %v2416 = vxor.u32 %v2415, 2147483648
    %v2417 = vmul.f32 %v2416, 1.442695
    %v2418 = vpow.pop %v2417
    %v2419 = vadd.f32 %v2418, 1.0
    %v2420 = vrcp.pop %v2419
    %v2421 = vmul.f32 %v2419, %v2420
    %v2422 = vsub.f32 1.0, %v2421
    %v2423 = vmul.f32 %v2420, %v2422
    %v2424 = vadd.f32 %v2420, %v2423
    %vm2425 = vweird.f32 %v2419
    %vm2426 = vweird.f32 %v2420
    %vm2427 = vmor %vm2425, %vm2426
    %v2428 = vsel %vm2427, %v2420, %v2424
    %v2429 = vand.u32 2147483647, %v2419
    %vm2430 = vcmp.eq.f32.partialorder %v2429, 8.507059e+37
    %v2431 = vand.u32 %v2419, 2147483648
    %v2432 = vor.u32 1.1754944e-38, %v2431
    %v2433 = vsel %vm2430, %v2432, %v2428
    %v2434 = vmul.f32 1.0, %v2433
    %v2435 = vtanh.pop %v2415
    %v2436 = vmul.f32 %v2434, %v2380
    %2438 = vrot.lane.b32.xlu0 %v2435, 64
    %v2439 = vpop.permute.xlu0 %2438
    %v2441 = vmul.f32 %v2434, %v2439
    %2443 = vrot.lane.b32.xlu0 %v2441, 32
    %v2444 = vpop.permute.xlu0 %2443
    %v2446 = vadd.f32 %v2436, %v2444
    %v2447 = vtanh.pop %v2446
    %2449 = vrot.lane.b32.xlu0 %v2447, 64
    %v2450 = vpop.permute.xlu0 %2449
    %v2452 = vmul.f32 %v2434, %v2450
    %2454 = vrot.lane.b32.xlu0 %v2452, 32
    %v2455 = vpop.permute.xlu0 %2454
    %2457 = vst.msk [vmem:[%s1073] sm:$0xff] %vm325, %v2455
    %v2458 = vld [vmem:[%s1075] sm:$0xff]
    %v2459 = vld [vmem:[%s1077] sm:$0xff]
    %v2460 = vadd.f32 %v2458, %v2459
    %v2461 = vpack.c.bf16 %v2452, %v2452
    %2463 = vrot.lane.b32.xlu0 %v2461, 32
    %v2464 = vpop.permute.xlu0 %2463
    %v2466 = vsel %vm325, %v2464, 0
    %2468 = vmatpush.bf16.msra.mxu0 0
    %2469 = vmatpush.bf16.msra.mxu0 0
    %2470 = vmatpush.bf16.msra.mxu0 0
    %2471 = vmatpush.bf16.msra.mxu0 0
    %2472 = vmatpush.bf16.msra.mxu0 0
    %2473 = vmatpush.bf16.msra.mxu0 0
    %2474 = vmatpush.bf16.msra.mxu0 %v1739
    %2475 = vmatpush.bf16.msra.mxu0 %v1738
    %2476 = vmatmul.bf16.gmra.mxu0 %v2466
    %v2477 = vpop.f32.mrf.mxu0
    %v2478 = vadd.f32 0.0, %v2477
    %v2479 = vpop.f32.mrf.mxu0
    %2480 = vdwg.mxu0
    %v2481 = vadd.f32 %v2460, %v2478
    %v2482 = vxor.u32 %v2481, 2147483648
    %v2483 = vmul.f32 %v2482, 1.442695
    %v2484 = vpow.pop %v2483
    %v2485 = vadd.f32 %v2484, 1.0
    %v2486 = vrcp.pop %v2485
    %v2487 = vmul.f32 %v2485, %v2486
    %v2488 = vsub.f32 1.0, %v2487
    %v2489 = vmul.f32 %v2486, %v2488
    %v2490 = vadd.f32 %v2486, %v2489
    %vm2491 = vweird.f32 %v2485
    %vm2492 = vweird.f32 %v2486
    %vm2493 = vmor %vm2491, %vm2492
    %v2494 = vsel %vm2493, %v2486, %v2490
    %v2495 = vand.u32 2147483647, %v2485
    %vm2496 = vcmp.eq.f32.partialorder %v2495, 8.507059e+37
    %v2497 = vand.u32 %v2485, 2147483648
    %v2498 = vor.u32 1.1754944e-38, %v2497
    %v2499 = vsel %vm2496, %v2498, %v2494
    %v2500 = vmul.f32 1.0, %v2499
    %v2501 = vtanh.pop %v2481
    %v2502 = vmul.f32 %v2500, %v2446
    %2504 = vrot.lane.b32.xlu0 %v2501, 64
    %v2505 = vpop.permute.xlu0 %2504
    %v2507 = vmul.f32 %v2500, %v2505
    %2509 = vrot.lane.b32.xlu0 %v2507, 32
    %v2510 = vpop.permute.xlu0 %2509
    %v2512 = vadd.f32 %v2502, %v2510
    %v2513 = vtanh.pop %v2512
    %2515 = vrot.lane.b32.xlu0 %v2513, 64
    %v2516 = vpop.permute.xlu0 %2515
    %v2518 = vmul.f32 %v2500, %v2516
    %2520 = vrot.lane.b32.xlu0 %v2518, 32
    %v2521 = vpop.permute.xlu0 %2520
    %2523 = vst.msk [vmem:[%s1142] sm:$0xff] %vm325, %v2521
    %v2524 = vld [vmem:[%s1144] sm:$0xff]
    %v2525 = vld [vmem:[%s1146] sm:$0xff]
    %v2526 = vadd.f32 %v2524, %v2525
    %v2527 = vpack.c.bf16 %v2518, %v2518
    %2529 = vrot.lane.b32.xlu0 %v2527, 32
    %v2530 = vpop.permute.xlu0 %2529
    %v2532 = vsel %vm325, %v2530, 0
    %2534 = vmatpush.bf16.msra.mxu0 0
    %2535 = vmatpush.bf16.msra.mxu0 0
    %2536 = vmatpush.bf16.msra.mxu0 0
    %2537 = vmatpush.bf16.msra.mxu0 0
    %2538 = vmatpush.bf16.msra.mxu0 0
    %2539 = vmatpush.bf16.msra.mxu0 0
    %2540 = vmatpush.bf16.msra.mxu0 %v1739
    %2541 = vmatpush.bf16.msra.mxu0 %v1738
    %2542 = vmatmul.bf16.gmra.mxu0 %v2532
    %v2543 = vpop.f32.mrf.mxu0
    %v2544 = vadd.f32 0.0, %v2543
    %v2545 = vpop.f32.mrf.mxu0
    %2546 = vdwg.mxu0
    %v2547 = vadd.f32 %v2526, %v2544
    %v2548 = vxor.u32 %v2547, 2147483648
    %v2549 = vmul.f32 %v2548, 1.442695
    %v2550 = vpow.pop %v2549
    %v2551 = vadd.f32 %v2550, 1.0
    %v2552 = vrcp.pop %v2551
    %v2553 = vmul.f32 %v2551, %v2552
    %v2554 = vsub.f32 1.0, %v2553
    %v2555 = vmul.f32 %v2552, %v2554
    %v2556 = vadd.f32 %v2552, %v2555
    %vm2557 = vweird.f32 %v2551
    %vm2558 = vweird.f32 %v2552
    %vm2559 = vmor %vm2557, %vm2558
    %v2560 = vsel %vm2559, %v2552, %v2556
    %v2561 = vand.u32 2147483647, %v2551
    %vm2562 = vcmp.eq.f32.partialorder %v2561, 8.507059e+37
    %v2563 = vand.u32 %v2551, 2147483648
    %v2564 = vor.u32 1.1754944e-38, %v2563
    %v2565 = vsel %vm2562, %v2564, %v2560
    %v2566 = vmul.f32 1.0, %v2565
    %v2567 = vtanh.pop %v2547
    %v2568 = vmul.f32 %v2566, %v2512
    %2570 = vrot.lane.b32.xlu0 %v2567, 64
    %v2571 = vpop.permute.xlu0 %2570
    %v2573 = vmul.f32 %v2566, %v2571
    %2575 = vrot.lane.b32.xlu0 %v2573, 32
    %v2576 = vpop.permute.xlu0 %2575
    %v2578 = vadd.f32 %v2568, %v2576
    %v2579 = vtanh.pop %v2578
    %2581 = vrot.lane.b32.xlu0 %v2579, 64
    %v2582 = vpop.permute.xlu0 %2581
    %v2584 = vmul.f32 %v2566, %v2582
    %2586 = vrot.lane.b32.xlu0 %v2584, 32
    %v2587 = vpop.permute.xlu0 %2586
    %2589 = vst.msk [vmem:[%s1211] sm:$0xff] %vm325, %v2587
    %v2590 = vld [vmem:[%s1213] sm:$0xff]
    %v2591 = vld [vmem:[%s1215] sm:$0xff]
    %v2592 = vadd.f32 %v2590, %v2591
    %v2593 = vpack.c.bf16 %v2584, %v2584
    %2595 = vrot.lane.b32.xlu0 %v2593, 32
    %v2596 = vpop.permute.xlu0 %2595
    %v2598 = vsel %vm325, %v2596, 0
    %2600 = vmatpush.bf16.msra.mxu0 0
    %2601 = vmatpush.bf16.msra.mxu0 0
    %2602 = vmatpush.bf16.msra.mxu0 0
    %2603 = vmatpush.bf16.msra.mxu0 0
    %2604 = vmatpush.bf16.msra.mxu0 0
    %2605 = vmatpush.bf16.msra.mxu0 0
    %2606 = vmatpush.bf16.msra.mxu0 %v1739
    %2607 = vmatpush.bf16.msra.mxu0 %v1738
    %2608 = vmatmul.bf16.gmra.mxu0 %v2598
    %v2609 = vpop.f32.mrf.mxu0
    %v2610 = vadd.f32 0.0, %v2609
    %v2611 = vpop.f32.mrf.mxu0
    %2612 = vdwg.mxu0
    %v2613 = vadd.f32 %v2592, %v2610
    %v2614 = vxor.u32 %v2613, 2147483648
    %v2615 = vmul.f32 %v2614, 1.442695
    %v2616 = vpow.pop %v2615
    %v2617 = vadd.f32 %v2616, 1.0
    %v2618 = vrcp.pop %v2617
    %v2619 = vmul.f32 %v2617, %v2618
    %v2620 = vsub.f32 1.0, %v2619
    %v2621 = vmul.f32 %v2618, %v2620
    %v2622 = vadd.f32 %v2618, %v2621
    %vm2623 = vweird.f32 %v2617
    %vm2624 = vweird.f32 %v2618
    %vm2625 = vmor %vm2623, %vm2624
    %v2626 = vsel %vm2625, %v2618, %v2622
    %v2627 = vand.u32 2147483647, %v2617
    %vm2628 = vcmp.eq.f32.partialorder %v2627, 8.507059e+37
    %v2629 = vand.u32 %v2617, 2147483648
    %v2630 = vor.u32 1.1754944e-38, %v2629
    %v2631 = vsel %vm2628, %v2630, %v2626
    %v2632 = vmul.f32 1.0, %v2631
    %v2633 = vtanh.pop %v2613
    %v2634 = vmul.f32 %v2632, %v2578
    %2636 = vrot.lane.b32.xlu0 %v2633, 64
    %v2637 = vpop.permute.xlu0 %2636
    %v2639 = vmul.f32 %v2632, %v2637
    %2641 = vrot.lane.b32.xlu0 %v2639, 32
    %v2642 = vpop.permute.xlu0 %2641
    %v2644 = vadd.f32 %v2634, %v2642
    %v2645 = vtanh.pop %v2644
    %2647 = vrot.lane.b32.xlu0 %v2645, 64
    %v2648 = vpop.permute.xlu0 %2647
    %v2650 = vmul.f32 %v2632, %v2648
    %2652 = vrot.lane.b32.xlu0 %v2650, 32
    %v2653 = vpop.permute.xlu0 %2652
    %2655 = vst.msk [vmem:[%s1280] sm:$0xff] %vm325, %v2653
    %v2656 = vld [vmem:[%s1282] sm:$0xff]
    %v2657 = vld [vmem:[%s1284] sm:$0xff]
    %v2658 = vadd.f32 %v2656, %v2657
    %v2659 = vpack.c.bf16 %v2650, %v2650
    %2661 = vrot.lane.b32.xlu0 %v2659, 32
    %v2662 = vpop.permute.xlu0 %2661
    %v2664 = vsel %vm325, %v2662, 0
    %2666 = vmatpush.bf16.msra.mxu0 0
    %2667 = vmatpush.bf16.msra.mxu0 0
    %2668 = vmatpush.bf16.msra.mxu0 0
    %2669 = vmatpush.bf16.msra.mxu0 0
    %2670 = vmatpush.bf16.msra.mxu0 0
    %2671 = vmatpush.bf16.msra.mxu0 0
    %2672 = vmatpush.bf16.msra.mxu0 %v1739
    %2673 = vmatpush.bf16.msra.mxu0 %v1738
    %2674 = vmatmul.bf16.gmra.mxu0 %v2664
    %v2675 = vpop.f32.mrf.mxu0
    %v2676 = vadd.f32 0.0, %v2675
    %v2677 = vpop.f32.mrf.mxu0
    %2678 = vdwg.mxu0
    %v2679 = vadd.f32 %v2658, %v2676
    %v2680 = vxor.u32 %v2679, 2147483648
    %v2681 = vmul.f32 %v2680, 1.442695
    %v2682 = vpow.pop %v2681
    %v2683 = vadd.f32 %v2682, 1.0
    %v2684 = vrcp.pop %v2683
    %v2685 = vmul.f32 %v2683, %v2684
    %v2686 = vsub.f32 1.0, %v2685
    %v2687 = vmul.f32 %v2684, %v2686
    %v2688 = vadd.f32 %v2684, %v2687
    %vm2689 = vweird.f32 %v2683
    %vm2690 = vweird.f32 %v2684
    %vm2691 = vmor %vm2689, %vm2690
    %v2692 = vsel %vm2691, %v2684, %v2688
    %v2693 = vand.u32 2147483647, %v2683
    %vm2694 = vcmp.eq.f32.partialorder %v2693, 8.507059e+37
    %v2695 = vand.u32 %v2683, 2147483648
    %v2696 = vor.u32 1.1754944e-38, %v2695
    %v2697 = vsel %vm2694, %v2696, %v2692
    %v2698 = vmul.f32 1.0, %v2697
    %v2699 = vtanh.pop %v2679
    %v2700 = vmul.f32 %v2698, %v2644
    %2702 = vrot.lane.b32.xlu0 %v2699, 64
    %v2703 = vpop.permute.xlu0 %2702
    %v2705 = vmul.f32 %v2698, %v2703
    %2707 = vrot.lane.b32.xlu0 %v2705, 32
    %v2708 = vpop.permute.xlu0 %2707
    %v2710 = vadd.f32 %v2700, %v2708
    %v2711 = vtanh.pop %v2710
    %2713 = vrot.lane.b32.xlu0 %v2711, 64
    %v2714 = vpop.permute.xlu0 %2713
    %v2716 = vmul.f32 %v2698, %v2714
    %2718 = vrot.lane.b32.xlu0 %v2716, 32
    %v2719 = vpop.permute.xlu0 %2718
    %2721 = vst.msk [vmem:[%s1349] sm:$0xff] %vm325, %v2719
    %v2722 = vld [vmem:[%s1351] sm:$0xff]
    %v2723 = vld [vmem:[#allocation5] sm:$0xff]
    %v2724 = vadd.f32 %v2722, %v2723
    %v2725 = vpack.c.bf16 %v2716, %v2716
    %2727 = vrot.lane.b32.xlu0 %v2725, 32
    %v2728 = vpop.permute.xlu0 %2727
    %v2730 = vsel %vm325, %v2728, 0
    %2732 = vmatpush.bf16.msra.mxu0 0
    %2733 = vmatpush.bf16.msra.mxu0 0
    %2734 = vmatpush.bf16.msra.mxu0 0
    %2735 = vmatpush.bf16.msra.mxu0 0
    %2736 = vmatpush.bf16.msra.mxu0 0
    %2737 = vmatpush.bf16.msra.mxu0 0
    %2738 = vmatpush.bf16.msra.mxu0 %v1739
    %2739 = vmatpush.bf16.msra.mxu0 %v1738
    %2740 = vmatmul.bf16.gmra.mxu0 %v2730
    %v2741 = vpop.f32.mrf.mxu0
    %v2742 = vadd.f32 0.0, %v2741
    %v2743 = vpop.f32.mrf.mxu0
    %2744 = vdwg.mxu0
    %v2745 = vadd.f32 %v2724, %v2742
    %v2746 = vxor.u32 %v2745, 2147483648
    %v2747 = vmul.f32 %v2746, 1.442695
    %v2748 = vpow.pop %v2747
    %v2749 = vadd.f32 %v2748, 1.0
    %v2750 = vrcp.pop %v2749
    %v2751 = vmul.f32 %v2749, %v2750
    %v2752 = vsub.f32 1.0, %v2751
    %v2753 = vmul.f32 %v2750, %v2752
    %v2754 = vadd.f32 %v2750, %v2753
    %vm2755 = vweird.f32 %v2749
    %vm2756 = vweird.f32 %v2750
    %vm2757 = vmor %vm2755, %vm2756
    %v2758 = vsel %vm2757, %v2750, %v2754
    %v2759 = vand.u32 2147483647, %v2749
    %vm2760 = vcmp.eq.f32.partialorder %v2759, 8.507059e+37
    %v2761 = vand.u32 %v2749, 2147483648
    %v2762 = vor.u32 1.1754944e-38, %v2761
    %v2763 = vsel %vm2760, %v2762, %v2758
    %v2764 = vmul.f32 1.0, %v2763
    %v2765 = vtanh.pop %v2745
    %v2766 = vmul.f32 %v2764, %v2710
    %2768 = vrot.lane.b32.xlu0 %v2765, 64
    %v2769 = vpop.permute.xlu0 %2768
    %v2771 = vmul.f32 %v2764, %v2769
    %2773 = vrot.lane.b32.xlu0 %v2771, 32
    %v2774 = vpop.permute.xlu0 %2773
    %v2776 = vadd.f32 %v2766, %v2774
    %v2777 = vtanh.pop %v2776
    %2779 = vrot.lane.b32.xlu0 %v2777, 64
    %v2780 = vpop.permute.xlu0 %2779
    %v2782 = vmul.f32 %v2764, %v2780
    %2784 = vrot.lane.b32.xlu0 %v2782, 32
    %v2785 = vpop.permute.xlu0 %2784
    %2787 = vst.msk [vmem:[%s1417] sm:$0xff] %vm325, %v2785
    %v2788 = vld [vmem:[#allocation2] sm:$0xff]
    %v2789 = vld [vmem:[#allocation2 + $0x8] sm:$0xff]
    %v2790 = vld [vmem:[#allocation2 + $0x10] sm:$0xff]
    %v2791 = vld [vmem:[#allocation2 + $0x18] sm:$0xff]
    %v2792 = vld [vmem:[#allocation2 + $0x20] sm:$0xff]
    %v2793 = vld [vmem:[#allocation2 + $0x28] sm:$0xff]
    %v2794 = vld [vmem:[#allocation2 + $0x30] sm:$0xff]
    %v2795 = vld [vmem:[#allocation2 + $0x38] sm:$0xff]
    %v2796 = vld [vmem:[#allocation2 + $0x40] sm:$0xff]
    %v2797 = vld [vmem:[#allocation2 + $0x48] sm:$0xff]
    %v2798 = vld [vmem:[#allocation2 + $0x50] sm:$0xff]
    %v2799 = vld [vmem:[#allocation2 + $0x58] sm:$0xff]
    %v2800 = vld [vmem:[#allocation2 + $0x60] sm:$0xff]
    %v2801 = vld [vmem:[#allocation2 + $0x68] sm:$0xff]
    %v2802 = vld [vmem:[#allocation2 + $0x70] sm:$0xff]
    %v2803 = vld [vmem:[#allocation2 + $0x78] sm:$0xff]
    %2804 = vst.msk [vmem:[#allocation3] sm:$0xff] %vm1435, %v2788
    %2805 = vst.msk [vmem:[#allocation3 + $0x8] sm:$0xff] %vm1435, %v2789
    %2806 = vst.msk [vmem:[#allocation3 + $0x10] sm:$0xff] %vm1435, %v2790
    %2807 = vst.msk [vmem:[#allocation3 + $0x18] sm:$0xff] %vm1435, %v2791
    %2808 = vst.msk [vmem:[#allocation3 + $0x20] sm:$0xff] %vm1435, %v2792
    %2809 = vst.msk [vmem:[#allocation3 + $0x28] sm:$0xff] %vm1435, %v2793
    %2810 = vst.msk [vmem:[#allocation3 + $0x30] sm:$0xff] %vm1435, %v2794
    %2811 = vst.msk [vmem:[#allocation3 + $0x38] sm:$0xff] %vm1435, %v2795
    %2812 = vst.msk [vmem:[#allocation3 + $0x40] sm:$0xff] %vm1435, %v2796
    %2813 = vst.msk [vmem:[#allocation3 + $0x48] sm:$0xff] %vm1435, %v2797
    %2814 = vst.msk [vmem:[#allocation3 + $0x50] sm:$0xff] %vm1435, %v2798
    %2815 = vst.msk [vmem:[#allocation3 + $0x58] sm:$0xff] %vm1435, %v2799
    %2816 = vst.msk [vmem:[#allocation3 + $0x60] sm:$0xff] %vm1435, %v2800
    %2817 = vst.msk [vmem:[#allocation3 + $0x68] sm:$0xff] %vm1435, %v2801
    %2818 = vst.msk [vmem:[#allocation3 + $0x70] sm:$0xff] %vm1435, %v2802
    %2819 = vst.msk [vmem:[#allocation3 + $0x78] sm:$0xff] %vm1435, %v2803
    %v2820 = vld [vmem:[#allocation2 + $0x78] sm:$0xff]
    %2821 = vst.msk [vmem:[#allocation3] sm:$0xff] %vm1453, %v2820
    %v2822 = vld [vmem:[#allocation2 + $0x70] sm:$0xff]
    %2823 = vst.msk [vmem:[#allocation3 + $0x8] sm:$0xff] %vm1453, %v2822
    %v2824 = vld [vmem:[#allocation2 + $0x68] sm:$0xff]
    %2825 = vst.msk [vmem:[#allocation3 + $0x10] sm:$0xff] %vm1453, %v2824
    %v2826 = vld [vmem:[#allocation2 + $0x60] sm:$0xff]
    %2827 = vst.msk [vmem:[#allocation3 + $0x18] sm:$0xff] %vm1453, %v2826
    %v2828 = vld [vmem:[#allocation2 + $0x58] sm:$0xff]
    %2829 = vst.msk [vmem:[#allocation3 + $0x20] sm:$0xff] %vm1453, %v2828
    %v2830 = vld [vmem:[#allocation2 + $0x50] sm:$0xff]
    %2831 = vst.msk [vmem:[#allocation3 + $0x28] sm:$0xff] %vm1453, %v2830
    %v2832 = vld [vmem:[#allocation2 + $0x48] sm:$0xff]
    %2833 = vst.msk [vmem:[#allocation3 + $0x30] sm:$0xff] %vm1453, %v2832
    %v2834 = vld [vmem:[#allocation2 + $0x40] sm:$0xff]
    %2835 = vst.msk [vmem:[#allocation3 + $0x38] sm:$0xff] %vm1453, %v2834
    %v2836 = vld [vmem:[#allocation2 + $0x38] sm:$0xff]
    %2837 = vst.msk [vmem:[#allocation3 + $0x40] sm:$0xff] %vm1453, %v2836
    %v2838 = vld [vmem:[#allocation2 + $0x30] sm:$0xff]
    %2839 = vst.msk [vmem:[#allocation3 + $0x48] sm:$0xff] %vm1453, %v2838
    %v2840 = vld [vmem:[#allocation2 + $0x28] sm:$0xff]
    %2841 = vst.msk [vmem:[#allocation3 + $0x50] sm:$0xff] %vm1453, %v2840
    %v2842 = vld [vmem:[#allocation2 + $0x20] sm:$0xff]
    %2843 = vst.msk [vmem:[#allocation3 + $0x58] sm:$0xff] %vm1453, %v2842
    %v2844 = vld [vmem:[#allocation2 + $0x18] sm:$0xff]
    %2845 = vst.msk [vmem:[#allocation3 + $0x60] sm:$0xff] %vm1453, %v2844
    %v2846 = vld [vmem:[#allocation2 + $0x10] sm:$0xff]
    %2847 = vst.msk [vmem:[#allocation3 + $0x68] sm:$0xff] %vm1453, %v2846
    %v2848 = vld [vmem:[#allocation2 + $0x8] sm:$0xff]
    %2849 = vst.msk [vmem:[#allocation3 + $0x70] sm:$0xff] %vm1453, %v2848
    %v2850 = vld [vmem:[#allocation2] sm:$0xff]
    %2851 = vst.msk [vmem:[#allocation3 + $0x78] sm:$0xff] %vm1453, %v2850
    %v2852 = vld [vmem:[%s9] sm:$0x1]
    %v2854 = vperm.slane %v2852, 0
    %v2856 = vmul.f32 %v137, %v2854
    %v2857 = vmul.f32 %v142, %v2854
    %v2858 = vmul.f32 %v147, %v2854
    %v2859 = vmul.f32 %v152, %v2854
    %v2860 = vmul.f32 %v157, %v2854
    %v2861 = vmul.f32 %v162, %v2854
    %v2862 = vmul.f32 %v167, %v2854
    %v2863 = vmul.f32 %v172, %v2854
    %v2864 = vmul.f32 %v177, %v2854
    %v2865 = vmul.f32 %v182, %v2854
    %v2866 = vmul.f32 %v187, %v2854
    %v2867 = vmul.f32 %v192, %v2854
    %v2868 = vmul.f32 %v197, %v2854
    %v2869 = vmul.f32 %v202, %v2854
    %v2870 = vmul.f32 %v207, %v2854
    %v2871 = vmul.f32 %v212, %v2854
    %v2872 = vld [vmem:[%s10] sm:$0x1]
    %v2874 = vperm.slane %v2872, 0
    %v2876 = vadd.f32 %v2856, %v2874
    %v2877 = vadd.f32 %v2857, %v2874
    %v2878 = vadd.f32 %v2858, %v2874
    %v2879 = vadd.f32 %v2859, %v2874
    %v2880 = vadd.f32 %v2860, %v2874
    %v2881 = vadd.f32 %v2861, %v2874
    %v2882 = vadd.f32 %v2862, %v2874
    %v2883 = vadd.f32 %v2863, %v2874
    %v2884 = vadd.f32 %v2864, %v2874
    %v2885 = vadd.f32 %v2865, %v2874
    %v2886 = vadd.f32 %v2866, %v2874
    %v2887 = vadd.f32 %v2867, %v2874
    %v2888 = vadd.f32 %v2868, %v2874
    %v2889 = vadd.f32 %v2869, %v2874
    %v2890 = vadd.f32 %v2870, %v2874
    %v2891 = vadd.f32 %v2871, %v2874
    %v2892 = vld [vmem:[#allocation3] sm:$0xff]
    %v2893 = vld [vmem:[#allocation3 + $0x8] sm:$0xff]
    %v2894 = vld [vmem:[#allocation3 + $0x10] sm:$0xff]
    %v2895 = vld [vmem:[#allocation3 + $0x18] sm:$0xff]
    %v2896 = vld [vmem:[#allocation3 + $0x20] sm:$0xff]
    %v2897 = vld [vmem:[#allocation3 + $0x28] sm:$0xff]
    %v2898 = vld [vmem:[#allocation3 + $0x30] sm:$0xff]
    %v2899 = vld [vmem:[#allocation3 + $0x38] sm:$0xff]
    %v2900 = vld [vmem:[#allocation3 + $0x40] sm:$0xff]
    %v2901 = vld [vmem:[#allocation3 + $0x48] sm:$0xff]
    %v2902 = vld [vmem:[#allocation3 + $0x50] sm:$0xff]
    %v2903 = vld [vmem:[#allocation3 + $0x58] sm:$0xff]
    %v2904 = vld [vmem:[#allocation3 + $0x60] sm:$0xff]
    %v2905 = vld [vmem:[#allocation3 + $0x68] sm:$0xff]
    %v2906 = vld [vmem:[#allocation3 + $0x70] sm:$0xff]
    %v2907 = vld [vmem:[#allocation3 + $0x78] sm:$0xff]
    %v2908 = vld [vmem:[#allocation10] sm:$0xff]
    %v2909 = vld [vmem:[#allocation10 + $0x8] sm:$0xff]
    %v2910 = vld [vmem:[#allocation10 + $0x10] sm:$0xff]
    %v2911 = vld [vmem:[#allocation10 + $0x18] sm:$0xff]
    %v2912 = vld [vmem:[%s12] sm:$0x1]
    %v2914 = vperm.slane %v2912, 0
    %v2917 = vsel %vm325, %v2892, 0
    %v2920 = vsel %vm325, %v2893, 0
    %v2923 = vsel %vm325, %v2894, 0
    %v2926 = vsel %vm325, %v2895, 0
    %v2929 = vsel %vm325, %v2896, 0
    %v2932 = vsel %vm325, %v2897, 0
    %v2935 = vsel %vm325, %v2898, 0
    %v2938 = vsel %vm325, %v2899, 0
    %v2941 = vsel %vm325, %v2900, 0
    %v2944 = vsel %vm325, %v2901, 0
    %v2947 = vsel %vm325, %v2902, 0
    %v2950 = vsel %vm325, %v2903, 0
    %v2953 = vsel %vm325, %v2904, 0
    %v2956 = vsel %vm325, %v2905, 0
    %v2959 = vsel %vm325, %v2906, 0
    %v2962 = vsel %vm325, %v2907, 0
    %2964 = vmatpush.msra.mxu0 0.0
    %2965 = vmatpush.msra.mxu0 0.0
    %2966 = vmatpush.msra.mxu0 0.0
    %2967 = vmatpush.msra.mxu0 0.0
    %2968 = vmatpush.msra.mxu0 0.0
    %2969 = vmatpush.msra.mxu0 0.0
    %2970 = vmatpush.msra.mxu0 0.0
    %2971 = vmatpush.msra.mxu0 0.0
    %2972 = vmatpush.msra.mxu0 0.0
    %2973 = vmatpush.msra.mxu0 0.0
    %2974 = vmatpush.msra.mxu0 0.0
    %2975 = vmatpush.msra.mxu0 0.0
    %2976 = vmatpush.msra.mxu0 %v2911
    %2977 = vmatpush.msra.mxu0 %v2910
    %2978 = vmatpush.msra.mxu0 %v2909
    %2979 = vmatpush.msra.mxu0 %v2908
    %2980 = vmatmul.f32.gmra.mxu0 %v2917
    %v2981 = vpop.f32.mrf.mxu0
    %v2982 = vadd.f32 %v2914, %v2981
    %2983 = vmatmul.f32.gmra.mxu0 %v2920
    %v2984 = vpop.f32.mrf.mxu0
    %v2985 = vadd.f32 %v2914, %v2984
    %2986 = vmatmul.f32.gmra.mxu0 %v2923
    %v2987 = vpop.f32.mrf.mxu0
    %v2988 = vadd.f32 %v2914, %v2987
    %2989 = vmatmul.f32.gmra.mxu0 %v2926
    %v2990 = vpop.f32.mrf.mxu0
    %v2991 = vadd.f32 %v2914, %v2990
    %2992 = vmatmul.f32.gmra.mxu0 %v2929
    %v2993 = vpop.f32.mrf.mxu0
    %v2994 = vadd.f32 %v2914, %v2993
    %2995 = vmatmul.f32.gmra.mxu0 %v2932
    %v2996 = vpop.f32.mrf.mxu0
    %v2997 = vadd.f32 %v2914, %v2996
    %2998 = vmatmul.f32.gmra.mxu0 %v2935
    %v2999 = vpop.f32.mrf.mxu0
    %v3000 = vadd.f32 %v2914, %v2999
    %3001 = vmatmul.f32.gmra.mxu0 %v2938
    %v3002 = vpop.f32.mrf.mxu0
    %v3003 = vadd.f32 %v2914, %v3002
    %3004 = vmatmul.f32.gmra.mxu0 %v2941
    %v3005 = vpop.f32.mrf.mxu0
    %v3006 = vadd.f32 %v2914, %v3005
    %3007 = vmatmul.f32.gmra.mxu0 %v2944
    %v3008 = vpop.f32.mrf.mxu0
    %v3009 = vadd.f32 %v2914, %v3008
    %3010 = vmatmul.f32.gmra.mxu0 %v2947
    %v3011 = vpop.f32.mrf.mxu0
    %v3012 = vadd.f32 %v2914, %v3011
    %3013 = vmatmul.f32.gmra.mxu0 %v2950
    %v3014 = vpop.f32.mrf.mxu0
    %v3015 = vadd.f32 %v2914, %v3014
    %3016 = vmatmul.f32.gmra.mxu0 %v2953
    %v3017 = vpop.f32.mrf.mxu0
    %v3018 = vadd.f32 %v2914, %v3017
    %3019 = vmatmul.f32.gmra.mxu0 %v2956
    %v3020 = vpop.f32.mrf.mxu0
    %v3021 = vadd.f32 %v2914, %v3020
    %3022 = vmatmul.f32.gmra.mxu0 %v2959
    %v3023 = vpop.f32.mrf.mxu0
    %v3024 = vadd.f32 %v2914, %v3023
    %3025 = vmatmul.f32.gmra.mxu0 %v2962
    %v3026 = vpop.f32.mrf.mxu0
    %v3027 = vadd.f32 %v2914, %v3026
    %3028 = vdwg.mxu0
    %vm3029 = vcmp.ge.f32.partialorder %v2876, 0.0
    %vm3030 = vcmp.ge.f32.partialorder %v2877, 0.0
    %vm3031 = vcmp.ge.f32.partialorder %v2878, 0.0
    %vm3032 = vcmp.ge.f32.partialorder %v2879, 0.0
    %vm3033 = vcmp.ge.f32.partialorder %v2880, 0.0
    %vm3034 = vcmp.ge.f32.partialorder %v2881, 0.0
    %vm3035 = vcmp.ge.f32.partialorder %v2882, 0.0
    %vm3036 = vcmp.ge.f32.partialorder %v2883, 0.0
    %vm3037 = vcmp.ge.f32.partialorder %v2884, 0.0
    %vm3038 = vcmp.ge.f32.partialorder %v2885, 0.0
    %vm3039 = vcmp.ge.f32.partialorder %v2886, 0.0
    %vm3040 = vcmp.ge.f32.partialorder %v2887, 0.0
    %vm3041 = vcmp.ge.f32.partialorder %v2888, 0.0
    %vm3042 = vcmp.ge.f32.partialorder %v2889, 0.0
    %vm3043 = vcmp.ge.f32.partialorder %v2890, 0.0
    %vm3044 = vcmp.ge.f32.partialorder %v2891, 0.0
    %v3045 = vmul.f32 %v2876, 0.2
    %v3046 = vmul.f32 %v2877, 0.2
    %v3047 = vmul.f32 %v2878, 0.2
    %v3048 = vmul.f32 %v2879, 0.2
    %v3049 = vmul.f32 %v2880, 0.2
    %v3050 = vmul.f32 %v2881, 0.2
    %v3051 = vmul.f32 %v2882, 0.2
    %v3052 = vmul.f32 %v2883, 0.2
    %v3053 = vmul.f32 %v2884, 0.2
    %v3054 = vmul.f32 %v2885, 0.2
    %v3055 = vmul.f32 %v2886, 0.2
    %v3056 = vmul.f32 %v2887, 0.2
    %v3057 = vmul.f32 %v2888, 0.2
    %v3058 = vmul.f32 %v2889, 0.2
    %v3059 = vmul.f32 %v2890, 0.2
    %v3060 = vmul.f32 %v2891, 0.2
    %v3061 = vsel %vm3029, %v2876, %v3045
    %v3062 = vsel %vm3030, %v2877, %v3046
    %v3063 = vsel %vm3031, %v2878, %v3047
    %v3064 = vsel %vm3032, %v2879, %v3048
    %v3065 = vsel %vm3033, %v2880, %v3049
    %v3066 = vsel %vm3034, %v2881, %v3050
    %v3067 = vsel %vm3035, %v2882, %v3051
    %v3068 = vsel %vm3036, %v2883, %v3052
    %v3069 = vsel %vm3037, %v2884, %v3053
    %v3070 = vsel %vm3038, %v2885, %v3054
    %v3071 = vsel %vm3039, %v2886, %v3055
    %v3072 = vsel %vm3040, %v2887, %v3056
    %v3073 = vsel %vm3041, %v2888, %v3057
    %v3074 = vsel %vm3042, %v2889, %v3058
    %v3075 = vsel %vm3043, %v2890, %v3059
    %v3076 = vsel %vm3044, %v2891, %v3060
    %vm3077 = vcmp.ge.f32.partialorder %v2982, 0.0
    %vm3078 = vcmp.ge.f32.partialorder %v2985, 0.0
    %vm3079 = vcmp.ge.f32.partialorder %v2988, 0.0
    %vm3080 = vcmp.ge.f32.partialorder %v2991, 0.0
    %vm3081 = vcmp.ge.f32.partialorder %v2994, 0.0
    %vm3082 = vcmp.ge.f32.partialorder %v2997, 0.0
    %vm3083 = vcmp.ge.f32.partialorder %v3000, 0.0
    %vm3084 = vcmp.ge.f32.partialorder %v3003, 0.0
    %vm3085 = vcmp.ge.f32.partialorder %v3006, 0.0
    %vm3086 = vcmp.ge.f32.partialorder %v3009, 0.0
    %vm3087 = vcmp.ge.f32.partialorder %v3012, 0.0
    %vm3088 = vcmp.ge.f32.partialorder %v3015, 0.0
    %vm3089 = vcmp.ge.f32.partialorder %v3018, 0.0
    %vm3090 = vcmp.ge.f32.partialorder %v3021, 0.0
    %vm3091 = vcmp.ge.f32.partialorder %v3024, 0.0
    %vm3092 = vcmp.ge.f32.partialorder %v3027, 0.0
    %v3093 = vmul.f32 %v2982, 0.2
    %v3094 = vmul.f32 %v2985, 0.2
    %v3095 = vmul.f32 %v2988, 0.2
    %v3096 = vmul.f32 %v2991, 0.2
    %v3097 = vmul.f32 %v2994, 0.2
    %v3098 = vmul.f32 %v2997, 0.2
    %v3099 = vmul.f32 %v3000, 0.2
    %v3100 = vmul.f32 %v3003, 0.2
    %v3101 = vmul.f32 %v3006, 0.2
    %v3102 = vmul.f32 %v3009, 0.2
    %v3103 = vmul.f32 %v3012, 0.2
    %v3104 = vmul.f32 %v3015, 0.2
    %v3105 = vmul.f32 %v3018, 0.2
    %v3106 = vmul.f32 %v3021, 0.2
    %v3107 = vmul.f32 %v3024, 0.2
    %v3108 = vmul.f32 %v3027, 0.2
    %v3109 = vsel %vm3077, %v2982, %v3093
    %v3110 = vsel %vm3078, %v2985, %v3094
    %v3111 = vsel %vm3079, %v2988, %v3095
    %v3112 = vsel %vm3080, %v2991, %v3096
    %v3113 = vsel %vm3081, %v2994, %v3097
    %v3114 = vsel %vm3082, %v2997, %v3098
    %v3115 = vsel %vm3083, %v3000, %v3099
    %v3116 = vsel %vm3084, %v3003, %v3100
    %v3117 = vsel %vm3085, %v3006, %v3101
    %v3118 = vsel %vm3086, %v3009, %v3102
    %v3119 = vsel %vm3087, %v3012, %v3103
    %v3120 = vsel %vm3088, %v3015, %v3104
    %v3121 = vsel %vm3089, %v3018, %v3105
    %v3122 = vsel %vm3090, %v3021, %v3106
    %v3123 = vsel %vm3091, %v3024, %v3107
    %v3124 = vsel %vm3092, %v3027, %v3108
    %v3125 = vld [vmem:[%s13] sm:$0xff]
    %v3126 = vld [vmem:[%s13 + $0x8] sm:$0xff]
    %v3127 = vld [vmem:[%s13 + $0x10] sm:$0xff]
    %v3128 = vld [vmem:[%s13 + $0x18] sm:$0xff]
    %v3129 = vld [vmem:[%s13 + $0x20] sm:$0xff]
    %v3130 = vld [vmem:[%s13 + $0x28] sm:$0xff]
    %v3131 = vld [vmem:[%s13 + $0x30] sm:$0xff]
    %v3132 = vld [vmem:[%s13 + $0x38] sm:$0xff]
    %v3133 = vld [vmem:[%s13 + $0x40] sm:$0xff]
    %v3134 = vld [vmem:[%s13 + $0x48] sm:$0xff]
    %v3135 = vld [vmem:[%s13 + $0x50] sm:$0xff]
    %v3136 = vld [vmem:[%s13 + $0x58] sm:$0xff]
    %v3137 = vld [vmem:[%s13 + $0x60] sm:$0xff]
    %v3138 = vld [vmem:[%s13 + $0x68] sm:$0xff]
    %v3139 = vld [vmem:[%s13 + $0x70] sm:$0xff]
    %v3140 = vld [vmem:[%s13 + $0x78] sm:$0xff]
    %v3141 = vld [vmem:[#allocation11] sm:$0xff]
    %v3142 = vld [vmem:[#allocation11 + $0x8] sm:$0xff]
    %v3143 = vld [vmem:[#allocation11 + $0x10] sm:$0xff]
    %v3144 = vld [vmem:[#allocation11 + $0x18] sm:$0xff]
    %v3145 = vld [vmem:[#allocation11 + $0x20] sm:$0xff]
    %v3146 = vld [vmem:[#allocation11 + $0x28] sm:$0xff]
    %v3147 = vld [vmem:[#allocation11 + $0x30] sm:$0xff]
    %v3148 = vld [vmem:[#allocation11 + $0x38] sm:$0xff]
    %v3149 = vld [vmem:[#allocation11 + $0x40] sm:$0xff]
    %v3150 = vld [vmem:[#allocation11 + $0x48] sm:$0xff]
    %v3151 = vld [vmem:[#allocation11 + $0x50] sm:$0xff]
    %v3152 = vld [vmem:[#allocation11 + $0x58] sm:$0xff]
    %v3153 = vld [vmem:[#allocation11 + $0x60] sm:$0xff]
    %v3154 = vld [vmem:[#allocation11 + $0x68] sm:$0xff]
    %v3155 = vld [vmem:[#allocation11 + $0x70] sm:$0xff]
    %v3156 = vld [vmem:[#allocation11 + $0x78] sm:$0xff]
    %3157 = vmatpush.msra.mxu0 %v3156
    %3158 = vmatpush.msra.mxu0 %v3155
    %3159 = vmatpush.msra.mxu0 %v3154
    %3160 = vmatpush.msra.mxu0 %v3153
    %3161 = vmatpush.msra.mxu0 %v3152
    %3162 = vmatpush.msra.mxu0 %v3151
    %3163 = vmatpush.msra.mxu0 %v3150
    %3164 = vmatpush.msra.mxu0 %v3149
    %3165 = vmatpush.msra.mxu0 %v3148
    %3166 = vmatpush.msra.mxu0 %v3147
    %3167 = vmatpush.msra.mxu0 %v3146
    %3168 = vmatpush.msra.mxu0 %v3145
    %3169 = vmatpush.msra.mxu0 %v3144
    %3170 = vmatpush.msra.mxu0 %v3143
    %3171 = vmatpush.msra.mxu0 %v3142
    %3172 = vmatpush.msra.mxu0 %v3141
    %3173 = vmatmul.f32.gmra.mxu0 %v3109
    %v3174 = vpop.f32.mrf.mxu0
    %v3175 = vadd.f32 0.0, %v3174
    %3176 = vmatmul.f32.gmra.mxu0 %v3110
    %v3177 = vpop.f32.mrf.mxu0
    %v3178 = vadd.f32 0.0, %v3177
    %3179 = vmatmul.f32.gmra.mxu0 %v3111
    %v3180 = vpop.f32.mrf.mxu0
    %v3181 = vadd.f32 0.0, %v3180
    %3182 = vmatmul.f32.gmra.mxu0 %v3112
    %v3183 = vpop.f32.mrf.mxu0
    %v3184 = vadd.f32 0.0, %v3183
    %3185 = vmatmul.f32.gmra.mxu0 %v3113
    %v3186 = vpop.f32.mrf.mxu0
    %v3187 = vadd.f32 0.0, %v3186
    %3188 = vmatmul.f32.gmra.mxu0 %v3114
    %v3189 = vpop.f32.mrf.mxu0
    %v3190 = vadd.f32 0.0, %v3189
    %3191 = vmatmul.f32.gmra.mxu0 %v3115
    %v3192 = vpop.f32.mrf.mxu0
    %v3193 = vadd.f32 0.0, %v3192
    %3194 = vmatmul.f32.gmra.mxu0 %v3116
    %v3195 = vpop.f32.mrf.mxu0
    %v3196 = vadd.f32 0.0, %v3195
    %3197 = vmatmul.f32.gmra.mxu0 %v3117
    %v3198 = vpop.f32.mrf.mxu0
    %v3199 = vadd.f32 0.0, %v3198
    %3200 = vmatmul.f32.gmra.mxu0 %v3118
    %v3201 = vpop.f32.mrf.mxu0
    %v3202 = vadd.f32 0.0, %v3201
    %3203 = vmatmul.f32.gmra.mxu0 %v3119
    %v3204 = vpop.f32.mrf.mxu0
    %v3205 = vadd.f32 0.0, %v3204
    %3206 = vmatmul.f32.gmra.mxu0 %v3120
    %v3207 = vpop.f32.mrf.mxu0
    %v3208 = vadd.f32 0.0, %v3207
    %3209 = vmatmul.f32.gmra.mxu0 %v3121
    %v3210 = vpop.f32.mrf.mxu0
    %v3211 = vadd.f32 0.0, %v3210
    %3212 = vmatmul.f32.gmra.mxu0 %v3122
    %v3213 = vpop.f32.mrf.mxu0
    %v3214 = vadd.f32 0.0, %v3213
    %3215 = vmatmul.f32.gmra.mxu0 %v3123
    %v3216 = vpop.f32.mrf.mxu0
    %v3217 = vadd.f32 0.0, %v3216
    %3218 = vmatmul.f32.gmra.mxu0 %v3124
    %v3219 = vpop.f32.mrf.mxu0
    %v3220 = vadd.f32 0.0, %v3219
    %3221 = vdwg.mxu0
    %3222 = vmatpush.msra.mxu0 %v3140
    %3223 = vmatpush.msra.mxu0 %v3139
    %3224 = vmatpush.msra.mxu0 %v3138
    %3225 = vmatpush.msra.mxu0 %v3137
    %3226 = vmatpush.msra.mxu0 %v3136
    %3227 = vmatpush.msra.mxu0 %v3135
    %3228 = vmatpush.msra.mxu0 %v3134
    %3229 = vmatpush.msra.mxu0 %v3133
    %3230 = vmatpush.msra.mxu0 %v3132
    %3231 = vmatpush.msra.mxu0 %v3131
    %3232 = vmatpush.msra.mxu0 %v3130
    %3233 = vmatpush.msra.mxu0 %v3129
    %3234 = vmatpush.msra.mxu0 %v3128
    %3235 = vmatpush.msra.mxu0 %v3127
    %3236 = vmatpush.msra.mxu0 %v3126
    %3237 = vmatpush.msra.mxu0 %v3125
    %3238 = vmatmul.f32.gmra.mxu0 %v3061
    %v3239 = vpop.f32.mrf.mxu0
    %v3240 = vadd.f32 %v3175, %v3239
    %3241 = vmatmul.f32.gmra.mxu0 %v3062
    %v3242 = vpop.f32.mrf.mxu0
    %v3243 = vadd.f32 %v3178, %v3242
    %3244 = vmatmul.f32.gmra.mxu0 %v3063
    %v3245 = vpop.f32.mrf.mxu0
    %v3246 = vadd.f32 %v3181, %v3245
    %3247 = vmatmul.f32.gmra.mxu0 %v3064
    %v3248 = vpop.f32.mrf.mxu0
    %v3249 = vadd.f32 %v3184, %v3248
    %3250 = vmatmul.f32.gmra.mxu0 %v3065
    %v3251 = vpop.f32.mrf.mxu0
    %v3252 = vadd.f32 %v3187, %v3251
    %3253 = vmatmul.f32.gmra.mxu0 %v3066
    %v3254 = vpop.f32.mrf.mxu0
    %v3255 = vadd.f32 %v3190, %v3254
    %3256 = vmatmul.f32.gmra.mxu0 %v3067
    %v3257 = vpop.f32.mrf.mxu0
    %v3258 = vadd.f32 %v3193, %v3257
    %3259 = vmatmul.f32.gmra.mxu0 %v3068
    %v3260 = vpop.f32.mrf.mxu0
    %v3261 = vadd.f32 %v3196, %v3260
    %3262 = vmatmul.f32.gmra.mxu0 %v3069
    %v3263 = vpop.f32.mrf.mxu0
    %v3264 = vadd.f32 %v3199, %v3263
    %3265 = vmatmul.f32.gmra.mxu0 %v3070
    %v3266 = vpop.f32.mrf.mxu0
    %v3267 = vadd.f32 %v3202, %v3266
    %3268 = vmatmul.f32.gmra.mxu0 %v3071
    %v3269 = vpop.f32.mrf.mxu0
    %v3270 = vadd.f32 %v3205, %v3269
    %3271 = vmatmul.f32.gmra.mxu0 %v3072
    %v3272 = vpop.f32.mrf.mxu0
    %v3273 = vadd.f32 %v3208, %v3272
    %3274 = vmatmul.f32.gmra.mxu0 %v3073
    %v3275 = vpop.f32.mrf.mxu0
    %v3276 = vadd.f32 %v3211, %v3275
    %3277 = vmatmul.f32.gmra.mxu0 %v3074
    %v3278 = vpop.f32.mrf.mxu0
    %v3279 = vadd.f32 %v3214, %v3278
    %3280 = vmatmul.f32.gmra.mxu0 %v3075
    %v3281 = vpop.f32.mrf.mxu0
    %v3282 = vadd.f32 %v3217, %v3281
    %3283 = vmatmul.f32.gmra.mxu0 %v3076
    %v3284 = vpop.f32.mrf.mxu0
    %v3285 = vadd.f32 %v3220, %v3284
    %3286 = vdwg.mxu0
    %v3287 = vld [vmem:[%s15] sm:$0x1]
    %v3289 = vperm.slane %v3287, 0
    %v3291 = vadd.f32 %v3240, %v3289
    %v3292 = vadd.f32 %v3243, %v3289
    %v3293 = vadd.f32 %v3246, %v3289
    %v3294 = vadd.f32 %v3249, %v3289
    %v3295 = vadd.f32 %v3252, %v3289
    %v3296 = vadd.f32 %v3255, %v3289
    %v3297 = vadd.f32 %v3258, %v3289
    %v3298 = vadd.f32 %v3261, %v3289
    %v3299 = vadd.f32 %v3264, %v3289
    %v3300 = vadd.f32 %v3267, %v3289
    %v3301 = vadd.f32 %v3270, %v3289
    %v3302 = vadd.f32 %v3273, %v3289
    %v3303 = vadd.f32 %v3276, %v3289
    %v3304 = vadd.f32 %v3279, %v3289
    %v3305 = vadd.f32 %v3282, %v3289
    %v3306 = vadd.f32 %v3285, %v3289
    %3307 = vst [vmem:[%s16] sm:$0xff] %v3291
    %3308 = vst [vmem:[%s16 + $0x8] sm:$0xff] %v3292
    %3309 = vst [vmem:[%s16 + $0x10] sm:$0xff] %v3293
    %3310 = vst [vmem:[%s16 + $0x18] sm:$0xff] %v3294
    %3311 = vst [vmem:[%s16 + $0x20] sm:$0xff] %v3295
    %3312 = vst [vmem:[%s16 + $0x28] sm:$0xff] %v3296
    %3313 = vst [vmem:[%s16 + $0x30] sm:$0xff] %v3297
    %3314 = vst [vmem:[%s16 + $0x38] sm:$0xff] %v3298
    %3315 = vst [vmem:[%s16 + $0x40] sm:$0xff] %v3299
    %3316 = vst [vmem:[%s16 + $0x48] sm:$0xff] %v3300
    %3317 = vst [vmem:[%s16 + $0x50] sm:$0xff] %v3301
    %3318 = vst [vmem:[%s16 + $0x58] sm:$0xff] %v3302
    %3319 = vst [vmem:[%s16 + $0x60] sm:$0xff] %v3303
    %3320 = vst [vmem:[%s16 + $0x68] sm:$0xff] %v3304
    %3321 = vst [vmem:[%s16 + $0x70] sm:$0xff] %v3305
    %3322 = vst [vmem:[%s16 + $0x78] sm:$0xff] %v3306
    // Predicated region
    $region82: #{forward.1} parent=1 // pred_check
      _
    $region83: #{forward.1} parent=1 // pred_check_branch
      %3324 = sbr.rel (0) target = $region85
    $region84: #{forward.1} parent=1 // pred_region
      _
    $region85: #{forward.1} parent=1 // pred_fallthru
      _
    // Predicated region
    $region86: #{forward.1} parent=1 // pred_check
      _
    $region87: #{forward.1} parent=1 // pred_check_branch
      %3326 = sbr.rel (0) target = $region89
    $region88: #{forward.1} parent=1 // pred_region
      _
    $region89: #{forward.1} parent=1 // pred_fallthru
      _
    %3327 = vsyncpa [#allocation7], 1
    %3328 = vsyncpa [#allocation9], 1
    %3329 = vsyncpa [#allocation12], 1

</llo_original>
